<compile_context>
chip_gen: v7x
topology: tpu7x:2x2x1
jax: 0.10.0
libtpu: 0.0.40
codegen_flags: <defaults>
</compile_context>

<pallas_src>
import jax
import jax.numpy as jnp
from jax.experimental import pallas as pl
from jax.experimental.pallas import tpu as pltpu

EPS = 1e-6  # matches vn_layers EPS


def _round_up(a, m):
    return ((a + m - 1) // m) * m


def _pad128(n):
    return _round_up(n, 128)


# ----------------------------- in-kernel helpers ---------------------------------------

def _gram_stat(g_ref, t):
    """sum_{u,v} G[u,v] * <t_u, t_v>  (G symmetric 3x3, held in SMEM).

    Algebraic fold of ||(I-P) E t||_F^2 with G = ((I-P)E)^T (I-P)E precomputed in JAX.
    """
    s00 = jnp.sum(t[0] * t[0])
    s11 = jnp.sum(t[1] * t[1])
    s22 = jnp.sum(t[2] * t[2])
    s01 = jnp.sum(t[0] * t[1])
    s02 = jnp.sum(t[0] * t[2])
    s12 = jnp.sum(t[1] * t[2])
    return (g_ref[0, 0] * s00 + g_ref[1, 1] * s11 + g_ref[2, 2] * s22
            + 2.0 * (g_ref[0, 1] * s01 + g_ref[0, 2] * s02 + g_ref[1, 2] * s12))


def _stat_tile(n_ld, n):
    """Pack two scalars into a lane-aligned (8, 128) f32 tile (row 0, lanes 0 / 1)."""
    row = jax.lax.broadcasted_iota(jnp.int32, (8, 128), 0)
    lane = jax.lax.broadcasted_iota(jnp.int32, (8, 128), 1)
    z = jnp.zeros((8, 128), jnp.float32)
    t = jnp.where((row == 0) & (lane == 0), n_ld, z)
    return jnp.where((row == 0) & (lane == 1), n, t)


def _vn_lrelu_block(x, wcat_bf16, bns, bnb, g_ref):
    """VNLinearLeakyReLU_Dual core.

    x:    (3, TM, Cin) value (any float dtype; cast to bf16 for the MXU matmul)
    wcat: (Cin, 2*Cout) bf16  -- [W | W_dir] concatenated along the lane axis
    bns/bnb: (1, Cout) f32    -- eval-mode BN (on vector norms) folded scale / bias
    Returns (y (3,TM,Cout) f32, n_ld, n) with the placeholder G-fold statistics.
    """
    _, tm, cin = x.shape
    cout = bns.shape[-1]

    # Single fused MXU matmul: (3*TM, Cin) x (Cin, 2*Cout), bf16 in / f32 accumulate.
    pd = jnp.dot(x.astype(jnp.bfloat16).reshape(3 * tm, cin), wcat_bf16,
                 preferred_element_type=jnp.float32)
    pd = pd.reshape(3, tm, 2 * cout)

    p_lin = pd[:, :, :cout]                        # map_to_feat output
    d = pd[:, :, cout:]                            # map_to_dir output

    # VNBatchNorm (eval mode) applied to the per-vector norms (f32 epilogue, exact division).
    ssq = jnp.sum(p_lin * p_lin, axis=0, keepdims=True)
    norm = jnp.sqrt(ssq) + EPS
    norm_bn = norm * bns.reshape(1, 1, cout) + bnb.reshape(1, 1, cout)
    p = p_lin * (norm_bn / norm)

    # VN LeakyReLU with negative_slope = 0.
    dotpd = jnp.sum(p * d, axis=0, keepdims=True)
    dsq = jnp.sum(d * d, axis=0, keepdims=True)
    corr = dotpd / (dsq + EPS)
    y = jnp.where(dotpd >= 0.0, p, p - corr * d)

    n_ld = _gram_stat(g_ref, p_lin)                # statistic of the linear output
    n = _gram_stat(g_ref, y)                       # statistic of the nonlinear output
    return y, n_ld, n


# ----------------------------- Pallas kernels ------------------------------------------

def _fused_conv_pool_kernel(x_ref, w1_ref, s1_ref, b1_ref, w2_ref, s2_ref, b2_ref,
                            w3_ref, s3_ref, b3_ref, g_ref, pool_ref, stat_ref):
    """conv1 + conv2 + conv3 + partial mean-pool, fully fused per row tile.

    Zero-padded rows / channels stay exactly zero through every layer, so they contribute
    nothing to the pooled sums or the statistics.
    """
    h1, ld1, nl1 = _vn_lrelu_block(x_ref[...], w1_ref[...], s1_ref[...], b1_ref[...], g_ref)
    h2, ld2, nl2 = _vn_lrelu_block(h1, w2_ref[...], s2_ref[...], b2_ref[...], g_ref)
    h3, ld3, nl3 = _vn_lrelu_block(h2, w3_ref[...], s3_ref[...], b3_ref[...], g_ref)

    pool_ref[...] = jnp.sum(h3, axis=1)[None, :, :]                      # (1, 3, Cout3_p)
    stat_ref[...] = _stat_tile(ld1 + ld2 + ld3, nl1 + nl2 + nl3)[None, :, :]


def _fc_fused_kernel(x_ref, w1_ref, s1_ref, b1_ref, w2_ref, s2_ref, b2_ref,
                     w3_ref, g_ref, y_ref, stat_ref):
    """fc1 (lrelu dual) + fc2 (lrelu dual) + fc3 (linear dual) in one kernel (tiny M)."""
    h1, ld1, nl1 = _vn_lrelu_block(x_ref[...], w1_ref[...], s1_ref[...], b1_ref[...], g_ref)
    h2, ld2, nl2 = _vn_lrelu_block(h1, w2_ref[...], s2_ref[...], b2_ref[...], g_ref)

    _, bm, ck = h2.shape
    w3 = w3_ref[...]
    p3 = jnp.dot(h2.astype(jnp.bfloat16).reshape(3 * bm, ck), w3,
                 preferred_element_type=jnp.float32).reshape(3, bm, w3.shape[-1])
    # TODO(synk): VNLinear_Dual statistic placeholder — same value added to both accumulators.
    n3 = _gram_stat(g_ref, p3)

    y_ref[...] = p3
    stat_ref[...] = _stat_tile(ld1 + ld2 + n3, nl1 + nl2 + n3)


# ----------------------------- pallas_call wrappers ------------------------------------

def _smem_spec():
    return pl.BlockSpec(memory_space=pltpu.MemorySpace.SMEM)


def _rep_spec(arr):
    """Grid-invariant whole-array BlockSpec (weights / BN vectors)."""
    zeros = (0,) * arr.ndim
    return pl.BlockSpec(arr.shape, lambda i, _z=zeros: _z)


def _default_tile_r():
    # 512 rows is VMEM-safe on v7x (64 MiB / TC); bump to 1024 where VMEM >= ~100 MiB (v5e/v6e).
    try:
        info = pltpu.get_tpu_info()
        if int(getattr(info, "vmem_capacity_bytes", 0) or 0) >= 100 * 1024 * 1024:
            return 1024
    except Exception:
        pass
    return 512


def _conv_vmem_limit(tile_r, d_in):
    """Rough per-tile f32 working-set estimate (pd1/pd2/pd3 + h1/h2/h3 + input) with headroom."""
    rows = 3 * tile_r
    chans = (2 * 128) + (2 * 128) + (2 * 384) + 128 + 128 + 384 + d_in
    est = int(rows * chans * 4 * 2.0) + 8 * 1024 * 1024
    return max(24 * 1024 * 1024, min(est, 100 * 1024 * 1024))


def fused_conv_pool(h, w1, s1, b1, w2, s2, b2, w3, s3, b3, g, tile_r):
    """h: (3, B*N_pad, d) f32 -> per-tile pooled sums (n_tiles, 3, C3_p) + per-tile stats."""
    _, rows, d_in = h.shape
    n_tiles = rows // tile_r
    c3p = s3.shape[-1]

    pool, stats = pl.pallas_call(
        _fused_conv_pool_kernel,
        grid=(n_tiles,),
        in_specs=[
            pl.BlockSpec((3, tile_r, d_in), lambda i: (0, i, 0)),
            _rep_spec(w1), _rep_spec(s1), _rep_spec(b1),
            _rep_spec(w2), _rep_spec(s2), _rep_spec(b2),
            _rep_spec(w3), _rep_spec(s3), _rep_spec(b3),
            _smem_spec(),
        ],
        out_specs=(
            pl.BlockSpec((1, 3, c3p), lambda i: (i, 0, 0)),
            pl.BlockSpec((1, 8, 128), lambda i: (i, 0, 0)),
        ),
        out_shape=(
            jax.ShapeDtypeStruct((n_tiles, 3, c3p), jnp.float32),
            jax.ShapeDtypeStruct((n_tiles, 8, 128), jnp.float32),
        ),
        compiler_params=pltpu.CompilerParams(
            dimension_semantics=("parallel",),
            vmem_limit_bytes=_conv_vmem_limit(tile_r, d_in)),
    )(h, w1, s1, b1, w2, s2, b2, w3, s3, b3, g)
    return pool, stats


def vn_fc_fused(hp, f1, fs1, fb1, f2, fs2, fb2, w3f, g):
    """fc1 + fc2 + fc3 in one kernel. hp: (3, B_p, C3_p) -> y (3, B_p, d), stats (8, 128)."""
    _, bp, _ = hp.shape
    dp = w3f.shape[-1]
    y, st = pl.pallas_call(
        _fc_fused_kernel,
        grid=(1,),
        in_specs=[
            _rep_spec(hp),
            _rep_spec(f1), _rep_spec(fs1), _rep_spec(fb1),
            _rep_spec(f2), _rep_spec(fs2), _rep_spec(fb2),
            _rep_spec(w3f),
            _smem_spec(),
        ],
        out_specs=(
            pl.BlockSpec((3, bp, dp), lambda i: (0, 0, 0)),
            pl.BlockSpec((8, 128), lambda i: (0, 0)),
        ),
        out_shape=(
            jax.ShapeDtypeStruct((3, bp, dp), jnp.float32),
            jax.ShapeDtypeStruct((8, 128), jnp.float32),
        ),
        compiler_params=pltpu.CompilerParams(
            dimension_semantics=("arbitrary",),
            vmem_limit_bytes=32 * 1024 * 1024),
    )(hp, f1, fs1, fb1, f2, fs2, fb2, w3f, g)
    return y, st


# ----------------------------- parameters & forward ------------------------------------

def init_params(key, d):
    """Deterministic synthetic parameters (shapes from STNkd_Dual.__init__).

    Linear weights stored as (Cin, Cout) (transposed vs torch.nn.Linear.weight).
    BatchNorm running stats folded into (scale, bias) applied to the vector norms.
    """
    layer_dims = [
        ('conv1', d, 64 // 3),
        ('conv2', 64 // 3, 128 // 3),
        ('conv3', 128 // 3, 1024 // 3),
        ('fc1', 1024 // 3, 512 // 3),
        ('fc2', 512 // 3, 256 // 3),
    ]
    params = {}
    for name, cin, cout in layer_dims:
        key, k1, k2, k3, k4, k5, k6 = jax.random.split(key, 7)
        bound = 1.0 / (cin ** 0.5)
        W = jax.random.uniform(k1, (cin, cout), jnp.float32, -bound, bound)
        Dw = jax.random.uniform(k2, (cin, cout), jnp.float32, -bound, bound)
        gamma = jax.random.uniform(k3, (cout,), jnp.float32, 0.5, 1.5)
        beta = 0.1 * jax.random.normal(k4, (cout,), jnp.float32)
        r_mean = 0.1 * jax.random.normal(k5, (cout,), jnp.float32)
        r_var = jax.random.uniform(k6, (cout,), jnp.float32, 0.5, 1.5)
        s = gamma / jnp.sqrt(r_var + 1e-5)
        b = beta - r_mean * s
        params[name] = dict(W=W, D=Dw, bn_s=s.reshape(1, cout), bn_b=b.reshape(1, cout))
    key, k1 = jax.random.split(key)
    cin, cout = 256 // 3, d
    bound = 1.0 / (cin ** 0.5)
    params['fc3'] = dict(W=jax.random.uniform(k1, (cin, cout), jnp.float32, -bound, bound))
    return params


def _pad_lrelu_params(p, kdim, cout_p):
    """Zero-pad [W | W_dir] (concatenated along Cout) to lane-aligned shapes; weights -> bf16."""
    cin, cout = p['W'].shape
    wcat = jnp.zeros((kdim, 2 * cout_p), jnp.float32)
    wcat = wcat.at[:cin, :cout].set(p['W'])
    wcat = wcat.at[:cin, cout_p:cout_p + cout].set(p['D'])
    s = jnp.zeros((1, cout_p), jnp.float32).at[:, :cout].set(p['bn_s'])
    b = jnp.zeros((1, cout_p), jnp.float32).at[:, :cout].set(p['bn_b'])
    return wcat.astype(jnp.bfloat16), s, b


def stnkd_dual_forward(params, x, equiv, proj, pooling='mean'):
    """x: (B, d, 3, N) in the PyTorch layout. Returns (x_out: (B, d, 3), n1_ld, n1)."""
    if pooling != 'mean':
        # TODO(synk): VNMaxPool (args.pooling == 'max') not implemented.
        raise NotImplementedError("only args.pooling == 'mean' is implemented")
    B, d, _, N = x.shape

    # Fold the frame-deviation statistic: ||(I-P) E t||^2 = sum(G ⊙ Gram_vec(t)),
    # with A = (I - P) E and G = A^T A (3x3, passed via SMEM).
    a_mat = (jnp.eye(3, dtype=jnp.float32) - proj.astype(jnp.float32)) @ equiv.astype(jnp.float32)
    g = (a_mat.T @ a_mat).astype(jnp.float32)

    tile_r = min(_default_tile_r(), _round_up(N, 8))
    n_pad = _round_up(N, tile_r)

    # [B, d, 3, N] -> (3, B, N_pad, d) -> (3, B*N_pad, d).  No lane-pad of d here:
    # the conv1 BlockSpec uses the full last dim and Mosaic pads K internally.
    h = jnp.transpose(x, (2, 0, 3, 1)).astype(jnp.float32)
    h = jnp.pad(h, ((0, 0), (0, 0), (0, n_pad - N), (0, 0)))
    h = h.reshape(3, B * n_pad, d)

    c1p, c2p, c3p = _pad128(64 // 3), _pad128(128 // 3), _pad128(1024 // 3)
    c4p, c5p = _pad128(512 // 3), _pad128(256 // 3)

    w1, s1, b1 = _pad_lrelu_params(params['conv1'], d, c1p)
    w2, s2, b2 = _pad_lrelu_params(params['conv2'], c1p, c2p)
    w3, s3, b3 = _pad_lrelu_params(params['conv3'], c2p, c3p)
    f1, fs1, fb1 = _pad_lrelu_params(params['fc1'], c3p, c4p)
    f2, fs2, fb2 = _pad_lrelu_params(params['fc2'], c4p, c5p)
    w3f = jnp.zeros((c5p, d), jnp.float32).at[:256 // 3, :d].set(params['fc3']['W'])
    w3f = w3f.astype(jnp.bfloat16)

    # Fused conv1/conv2/conv3 + partial mean-pool (one parallel row-tile grid).
    pool_parts, stats = fused_conv_pool(h, w1, s1, b1, w2, s2, b2, w3, s3, b3, g, tile_r)
    nt_per_batch = n_pad // tile_r
    pooled = pool_parts.reshape(B, nt_per_batch, 3, c3p).sum(axis=1) * (1.0 / float(N))
    s_sum = jnp.sum(stats, axis=(0, 1))                      # (128,)
    n1_ld = s_sum[0]
    n1 = s_sum[1]

    # fc1 / fc2 / fc3 fused (pad batch to 8 rows so the (3,B,C)->(3B,C) merge is sublane-clean).
    bp = _round_up(B, 8)
    hp = jnp.transpose(pooled, (1, 0, 2))                    # (3, B, C3_p)
    hp = jnp.pad(hp, ((0, 0), (0, bp - B), (0, 0)))
    y, fst = vn_fc_fused(hp, f1, fs1, fb1, f2, fs2, fb2, w3f, g)
    n1_ld = n1_ld + fst[0, 0]
    n1 = n1 + fst[0, 1]

    x_out = jnp.transpose(y[:, :B, :], (1, 2, 0))            # (B, d, 3) — matches PyTorch output
    return x_out, n1_ld, n1


# ----------------------------- main ------------------------------------------------------

if __name__ == "__main__":
    key = jax.random.PRNGKey(0)
    B, d, N = 2, 16, 16                                      # small example shapes
    k_x, k_e, k_p, k_w = jax.random.split(key, 4)

    x = jax.random.normal(k_x, (B, d, 3, N), jnp.float32)    # PyTorch layout [B, C, 3, N]
    equiv = jax.random.normal(k_e, (3, 3), jnp.float32)
    v = jax.random.normal(k_p, (3,), jnp.float32)
    v = v / jnp.sqrt(jnp.sum(v * v))
    proj = jnp.eye(3, dtype=jnp.float32) - jnp.outer(v, v)   # simple 3x3 projector

    params = init_params(k_w, d)

    fwd = jax.jit(stnkd_dual_forward)
    out, n1_ld, n1 = fwd(params, x, equiv, proj)
    jax.block_until_ready((out, n1_ld, n1))

    assert out.shape == (B, d, 3), out.shape
    assert out.dtype == jnp.float32
    assert jnp.isfinite(out).all() and jnp.isfinite(n1_ld) and jnp.isfinite(n1)
    print("KERNEL_OK")
</pallas_src>

<mosaic_0001>
module attributes {stable_mosaic.version = 11 : i64} {
  func.func @_fused_conv_pool_kernel(%arg0: i32, %arg1: memref<3x16x16xf32, #tpu.memory_space<vmem>>, %arg2: memref<16x256xbf16, #tpu.memory_space<vmem>>, %arg3: memref<1x128xf32, #tpu.memory_space<vmem>>, %arg4: memref<1x128xf32, #tpu.memory_space<vmem>>, %arg5: memref<128x256xbf16, #tpu.memory_space<vmem>>, %arg6: memref<1x128xf32, #tpu.memory_space<vmem>>, %arg7: memref<1x128xf32, #tpu.memory_space<vmem>>, %arg8: memref<128x768xbf16, #tpu.memory_space<vmem>>, %arg9: memref<1x384xf32, #tpu.memory_space<vmem>>, %arg10: memref<1x384xf32, #tpu.memory_space<vmem>>, %arg11: memref<3x3xf32, #tpu.memory_space<smem>>, %arg12: memref<1x3x384xf32, #tpu.memory_space<vmem>>, %arg13: memref<1x8x128xf32, #tpu.memory_space<vmem>>) attributes {dimension_semantics = [#tpu.dimension_semantics<parallel>], iteration_bounds = array<i64: 2>, scalar_prefetch = 0 : i64, scratch_operands = 0 : i64, tpu.core_type = #tpu.core_type<tc>, window_params = [{transform_indices = @transform_0, window_bounds = array<i64: 3, 16, 16>}, {pipeline_mode = #tpu.pipeline_mode<synchronous>, transform_indices = @transform_1, window_bounds = array<i64: 16, 256>}, {pipeline_mode = #tpu.pipeline_mode<synchronous>, transform_indices = @transform_2, window_bounds = array<i64: 1, 128>}, {pipeline_mode = #tpu.pipeline_mode<synchronous>, transform_indices = @transform_3, window_bounds = array<i64: 1, 128>}, {pipeline_mode = #tpu.pipeline_mode<synchronous>, transform_indices = @transform_4, window_bounds = array<i64: 128, 256>}, {pipeline_mode = #tpu.pipeline_mode<synchronous>, transform_indices = @transform_5, window_bounds = array<i64: 1, 128>}, {pipeline_mode = #tpu.pipeline_mode<synchronous>, transform_indices = @transform_6, window_bounds = array<i64: 1, 128>}, {pipeline_mode = #tpu.pipeline_mode<synchronous>, transform_indices = @transform_7, window_bounds = array<i64: 128, 768>}, {pipeline_mode = #tpu.pipeline_mode<synchronous>, transform_indices = @transform_8, window_bounds = array<i64: 1, 384>}, {pipeline_mode = #tpu.pipeline_mode<synchronous>, transform_indices = @transform_9, window_bounds = array<i64: 1, 384>}, {transform_indices = @transform_10, window_bounds = array<i64: 3, 3>}, {transform_indices = @transform_11, window_bounds = array<i64: 1, 3, 384>}, {transform_indices = @transform_12, window_bounds = array<i64: 1, 8, 128>}]} {
    %c0 = arith.constant 0 : index
    %c0_0 = arith.constant 0 : index
    %c0_1 = arith.constant 0 : index
    %0 = vector.load %arg1[%c0, %c0_0, %c0_1] : memref<3x16x16xf32, #tpu.memory_space<vmem>>, vector<3x16x16xf32>
    %c0_2 = arith.constant 0 : index
    %c0_3 = arith.constant 0 : index
    %1 = vector.load %arg2[%c0_2, %c0_3] : memref<16x256xbf16, #tpu.memory_space<vmem>>, vector<16x256xbf16>
    %c0_4 = arith.constant 0 : index
    %c0_5 = arith.constant 0 : index
    %2 = vector.load %arg3[%c0_4, %c0_5] : memref<1x128xf32, #tpu.memory_space<vmem>>, vector<1x128xf32>
    %c0_6 = arith.constant 0 : index
    %c0_7 = arith.constant 0 : index
    %3 = vector.load %arg4[%c0_6, %c0_7] : memref<1x128xf32, #tpu.memory_space<vmem>>, vector<1x128xf32>
    %4 = arith.truncf %0 : vector<3x16x16xf32> to vector<3x16x16xbf16>
    %5 = vector.shape_cast %4 : vector<3x16x16xbf16> to vector<48x16xbf16>
    %cst = arith.constant dense<0.000000e+00> : vector<48x256xf32>
    %6 = tpu.matmul %5, %1, %cst {dimension_numbers = #tpu.dot_dimension_numbers<[1], [0], [0], [1], [0, 0, 1, 1], [], []>} : vector<48x16xbf16>, vector<16x256xbf16>, vector<48x256xf32> -> vector<48x256xf32>
    %7 = vector.shape_cast %6 : vector<48x256xf32> to vector<3x16x256xf32>
    %8 = vector.extract_strided_slice %7 {offsets = [0, 0, 0], sizes = [3, 16, 128], strides = [1, 1, 1]} : vector<3x16x256xf32> to vector<3x16x128xf32>
    %9 = vector.extract_strided_slice %7 {offsets = [0, 0, 128], sizes = [3, 16, 128], strides = [1, 1, 1]} : vector<3x16x256xf32> to vector<3x16x128xf32>
    %10 = arith.mulf %8, %8 : vector<3x16x128xf32>
    %cst_8 = arith.constant dense<0.000000e+00> : vector<16x128xf32>
    %11 = vector.multi_reduction <add>, %10, %cst_8 [0] : vector<3x16x128xf32> to vector<16x128xf32>
    %12 = vector.shape_cast %11 : vector<16x128xf32> to vector<1x16x128xf32>
    %13 = math.sqrt %12 : vector<1x16x128xf32>
    %cst_9 = arith.constant 9.99999997E-7 : f32
    %14 = vector.broadcast %cst_9 : f32 to vector<1x16x128xf32>
    %15 = arith.addf %13, %14 : vector<1x16x128xf32>
    %16 = vector.shape_cast %2 : vector<1x128xf32> to vector<1x1x128xf32>
    %17 = vector.broadcast %16 : vector<1x1x128xf32> to vector<1x16x128xf32>
    %18 = arith.mulf %15, %17 : vector<1x16x128xf32>
    %19 = vector.shape_cast %3 : vector<1x128xf32> to vector<1x1x128xf32>
    %20 = vector.broadcast %19 : vector<1x1x128xf32> to vector<1x16x128xf32>
    %21 = arith.addf %18, %20 : vector<1x16x128xf32>
    %22 = arith.divf %21, %15 : vector<1x16x128xf32>
    %23 = vector.broadcast %22 : vector<1x16x128xf32> to vector<3x16x128xf32>
    %24 = arith.mulf %8, %23 : vector<3x16x128xf32>
    %25 = arith.mulf %24, %9 : vector<3x16x128xf32>
    %cst_10 = arith.constant dense<0.000000e+00> : vector<16x128xf32>
    %26 = vector.multi_reduction <add>, %25, %cst_10 [0] : vector<3x16x128xf32> to vector<16x128xf32>
    %27 = vector.shape_cast %26 : vector<16x128xf32> to vector<1x16x128xf32>
    %28 = arith.mulf %9, %9 : vector<3x16x128xf32>
    %cst_11 = arith.constant dense<0.000000e+00> : vector<16x128xf32>
    %29 = vector.multi_reduction <add>, %28, %cst_11 [0] : vector<3x16x128xf32> to vector<16x128xf32>
    %30 = vector.shape_cast %29 : vector<16x128xf32> to vector<1x16x128xf32>
    %cst_12 = arith.constant 9.99999997E-7 : f32
    %31 = vector.broadcast %cst_12 : f32 to vector<1x16x128xf32>
    %32 = arith.addf %30, %31 : vector<1x16x128xf32>
    %33 = arith.divf %27, %32 : vector<1x16x128xf32>
    %cst_13 = arith.constant 0.000000e+00 : f32
    %34 = vector.broadcast %cst_13 : f32 to vector<1x16x128xf32>
    %35 = arith.cmpf oge, %27, %34 : vector<1x16x128xf32>
    %36 = vector.broadcast %33 : vector<1x16x128xf32> to vector<3x16x128xf32>
    %37 = arith.mulf %36, %9 : vector<3x16x128xf32>
    %38 = arith.subf %24, %37 : vector<3x16x128xf32>
    %39 = vector.shape_cast %35 : vector<1x16x128xi1> to vector<1x16x128xi1>
    %40 = vector.broadcast %39 : vector<1x16x128xi1> to vector<3x16x128xi1>
    %41 = arith.select %40, %24, %38 : vector<3x16x128xi1>, vector<3x16x128xf32>
    %42 = vector.extract_strided_slice %8 {offsets = [0, 0, 0], sizes = [1, 16, 128], strides = [1, 1, 1]} : vector<3x16x128xf32> to vector<1x16x128xf32>
    %43 = vector.shape_cast %42 : vector<1x16x128xf32> to vector<16x128xf32>
    %44 = vector.extract_strided_slice %8 {offsets = [0, 0, 0], sizes = [1, 16, 128], strides = [1, 1, 1]} : vector<3x16x128xf32> to vector<1x16x128xf32>
    %45 = vector.shape_cast %44 : vector<1x16x128xf32> to vector<16x128xf32>
    %46 = arith.mulf %43, %45 : vector<16x128xf32>
    %47 = vector.shape_cast %46 : vector<16x128xf32> to vector<1x16x128xf32>
    %cst_14 = arith.constant dense<0.000000e+00> : vector<1xf32>
    %48 = vector.multi_reduction <add>, %47, %cst_14 [1, 2] : vector<1x16x128xf32> to vector<1xf32>
    %49 = vector.shape_cast %48 : vector<1xf32> to vector<1x1x1xf32>
    %50 = vector.extract %49[0, 0, 0] : f32 from vector<1x1x1xf32>
    %51 = vector.extract_strided_slice %8 {offsets = [1, 0, 0], sizes = [1, 16, 128], strides = [1, 1, 1]} : vector<3x16x128xf32> to vector<1x16x128xf32>
    %52 = vector.shape_cast %51 : vector<1x16x128xf32> to vector<16x128xf32>
    %53 = vector.extract_strided_slice %8 {offsets = [1, 0, 0], sizes = [1, 16, 128], strides = [1, 1, 1]} : vector<3x16x128xf32> to vector<1x16x128xf32>
    %54 = vector.shape_cast %53 : vector<1x16x128xf32> to vector<16x128xf32>
    %55 = arith.mulf %52, %54 : vector<16x128xf32>
    %56 = vector.shape_cast %55 : vector<16x128xf32> to vector<1x16x128xf32>
    %cst_15 = arith.constant dense<0.000000e+00> : vector<1xf32>
    %57 = vector.multi_reduction <add>, %56, %cst_15 [1, 2] : vector<1x16x128xf32> to vector<1xf32>
    %58 = vector.shape_cast %57 : vector<1xf32> to vector<1x1x1xf32>
    %59 = vector.extract %58[0, 0, 0] : f32 from vector<1x1x1xf32>
    %60 = vector.extract_strided_slice %8 {offsets = [2, 0, 0], sizes = [1, 16, 128], strides = [1, 1, 1]} : vector<3x16x128xf32> to vector<1x16x128xf32>
    %61 = vector.shape_cast %60 : vector<1x16x128xf32> to vector<16x128xf32>
    %62 = vector.extract_strided_slice %8 {offsets = [2, 0, 0], sizes = [1, 16, 128], strides = [1, 1, 1]} : vector<3x16x128xf32> to vector<1x16x128xf32>
    %63 = vector.shape_cast %62 : vector<1x16x128xf32> to vector<16x128xf32>
    %64 = arith.mulf %61, %63 : vector<16x128xf32>
    %65 = vector.shape_cast %64 : vector<16x128xf32> to vector<1x16x128xf32>
    %cst_16 = arith.constant dense<0.000000e+00> : vector<1xf32>
    %66 = vector.multi_reduction <add>, %65, %cst_16 [1, 2] : vector<1x16x128xf32> to vector<1xf32>
    %67 = vector.shape_cast %66 : vector<1xf32> to vector<1x1x1xf32>
    %68 = vector.extract %67[0, 0, 0] : f32 from vector<1x1x1xf32>
    %69 = vector.extract_strided_slice %8 {offsets = [0, 0, 0], sizes = [1, 16, 128], strides = [1, 1, 1]} : vector<3x16x128xf32> to vector<1x16x128xf32>
    %70 = vector.shape_cast %69 : vector<1x16x128xf32> to vector<16x128xf32>
    %71 = vector.extract_strided_slice %8 {offsets = [1, 0, 0], sizes = [1, 16, 128], strides = [1, 1, 1]} : vector<3x16x128xf32> to vector<1x16x128xf32>
    %72 = vector.shape_cast %71 : vector<1x16x128xf32> to vector<16x128xf32>
    %73 = arith.mulf %70, %72 : vector<16x128xf32>
    %74 = vector.shape_cast %73 : vector<16x128xf32> to vector<1x16x128xf32>
    %cst_17 = arith.constant dense<0.000000e+00> : vector<1xf32>
    %75 = vector.multi_reduction <add>, %74, %cst_17 [1, 2] : vector<1x16x128xf32> to vector<1xf32>
    %76 = vector.shape_cast %75 : vector<1xf32> to vector<1x1x1xf32>
    %77 = vector.extract %76[0, 0, 0] : f32 from vector<1x1x1xf32>
    %78 = vector.extract_strided_slice %8 {offsets = [0, 0, 0], sizes = [1, 16, 128], strides = [1, 1, 1]} : vector<3x16x128xf32> to vector<1x16x128xf32>
    %79 = vector.shape_cast %78 : vector<1x16x128xf32> to vector<16x128xf32>
    %80 = vector.extract_strided_slice %8 {offsets = [2, 0, 0], sizes = [1, 16, 128], strides = [1, 1, 1]} : vector<3x16x128xf32> to vector<1x16x128xf32>
    %81 = vector.shape_cast %80 : vector<1x16x128xf32> to vector<16x128xf32>
    %82 = arith.mulf %79, %81 : vector<16x128xf32>
    %83 = vector.shape_cast %82 : vector<16x128xf32> to vector<1x16x128xf32>
    %cst_18 = arith.constant dense<0.000000e+00> : vector<1xf32>
    %84 = vector.multi_reduction <add>, %83, %cst_18 [1, 2] : vector<1x16x128xf32> to vector<1xf32>
    %85 = vector.shape_cast %84 : vector<1xf32> to vector<1x1x1xf32>
    %86 = vector.extract %85[0, 0, 0] : f32 from vector<1x1x1xf32>
    %87 = vector.extract_strided_slice %8 {offsets = [1, 0, 0], sizes = [1, 16, 128], strides = [1, 1, 1]} : vector<3x16x128xf32> to vector<1x16x128xf32>
    %88 = vector.shape_cast %87 : vector<1x16x128xf32> to vector<16x128xf32>
    %89 = vector.extract_strided_slice %8 {offsets = [2, 0, 0], sizes = [1, 16, 128], strides = [1, 1, 1]} : vector<3x16x128xf32> to vector<1x16x128xf32>
    %90 = vector.shape_cast %89 : vector<1x16x128xf32> to vector<16x128xf32>
    %91 = arith.mulf %88, %90 : vector<16x128xf32>
    %92 = vector.shape_cast %91 : vector<16x128xf32> to vector<1x16x128xf32>
    %cst_19 = arith.constant dense<0.000000e+00> : vector<1xf32>
    %93 = vector.multi_reduction <add>, %92, %cst_19 [1, 2] : vector<1x16x128xf32> to vector<1xf32>
    %94 = vector.shape_cast %93 : vector<1xf32> to vector<1x1x1xf32>
    %95 = vector.extract %94[0, 0, 0] : f32 from vector<1x1x1xf32>
    %c0_20 = arith.constant 0 : index
    %c0_21 = arith.constant 0 : index
    %96 = memref.load %arg11[%c0_20, %c0_21] : memref<3x3xf32, #tpu.memory_space<smem>>
    %97 = arith.mulf %96, %50 : f32
    %c1 = arith.constant 1 : index
    %c1_22 = arith.constant 1 : index
    %98 = memref.load %arg11[%c1, %c1_22] : memref<3x3xf32, #tpu.memory_space<smem>>
    %99 = arith.mulf %98, %59 : f32
    %100 = arith.addf %97, %99 : f32
    %c2 = arith.constant 2 : index
    %c2_23 = arith.constant 2 : index
    %101 = memref.load %arg11[%c2, %c2_23] : memref<3x3xf32, #tpu.memory_space<smem>>
    %102 = arith.mulf %101, %68 : f32
    %103 = arith.addf %100, %102 : f32
    %c0_24 = arith.constant 0 : index
    %c1_25 = arith.constant 1 : index
    %104 = memref.load %arg11[%c0_24, %c1_25] : memref<3x3xf32, #tpu.memory_space<smem>>
    %105 = arith.mulf %104, %77 : f32
    %c0_26 = arith.constant 0 : index
    %c2_27 = arith.constant 2 : index
    %106 = memref.load %arg11[%c0_26, %c2_27] : memref<3x3xf32, #tpu.memory_space<smem>>
    %107 = arith.mulf %106, %86 : f32
    %108 = arith.addf %105, %107 : f32
    %c1_28 = arith.constant 1 : index
    %c2_29 = arith.constant 2 : index
    %109 = memref.load %arg11[%c1_28, %c2_29] : memref<3x3xf32, #tpu.memory_space<smem>>
    %110 = arith.mulf %109, %95 : f32
    %111 = arith.addf %108, %110 : f32
    %cst_30 = arith.constant 2.000000e+00 : f32
    %112 = arith.mulf %cst_30, %111 : f32
    %113 = arith.addf %103, %112 : f32
    %114 = vector.extract_strided_slice %41 {offsets = [0, 0, 0], sizes = [1, 16, 128], strides = [1, 1, 1]} : vector<3x16x128xf32> to vector<1x16x128xf32>
    %115 = vector.shape_cast %114 : vector<1x16x128xf32> to vector<16x128xf32>
    %116 = vector.extract_strided_slice %41 {offsets = [0, 0, 0], sizes = [1, 16, 128], strides = [1, 1, 1]} : vector<3x16x128xf32> to vector<1x16x128xf32>
    %117 = vector.shape_cast %116 : vector<1x16x128xf32> to vector<16x128xf32>
    %118 = arith.mulf %115, %117 : vector<16x128xf32>
    %119 = vector.shape_cast %118 : vector<16x128xf32> to vector<1x16x128xf32>
    %cst_31 = arith.constant dense<0.000000e+00> : vector<1xf32>
    %120 = vector.multi_reduction <add>, %119, %cst_31 [1, 2] : vector<1x16x128xf32> to vector<1xf32>
    %121 = vector.shape_cast %120 : vector<1xf32> to vector<1x1x1xf32>
    %122 = vector.extract %121[0, 0, 0] : f32 from vector<1x1x1xf32>
    %123 = vector.extract_strided_slice %41 {offsets = [1, 0, 0], sizes = [1, 16, 128], strides = [1, 1, 1]} : vector<3x16x128xf32> to vector<1x16x128xf32>
    %124 = vector.shape_cast %123 : vector<1x16x128xf32> to vector<16x128xf32>
    %125 = vector.extract_strided_slice %41 {offsets = [1, 0, 0], sizes = [1, 16, 128], strides = [1, 1, 1]} : vector<3x16x128xf32> to vector<1x16x128xf32>
    %126 = vector.shape_cast %125 : vector<1x16x128xf32> to vector<16x128xf32>
    %127 = arith.mulf %124, %126 : vector<16x128xf32>
    %128 = vector.shape_cast %127 : vector<16x128xf32> to vector<1x16x128xf32>
    %cst_32 = arith.constant dense<0.000000e+00> : vector<1xf32>
    %129 = vector.multi_reduction <add>, %128, %cst_32 [1, 2] : vector<1x16x128xf32> to vector<1xf32>
    %130 = vector.shape_cast %129 : vector<1xf32> to vector<1x1x1xf32>
    %131 = vector.extract %130[0, 0, 0] : f32 from vector<1x1x1xf32>
    %132 = vector.extract_strided_slice %41 {offsets = [2, 0, 0], sizes = [1, 16, 128], strides = [1, 1, 1]} : vector<3x16x128xf32> to vector<1x16x128xf32>
    %133 = vector.shape_cast %132 : vector<1x16x128xf32> to vector<16x128xf32>
    %134 = vector.extract_strided_slice %41 {offsets = [2, 0, 0], sizes = [1, 16, 128], strides = [1, 1, 1]} : vector<3x16x128xf32> to vector<1x16x128xf32>
    %135 = vector.shape_cast %134 : vector<1x16x128xf32> to vector<16x128xf32>
    %136 = arith.mulf %133, %135 : vector<16x128xf32>
    %137 = vector.shape_cast %136 : vector<16x128xf32> to vector<1x16x128xf32>
    %cst_33 = arith.constant dense<0.000000e+00> : vector<1xf32>
    %138 = vector.multi_reduction <add>, %137, %cst_33 [1, 2] : vector<1x16x128xf32> to vector<1xf32>
    %139 = vector.shape_cast %138 : vector<1xf32> to vector<1x1x1xf32>
    %140 = vector.extract %139[0, 0, 0] : f32 from vector<1x1x1xf32>
    %141 = vector.extract_strided_slice %41 {offsets = [0, 0, 0], sizes = [1, 16, 128], strides = [1, 1, 1]} : vector<3x16x128xf32> to vector<1x16x128xf32>
    %142 = vector.shape_cast %141 : vector<1x16x128xf32> to vector<16x128xf32>
    %143 = vector.extract_strided_slice %41 {offsets = [1, 0, 0], sizes = [1, 16, 128], strides = [1, 1, 1]} : vector<3x16x128xf32> to vector<1x16x128xf32>
    %144 = vector.shape_cast %143 : vector<1x16x128xf32> to vector<16x128xf32>
    %145 = arith.mulf %142, %144 : vector<16x128xf32>
    %146 = vector.shape_cast %145 : vector<16x128xf32> to vector<1x16x128xf32>
    %cst_34 = arith.constant dense<0.000000e+00> : vector<1xf32>
    %147 = vector.multi_reduction <add>, %146, %cst_34 [1, 2] : vector<1x16x128xf32> to vector<1xf32>
    %148 = vector.shape_cast %147 : vector<1xf32> to vector<1x1x1xf32>
    %149 = vector.extract %148[0, 0, 0] : f32 from vector<1x1x1xf32>
    %150 = vector.extract_strided_slice %41 {offsets = [0, 0, 0], sizes = [1, 16, 128], strides = [1, 1, 1]} : vector<3x16x128xf32> to vector<1x16x128xf32>
    %151 = vector.shape_cast %150 : vector<1x16x128xf32> to vector<16x128xf32>
    %152 = vector.extract_strided_slice %41 {offsets = [2, 0, 0], sizes = [1, 16, 128], strides = [1, 1, 1]} : vector<3x16x128xf32> to vector<1x16x128xf32>
    %153 = vector.shape_cast %152 : vector<1x16x128xf32> to vector<16x128xf32>
    %154 = arith.mulf %151, %153 : vector<16x128xf32>
    %155 = vector.shape_cast %154 : vector<16x128xf32> to vector<1x16x128xf32>
    %cst_35 = arith.constant dense<0.000000e+00> : vector<1xf32>
    %156 = vector.multi_reduction <add>, %155, %cst_35 [1, 2] : vector<1x16x128xf32> to vector<1xf32>
    %157 = vector.shape_cast %156 : vector<1xf32> to vector<1x1x1xf32>
    %158 = vector.extract %157[0, 0, 0] : f32 from vector<1x1x1xf32>
    %159 = vector.extract_strided_slice %41 {offsets = [1, 0, 0], sizes = [1, 16, 128], strides = [1, 1, 1]} : vector<3x16x128xf32> to vector<1x16x128xf32>
    %160 = vector.shape_cast %159 : vector<1x16x128xf32> to vector<16x128xf32>
    %161 = vector.extract_strided_slice %41 {offsets = [2, 0, 0], sizes = [1, 16, 128], strides = [1, 1, 1]} : vector<3x16x128xf32> to vector<1x16x128xf32>
    %162 = vector.shape_cast %161 : vector<1x16x128xf32> to vector<16x128xf32>
    %163 = arith.mulf %160, %162 : vector<16x128xf32>
    %164 = vector.shape_cast %163 : vector<16x128xf32> to vector<1x16x128xf32>
    %cst_36 = arith.constant dense<0.000000e+00> : vector<1xf32>
    %165 = vector.multi_reduction <add>, %164, %cst_36 [1, 2] : vector<1x16x128xf32> to vector<1xf32>
    %166 = vector.shape_cast %165 : vector<1xf32> to vector<1x1x1xf32>
    %167 = vector.extract %166[0, 0, 0] : f32 from vector<1x1x1xf32>
    %c0_37 = arith.constant 0 : index
    %c0_38 = arith.constant 0 : index
    %168 = memref.load %arg11[%c0_37, %c0_38] : memref<3x3xf32, #tpu.memory_space<smem>>
    %169 = arith.mulf %168, %122 : f32
    %c1_39 = arith.constant 1 : index
    %c1_40 = arith.constant 1 : index
    %170 = memref.load %arg11[%c1_39, %c1_40] : memref<3x3xf32, #tpu.memory_space<smem>>
    %171 = arith.mulf %170, %131 : f32
    %172 = arith.addf %169, %171 : f32
    %c2_41 = arith.constant 2 : index
    %c2_42 = arith.constant 2 : index
    %173 = memref.load %arg11[%c2_41, %c2_42] : memref<3x3xf32, #tpu.memory_space<smem>>
    %174 = arith.mulf %173, %140 : f32
    %175 = arith.addf %172, %174 : f32
    %c0_43 = arith.constant 0 : index
    %c1_44 = arith.constant 1 : index
    %176 = memref.load %arg11[%c0_43, %c1_44] : memref<3x3xf32, #tpu.memory_space<smem>>
    %177 = arith.mulf %176, %149 : f32
    %c0_45 = arith.constant 0 : index
    %c2_46 = arith.constant 2 : index
    %178 = memref.load %arg11[%c0_45, %c2_46] : memref<3x3xf32, #tpu.memory_space<smem>>
    %179 = arith.mulf %178, %158 : f32
    %180 = arith.addf %177, %179 : f32
    %c1_47 = arith.constant 1 : index
    %c2_48 = arith.constant 2 : index
    %181 = memref.load %arg11[%c1_47, %c2_48] : memref<3x3xf32, #tpu.memory_space<smem>>
    %182 = arith.mulf %181, %167 : f32
    %183 = arith.addf %180, %182 : f32
    %cst_49 = arith.constant 2.000000e+00 : f32
    %184 = arith.mulf %cst_49, %183 : f32
    %185 = arith.addf %175, %184 : f32
    %c0_50 = arith.constant 0 : index
    %c0_51 = arith.constant 0 : index
    %186 = vector.load %arg5[%c0_50, %c0_51] : memref<128x256xbf16, #tpu.memory_space<vmem>>, vector<128x256xbf16>
    %c0_52 = arith.constant 0 : index
    %c0_53 = arith.constant 0 : index
    %187 = vector.load %arg6[%c0_52, %c0_53] : memref<1x128xf32, #tpu.memory_space<vmem>>, vector<1x128xf32>
    %c0_54 = arith.constant 0 : index
    %c0_55 = arith.constant 0 : index
    %188 = vector.load %arg7[%c0_54, %c0_55] : memref<1x128xf32, #tpu.memory_space<vmem>>, vector<1x128xf32>
    %189 = arith.truncf %41 : vector<3x16x128xf32> to vector<3x16x128xbf16>
    %190 = vector.shape_cast %189 : vector<3x16x128xbf16> to vector<48x128xbf16>
    %cst_56 = arith.constant dense<0.000000e+00> : vector<48x256xf32>
    %191 = tpu.matmul %190, %186, %cst_56 {dimension_numbers = #tpu.dot_dimension_numbers<[1], [0], [0], [1], [0, 0, 1, 1], [], []>} : vector<48x128xbf16>, vector<128x256xbf16>, vector<48x256xf32> -> vector<48x256xf32>
    %192 = vector.shape_cast %191 : vector<48x256xf32> to vector<3x16x256xf32>
    %193 = vector.extract_strided_slice %192 {offsets = [0, 0, 0], sizes = [3, 16, 128], strides = [1, 1, 1]} : vector<3x16x256xf32> to vector<3x16x128xf32>
    %194 = vector.extract_strided_slice %192 {offsets = [0, 0, 128], sizes = [3, 16, 128], strides = [1, 1, 1]} : vector<3x16x256xf32> to vector<3x16x128xf32>
    %195 = arith.mulf %193, %193 : vector<3x16x128xf32>
    %cst_57 = arith.constant dense<0.000000e+00> : vector<16x128xf32>
    %196 = vector.multi_reduction <add>, %195, %cst_57 [0] : vector<3x16x128xf32> to vector<16x128xf32>
    %197 = vector.shape_cast %196 : vector<16x128xf32> to vector<1x16x128xf32>
    %198 = math.sqrt %197 : vector<1x16x128xf32>
    %cst_58 = arith.constant 9.99999997E-7 : f32
    %199 = vector.broadcast %cst_58 : f32 to vector<1x16x128xf32>
    %200 = arith.addf %198, %199 : vector<1x16x128xf32>
    %201 = vector.shape_cast %187 : vector<1x128xf32> to vector<1x1x128xf32>
    %202 = vector.broadcast %201 : vector<1x1x128xf32> to vector<1x16x128xf32>
    %203 = arith.mulf %200, %202 : vector<1x16x128xf32>
    %204 = vector.shape_cast %188 : vector<1x128xf32> to vector<1x1x128xf32>
    %205 = vector.broadcast %204 : vector<1x1x128xf32> to vector<1x16x128xf32>
    %206 = arith.addf %203, %205 : vector<1x16x128xf32>
    %207 = arith.divf %206, %200 : vector<1x16x128xf32>
    %208 = vector.broadcast %207 : vector<1x16x128xf32> to vector<3x16x128xf32>
    %209 = arith.mulf %193, %208 : vector<3x16x128xf32>
    %210 = arith.mulf %209, %194 : vector<3x16x128xf32>
    %cst_59 = arith.constant dense<0.000000e+00> : vector<16x128xf32>
    %211 = vector.multi_reduction <add>, %210, %cst_59 [0] : vector<3x16x128xf32> to vector<16x128xf32>
    %212 = vector.shape_cast %211 : vector<16x128xf32> to vector<1x16x128xf32>
    %213 = arith.mulf %194, %194 : vector<3x16x128xf32>
    %cst_60 = arith.constant dense<0.000000e+00> : vector<16x128xf32>
    %214 = vector.multi_reduction <add>, %213, %cst_60 [0] : vector<3x16x128xf32> to vector<16x128xf32>
    %215 = vector.shape_cast %214 : vector<16x128xf32> to vector<1x16x128xf32>
    %cst_61 = arith.constant 9.99999997E-7 : f32
    %216 = vector.broadcast %cst_61 : f32 to vector<1x16x128xf32>
    %217 = arith.addf %215, %216 : vector<1x16x128xf32>
    %218 = arith.divf %212, %217 : vector<1x16x128xf32>
    %cst_62 = arith.constant 0.000000e+00 : f32
    %219 = vector.broadcast %cst_62 : f32 to vector<1x16x128xf32>
    %220 = arith.cmpf oge, %212, %219 : vector<1x16x128xf32>
    %221 = vector.broadcast %218 : vector<1x16x128xf32> to vector<3x16x128xf32>
    %222 = arith.mulf %221, %194 : vector<3x16x128xf32>
    %223 = arith.subf %209, %222 : vector<3x16x128xf32>
    %224 = vector.shape_cast %220 : vector<1x16x128xi1> to vector<1x16x128xi1>
    %225 = vector.broadcast %224 : vector<1x16x128xi1> to vector<3x16x128xi1>
    %226 = arith.select %225, %209, %223 : vector<3x16x128xi1>, vector<3x16x128xf32>
    %227 = vector.extract_strided_slice %193 {offsets = [0, 0, 0], sizes = [1, 16, 128], strides = [1, 1, 1]} : vector<3x16x128xf32> to vector<1x16x128xf32>
    %228 = vector.shape_cast %227 : vector<1x16x128xf32> to vector<16x128xf32>
    %229 = vector.extract_strided_slice %193 {offsets = [0, 0, 0], sizes = [1, 16, 128], strides = [1, 1, 1]} : vector<3x16x128xf32> to vector<1x16x128xf32>
    %230 = vector.shape_cast %229 : vector<1x16x128xf32> to vector<16x128xf32>
    %231 = arith.mulf %228, %230 : vector<16x128xf32>
    %232 = vector.shape_cast %231 : vector<16x128xf32> to vector<1x16x128xf32>
    %cst_63 = arith.constant dense<0.000000e+00> : vector<1xf32>
    %233 = vector.multi_reduction <add>, %232, %cst_63 [1, 2] : vector<1x16x128xf32> to vector<1xf32>
    %234 = vector.shape_cast %233 : vector<1xf32> to vector<1x1x1xf32>
    %235 = vector.extract %234[0, 0, 0] : f32 from vector<1x1x1xf32>
    %236 = vector.extract_strided_slice %193 {offsets = [1, 0, 0], sizes = [1, 16, 128], strides = [1, 1, 1]} : vector<3x16x128xf32> to vector<1x16x128xf32>
    %237 = vector.shape_cast %236 : vector<1x16x128xf32> to vector<16x128xf32>
    %238 = vector.extract_strided_slice %193 {offsets = [1, 0, 0], sizes = [1, 16, 128], strides = [1, 1, 1]} : vector<3x16x128xf32> to vector<1x16x128xf32>
    %239 = vector.shape_cast %238 : vector<1x16x128xf32> to vector<16x128xf32>
    %240 = arith.mulf %237, %239 : vector<16x128xf32>
    %241 = vector.shape_cast %240 : vector<16x128xf32> to vector<1x16x128xf32>
    %cst_64 = arith.constant dense<0.000000e+00> : vector<1xf32>
    %242 = vector.multi_reduction <add>, %241, %cst_64 [1, 2] : vector<1x16x128xf32> to vector<1xf32>
    %243 = vector.shape_cast %242 : vector<1xf32> to vector<1x1x1xf32>
    %244 = vector.extract %243[0, 0, 0] : f32 from vector<1x1x1xf32>
    %245 = vector.extract_strided_slice %193 {offsets = [2, 0, 0], sizes = [1, 16, 128], strides = [1, 1, 1]} : vector<3x16x128xf32> to vector<1x16x128xf32>
    %246 = vector.shape_cast %245 : vector<1x16x128xf32> to vector<16x128xf32>
    %247 = vector.extract_strided_slice %193 {offsets = [2, 0, 0], sizes = [1, 16, 128], strides = [1, 1, 1]} : vector<3x16x128xf32> to vector<1x16x128xf32>
    %248 = vector.shape_cast %247 : vector<1x16x128xf32> to vector<16x128xf32>
    %249 = arith.mulf %246, %248 : vector<16x128xf32>
    %250 = vector.shape_cast %249 : vector<16x128xf32> to vector<1x16x128xf32>
    %cst_65 = arith.constant dense<0.000000e+00> : vector<1xf32>
    %251 = vector.multi_reduction <add>, %250, %cst_65 [1, 2] : vector<1x16x128xf32> to vector<1xf32>
    %252 = vector.shape_cast %251 : vector<1xf32> to vector<1x1x1xf32>
    %253 = vector.extract %252[0, 0, 0] : f32 from vector<1x1x1xf32>
    %254 = vector.extract_strided_slice %193 {offsets = [0, 0, 0], sizes = [1, 16, 128], strides = [1, 1, 1]} : vector<3x16x128xf32> to vector<1x16x128xf32>
    %255 = vector.shape_cast %254 : vector<1x16x128xf32> to vector<16x128xf32>
    %256 = vector.extract_strided_slice %193 {offsets = [1, 0, 0], sizes = [1, 16, 128], strides = [1, 1, 1]} : vector<3x16x128xf32> to vector<1x16x128xf32>
    %257 = vector.shape_cast %256 : vector<1x16x128xf32> to vector<16x128xf32>
    %258 = arith.mulf %255, %257 : vector<16x128xf32>
    %259 = vector.shape_cast %258 : vector<16x128xf32> to vector<1x16x128xf32>
    %cst_66 = arith.constant dense<0.000000e+00> : vector<1xf32>
    %260 = vector.multi_reduction <add>, %259, %cst_66 [1, 2] : vector<1x16x128xf32> to vector<1xf32>
    %261 = vector.shape_cast %260 : vector<1xf32> to vector<1x1x1xf32>
    %262 = vector.extract %261[0, 0, 0] : f32 from vector<1x1x1xf32>
    %263 = vector.extract_strided_slice %193 {offsets = [0, 0, 0], sizes = [1, 16, 128], strides = [1, 1, 1]} : vector<3x16x128xf32> to vector<1x16x128xf32>
    %264 = vector.shape_cast %263 : vector<1x16x128xf32> to vector<16x128xf32>
    %265 = vector.extract_strided_slice %193 {offsets = [2, 0, 0], sizes = [1, 16, 128], strides = [1, 1, 1]} : vector<3x16x128xf32> to vector<1x16x128xf32>
    %266 = vector.shape_cast %265 : vector<1x16x128xf32> to vector<16x128xf32>
    %267 = arith.mulf %264, %266 : vector<16x128xf32>
    %268 = vector.shape_cast %267 : vector<16x128xf32> to vector<1x16x128xf32>
    %cst_67 = arith.constant dense<0.000000e+00> : vector<1xf32>
    %269 = vector.multi_reduction <add>, %268, %cst_67 [1, 2] : vector<1x16x128xf32> to vector<1xf32>
    %270 = vector.shape_cast %269 : vector<1xf32> to vector<1x1x1xf32>
    %271 = vector.extract %270[0, 0, 0] : f32 from vector<1x1x1xf32>
    %272 = vector.extract_strided_slice %193 {offsets = [1, 0, 0], sizes = [1, 16, 128], strides = [1, 1, 1]} : vector<3x16x128xf32> to vector<1x16x128xf32>
    %273 = vector.shape_cast %272 : vector<1x16x128xf32> to vector<16x128xf32>
    %274 = vector.extract_strided_slice %193 {offsets = [2, 0, 0], sizes = [1, 16, 128], strides = [1, 1, 1]} : vector<3x16x128xf32> to vector<1x16x128xf32>
    %275 = vector.shape_cast %274 : vector<1x16x128xf32> to vector<16x128xf32>
    %276 = arith.mulf %273, %275 : vector<16x128xf32>
    %277 = vector.shape_cast %276 : vector<16x128xf32> to vector<1x16x128xf32>
    %cst_68 = arith.constant dense<0.000000e+00> : vector<1xf32>
    %278 = vector.multi_reduction <add>, %277, %cst_68 [1, 2] : vector<1x16x128xf32> to vector<1xf32>
    %279 = vector.shape_cast %278 : vector<1xf32> to vector<1x1x1xf32>
    %280 = vector.extract %279[0, 0, 0] : f32 from vector<1x1x1xf32>
    %c0_69 = arith.constant 0 : index
    %c0_70 = arith.constant 0 : index
    %281 = memref.load %arg11[%c0_69, %c0_70] : memref<3x3xf32, #tpu.memory_space<smem>>
    %282 = arith.mulf %281, %235 : f32
    %c1_71 = arith.constant 1 : index
    %c1_72 = arith.constant 1 : index
    %283 = memref.load %arg11[%c1_71, %c1_72] : memref<3x3xf32, #tpu.memory_space<smem>>
    %284 = arith.mulf %283, %244 : f32
    %285 = arith.addf %282, %284 : f32
    %c2_73 = arith.constant 2 : index
    %c2_74 = arith.constant 2 : index
    %286 = memref.load %arg11[%c2_73, %c2_74] : memref<3x3xf32, #tpu.memory_space<smem>>
    %287 = arith.mulf %286, %253 : f32
    %288 = arith.addf %285, %287 : f32
    %c0_75 = arith.constant 0 : index
    %c1_76 = arith.constant 1 : index
    %289 = memref.load %arg11[%c0_75, %c1_76] : memref<3x3xf32, #tpu.memory_space<smem>>
    %290 = arith.mulf %289, %262 : f32
    %c0_77 = arith.constant 0 : index
    %c2_78 = arith.constant 2 : index
    %291 = memref.load %arg11[%c0_77, %c2_78] : memref<3x3xf32, #tpu.memory_space<smem>>
    %292 = arith.mulf %291, %271 : f32
    %293 = arith.addf %290, %292 : f32
    %c1_79 = arith.constant 1 : index
    %c2_80 = arith.constant 2 : index
    %294 = memref.load %arg11[%c1_79, %c2_80] : memref<3x3xf32, #tpu.memory_space<smem>>
    %295 = arith.mulf %294, %280 : f32
    %296 = arith.addf %293, %295 : f32
    %cst_81 = arith.constant 2.000000e+00 : f32
    %297 = arith.mulf %cst_81, %296 : f32
    %298 = arith.addf %288, %297 : f32
    %299 = vector.extract_strided_slice %226 {offsets = [0, 0, 0], sizes = [1, 16, 128], strides = [1, 1, 1]} : vector<3x16x128xf32> to vector<1x16x128xf32>
    %300 = vector.shape_cast %299 : vector<1x16x128xf32> to vector<16x128xf32>
    %301 = vector.extract_strided_slice %226 {offsets = [0, 0, 0], sizes = [1, 16, 128], strides = [1, 1, 1]} : vector<3x16x128xf32> to vector<1x16x128xf32>
    %302 = vector.shape_cast %301 : vector<1x16x128xf32> to vector<16x128xf32>
    %303 = arith.mulf %300, %302 : vector<16x128xf32>
    %304 = vector.shape_cast %303 : vector<16x128xf32> to vector<1x16x128xf32>
    %cst_82 = arith.constant dense<0.000000e+00> : vector<1xf32>
    %305 = vector.multi_reduction <add>, %304, %cst_82 [1, 2] : vector<1x16x128xf32> to vector<1xf32>
    %306 = vector.shape_cast %305 : vector<1xf32> to vector<1x1x1xf32>
    %307 = vector.extract %306[0, 0, 0] : f32 from vector<1x1x1xf32>
    %308 = vector.extract_strided_slice %226 {offsets = [1, 0, 0], sizes = [1, 16, 128], strides = [1, 1, 1]} : vector<3x16x128xf32> to vector<1x16x128xf32>
    %309 = vector.shape_cast %308 : vector<1x16x128xf32> to vector<16x128xf32>
    %310 = vector.extract_strided_slice %226 {offsets = [1, 0, 0], sizes = [1, 16, 128], strides = [1, 1, 1]} : vector<3x16x128xf32> to vector<1x16x128xf32>
    %311 = vector.shape_cast %310 : vector<1x16x128xf32> to vector<16x128xf32>
    %312 = arith.mulf %309, %311 : vector<16x128xf32>
    %313 = vector.shape_cast %312 : vector<16x128xf32> to vector<1x16x128xf32>
    %cst_83 = arith.constant dense<0.000000e+00> : vector<1xf32>
    %314 = vector.multi_reduction <add>, %313, %cst_83 [1, 2] : vector<1x16x128xf32> to vector<1xf32>
    %315 = vector.shape_cast %314 : vector<1xf32> to vector<1x1x1xf32>
    %316 = vector.extract %315[0, 0, 0] : f32 from vector<1x1x1xf32>
    %317 = vector.extract_strided_slice %226 {offsets = [2, 0, 0], sizes = [1, 16, 128], strides = [1, 1, 1]} : vector<3x16x128xf32> to vector<1x16x128xf32>
    %318 = vector.shape_cast %317 : vector<1x16x128xf32> to vector<16x128xf32>
    %319 = vector.extract_strided_slice %226 {offsets = [2, 0, 0], sizes = [1, 16, 128], strides = [1, 1, 1]} : vector<3x16x128xf32> to vector<1x16x128xf32>
    %320 = vector.shape_cast %319 : vector<1x16x128xf32> to vector<16x128xf32>
    %321 = arith.mulf %318, %320 : vector<16x128xf32>
    %322 = vector.shape_cast %321 : vector<16x128xf32> to vector<1x16x128xf32>
    %cst_84 = arith.constant dense<0.000000e+00> : vector<1xf32>
    %323 = vector.multi_reduction <add>, %322, %cst_84 [1, 2] : vector<1x16x128xf32> to vector<1xf32>
    %324 = vector.shape_cast %323 : vector<1xf32> to vector<1x1x1xf32>
    %325 = vector.extract %324[0, 0, 0] : f32 from vector<1x1x1xf32>
    %326 = vector.extract_strided_slice %226 {offsets = [0, 0, 0], sizes = [1, 16, 128], strides = [1, 1, 1]} : vector<3x16x128xf32> to vector<1x16x128xf32>
    %327 = vector.shape_cast %326 : vector<1x16x128xf32> to vector<16x128xf32>
    %328 = vector.extract_strided_slice %226 {offsets = [1, 0, 0], sizes = [1, 16, 128], strides = [1, 1, 1]} : vector<3x16x128xf32> to vector<1x16x128xf32>
    %329 = vector.shape_cast %328 : vector<1x16x128xf32> to vector<16x128xf32>
    %330 = arith.mulf %327, %329 : vector<16x128xf32>
    %331 = vector.shape_cast %330 : vector<16x128xf32> to vector<1x16x128xf32>
    %cst_85 = arith.constant dense<0.000000e+00> : vector<1xf32>
    %332 = vector.multi_reduction <add>, %331, %cst_85 [1, 2] : vector<1x16x128xf32> to vector<1xf32>
    %333 = vector.shape_cast %332 : vector<1xf32> to vector<1x1x1xf32>
    %334 = vector.extract %333[0, 0, 0] : f32 from vector<1x1x1xf32>
    %335 = vector.extract_strided_slice %226 {offsets = [0, 0, 0], sizes = [1, 16, 128], strides = [1, 1, 1]} : vector<3x16x128xf32> to vector<1x16x128xf32>
    %336 = vector.shape_cast %335 : vector<1x16x128xf32> to vector<16x128xf32>
    %337 = vector.extract_strided_slice %226 {offsets = [2, 0, 0], sizes = [1, 16, 128], strides = [1, 1, 1]} : vector<3x16x128xf32> to vector<1x16x128xf32>
    %338 = vector.shape_cast %337 : vector<1x16x128xf32> to vector<16x128xf32>
    %339 = arith.mulf %336, %338 : vector<16x128xf32>
    %340 = vector.shape_cast %339 : vector<16x128xf32> to vector<1x16x128xf32>
    %cst_86 = arith.constant dense<0.000000e+00> : vector<1xf32>
    %341 = vector.multi_reduction <add>, %340, %cst_86 [1, 2] : vector<1x16x128xf32> to vector<1xf32>
    %342 = vector.shape_cast %341 : vector<1xf32> to vector<1x1x1xf32>
    %343 = vector.extract %342[0, 0, 0] : f32 from vector<1x1x1xf32>
    %344 = vector.extract_strided_slice %226 {offsets = [1, 0, 0], sizes = [1, 16, 128], strides = [1, 1, 1]} : vector<3x16x128xf32> to vector<1x16x128xf32>
    %345 = vector.shape_cast %344 : vector<1x16x128xf32> to vector<16x128xf32>
    %346 = vector.extract_strided_slice %226 {offsets = [2, 0, 0], sizes = [1, 16, 128], strides = [1, 1, 1]} : vector<3x16x128xf32> to vector<1x16x128xf32>
    %347 = vector.shape_cast %346 : vector<1x16x128xf32> to vector<16x128xf32>
    %348 = arith.mulf %345, %347 : vector<16x128xf32>
    %349 = vector.shape_cast %348 : vector<16x128xf32> to vector<1x16x128xf32>
    %cst_87 = arith.constant dense<0.000000e+00> : vector<1xf32>
    %350 = vector.multi_reduction <add>, %349, %cst_87 [1, 2] : vector<1x16x128xf32> to vector<1xf32>
    %351 = vector.shape_cast %350 : vector<1xf32> to vector<1x1x1xf32>
    %352 = vector.extract %351[0, 0, 0] : f32 from vector<1x1x1xf32>
    %c0_88 = arith.constant 0 : index
    %c0_89 = arith.constant 0 : index
    %353 = memref.load %arg11[%c0_88, %c0_89] : memref<3x3xf32, #tpu.memory_space<smem>>
    %354 = arith.mulf %353, %307 : f32
    %c1_90 = arith.constant 1 : index
    %c1_91 = arith.constant 1 : index
    %355 = memref.load %arg11[%c1_90, %c1_91] : memref<3x3xf32, #tpu.memory_space<smem>>
    %356 = arith.mulf %355, %316 : f32
    %357 = arith.addf %354, %356 : f32
    %c2_92 = arith.constant 2 : index
    %c2_93 = arith.constant 2 : index
    %358 = memref.load %arg11[%c2_92, %c2_93] : memref<3x3xf32, #tpu.memory_space<smem>>
    %359 = arith.mulf %358, %325 : f32
    %360 = arith.addf %357, %359 : f32
    %c0_94 = arith.constant 0 : index
    %c1_95 = arith.constant 1 : index
    %361 = memref.load %arg11[%c0_94, %c1_95] : memref<3x3xf32, #tpu.memory_space<smem>>
    %362 = arith.mulf %361, %334 : f32
    %c0_96 = arith.constant 0 : index
    %c2_97 = arith.constant 2 : index
    %363 = memref.load %arg11[%c0_96, %c2_97] : memref<3x3xf32, #tpu.memory_space<smem>>
    %364 = arith.mulf %363, %343 : f32
    %365 = arith.addf %362, %364 : f32
    %c1_98 = arith.constant 1 : index
    %c2_99 = arith.constant 2 : index
    %366 = memref.load %arg11[%c1_98, %c2_99] : memref<3x3xf32, #tpu.memory_space<smem>>
    %367 = arith.mulf %366, %352 : f32
    %368 = arith.addf %365, %367 : f32
    %cst_100 = arith.constant 2.000000e+00 : f32
    %369 = arith.mulf %cst_100, %368 : f32
    %370 = arith.addf %360, %369 : f32
    %c0_101 = arith.constant 0 : index
    %c0_102 = arith.constant 0 : index
    %371 = vector.load %arg8[%c0_101, %c0_102] : memref<128x768xbf16, #tpu.memory_space<vmem>>, vector<128x768xbf16>
    %c0_103 = arith.constant 0 : index
    %c0_104 = arith.constant 0 : index
    %372 = vector.load %arg9[%c0_103, %c0_104] : memref<1x384xf32, #tpu.memory_space<vmem>>, vector<1x384xf32>
    %c0_105 = arith.constant 0 : index
    %c0_106 = arith.constant 0 : index
    %373 = vector.load %arg10[%c0_105, %c0_106] : memref<1x384xf32, #tpu.memory_space<vmem>>, vector<1x384xf32>
    %374 = arith.truncf %226 : vector<3x16x128xf32> to vector<3x16x128xbf16>
    %375 = vector.shape_cast %374 : vector<3x16x128xbf16> to vector<48x128xbf16>
    %cst_107 = arith.constant dense<0.000000e+00> : vector<48x768xf32>
    %376 = tpu.matmul %375, %371, %cst_107 {dimension_numbers = #tpu.dot_dimension_numbers<[1], [0], [0], [1], [0, 0, 1, 1], [], []>} : vector<48x128xbf16>, vector<128x768xbf16>, vector<48x768xf32> -> vector<48x768xf32>
    %377 = vector.shape_cast %376 : vector<48x768xf32> to vector<3x16x768xf32>
    %378 = vector.extract_strided_slice %377 {offsets = [0, 0, 0], sizes = [3, 16, 384], strides = [1, 1, 1]} : vector<3x16x768xf32> to vector<3x16x384xf32>
    %379 = vector.extract_strided_slice %377 {offsets = [0, 0, 384], sizes = [3, 16, 384], strides = [1, 1, 1]} : vector<3x16x768xf32> to vector<3x16x384xf32>
    %380 = arith.mulf %378, %378 : vector<3x16x384xf32>
    %cst_108 = arith.constant dense<0.000000e+00> : vector<16x384xf32>
    %381 = vector.multi_reduction <add>, %380, %cst_108 [0] : vector<3x16x384xf32> to vector<16x384xf32>
    %382 = vector.shape_cast %381 : vector<16x384xf32> to vector<1x16x384xf32>
    %383 = math.sqrt %382 : vector<1x16x384xf32>
    %cst_109 = arith.constant 9.99999997E-7 : f32
    %384 = vector.broadcast %cst_109 : f32 to vector<1x16x384xf32>
    %385 = arith.addf %383, %384 : vector<1x16x384xf32>
    %386 = vector.shape_cast %372 : vector<1x384xf32> to vector<1x1x384xf32>
    %387 = vector.broadcast %386 : vector<1x1x384xf32> to vector<1x16x384xf32>
    %388 = arith.mulf %385, %387 : vector<1x16x384xf32>
    %389 = vector.shape_cast %373 : vector<1x384xf32> to vector<1x1x384xf32>
    %390 = vector.broadcast %389 : vector<1x1x384xf32> to vector<1x16x384xf32>
    %391 = arith.addf %388, %390 : vector<1x16x384xf32>
    %392 = arith.divf %391, %385 : vector<1x16x384xf32>
    %393 = vector.broadcast %392 : vector<1x16x384xf32> to vector<3x16x384xf32>
    %394 = arith.mulf %378, %393 : vector<3x16x384xf32>
    %395 = arith.mulf %394, %379 : vector<3x16x384xf32>
    %cst_110 = arith.constant dense<0.000000e+00> : vector<16x384xf32>
    %396 = vector.multi_reduction <add>, %395, %cst_110 [0] : vector<3x16x384xf32> to vector<16x384xf32>
    %397 = vector.shape_cast %396 : vector<16x384xf32> to vector<1x16x384xf32>
    %398 = arith.mulf %379, %379 : vector<3x16x384xf32>
    %cst_111 = arith.constant dense<0.000000e+00> : vector<16x384xf32>
    %399 = vector.multi_reduction <add>, %398, %cst_111 [0] : vector<3x16x384xf32> to vector<16x384xf32>
    %400 = vector.shape_cast %399 : vector<16x384xf32> to vector<1x16x384xf32>
    %cst_112 = arith.constant 9.99999997E-7 : f32
    %401 = vector.broadcast %cst_112 : f32 to vector<1x16x384xf32>
    %402 = arith.addf %400, %401 : vector<1x16x384xf32>
    %403 = arith.divf %397, %402 : vector<1x16x384xf32>
    %cst_113 = arith.constant 0.000000e+00 : f32
    %404 = vector.broadcast %cst_113 : f32 to vector<1x16x384xf32>
    %405 = arith.cmpf oge, %397, %404 : vector<1x16x384xf32>
    %406 = vector.broadcast %403 : vector<1x16x384xf32> to vector<3x16x384xf32>
    %407 = arith.mulf %406, %379 : vector<3x16x384xf32>
    %408 = arith.subf %394, %407 : vector<3x16x384xf32>
    %409 = vector.shape_cast %405 : vector<1x16x384xi1> to vector<1x16x384xi1>
    %410 = vector.broadcast %409 : vector<1x16x384xi1> to vector<3x16x384xi1>
    %411 = arith.select %410, %394, %408 : vector<3x16x384xi1>, vector<3x16x384xf32>
    %412 = vector.extract_strided_slice %378 {offsets = [0, 0, 0], sizes = [1, 16, 384], strides = [1, 1, 1]} : vector<3x16x384xf32> to vector<1x16x384xf32>
    %413 = vector.shape_cast %412 : vector<1x16x384xf32> to vector<16x384xf32>
    %414 = vector.extract_strided_slice %378 {offsets = [0, 0, 0], sizes = [1, 16, 384], strides = [1, 1, 1]} : vector<3x16x384xf32> to vector<1x16x384xf32>
    %415 = vector.shape_cast %414 : vector<1x16x384xf32> to vector<16x384xf32>
    %416 = arith.mulf %413, %415 : vector<16x384xf32>
    %417 = vector.shape_cast %416 : vector<16x384xf32> to vector<1x16x384xf32>
    %cst_114 = arith.constant dense<0.000000e+00> : vector<1xf32>
    %418 = vector.multi_reduction <add>, %417, %cst_114 [1, 2] : vector<1x16x384xf32> to vector<1xf32>
    %419 = vector.shape_cast %418 : vector<1xf32> to vector<1x1x1xf32>
    %420 = vector.extract %419[0, 0, 0] : f32 from vector<1x1x1xf32>
    %421 = vector.extract_strided_slice %378 {offsets = [1, 0, 0], sizes = [1, 16, 384], strides = [1, 1, 1]} : vector<3x16x384xf32> to vector<1x16x384xf32>
    %422 = vector.shape_cast %421 : vector<1x16x384xf32> to vector<16x384xf32>
    %423 = vector.extract_strided_slice %378 {offsets = [1, 0, 0], sizes = [1, 16, 384], strides = [1, 1, 1]} : vector<3x16x384xf32> to vector<1x16x384xf32>
    %424 = vector.shape_cast %423 : vector<1x16x384xf32> to vector<16x384xf32>
    %425 = arith.mulf %422, %424 : vector<16x384xf32>
    %426 = vector.shape_cast %425 : vector<16x384xf32> to vector<1x16x384xf32>
    %cst_115 = arith.constant dense<0.000000e+00> : vector<1xf32>
    %427 = vector.multi_reduction <add>, %426, %cst_115 [1, 2] : vector<1x16x384xf32> to vector<1xf32>
    %428 = vector.shape_cast %427 : vector<1xf32> to vector<1x1x1xf32>
    %429 = vector.extract %428[0, 0, 0] : f32 from vector<1x1x1xf32>
    %430 = vector.extract_strided_slice %378 {offsets = [2, 0, 0], sizes = [1, 16, 384], strides = [1, 1, 1]} : vector<3x16x384xf32> to vector<1x16x384xf32>
    %431 = vector.shape_cast %430 : vector<1x16x384xf32> to vector<16x384xf32>
    %432 = vector.extract_strided_slice %378 {offsets = [2, 0, 0], sizes = [1, 16, 384], strides = [1, 1, 1]} : vector<3x16x384xf32> to vector<1x16x384xf32>
    %433 = vector.shape_cast %432 : vector<1x16x384xf32> to vector<16x384xf32>
    %434 = arith.mulf %431, %433 : vector<16x384xf32>
    %435 = vector.shape_cast %434 : vector<16x384xf32> to vector<1x16x384xf32>
    %cst_116 = arith.constant dense<0.000000e+00> : vector<1xf32>
    %436 = vector.multi_reduction <add>, %435, %cst_116 [1, 2] : vector<1x16x384xf32> to vector<1xf32>
    %437 = vector.shape_cast %436 : vector<1xf32> to vector<1x1x1xf32>
    %438 = vector.extract %437[0, 0, 0] : f32 from vector<1x1x1xf32>
    %439 = vector.extract_strided_slice %378 {offsets = [0, 0, 0], sizes = [1, 16, 384], strides = [1, 1, 1]} : vector<3x16x384xf32> to vector<1x16x384xf32>
    %440 = vector.shape_cast %439 : vector<1x16x384xf32> to vector<16x384xf32>
    %441 = vector.extract_strided_slice %378 {offsets = [1, 0, 0], sizes = [1, 16, 384], strides = [1, 1, 1]} : vector<3x16x384xf32> to vector<1x16x384xf32>
    %442 = vector.shape_cast %441 : vector<1x16x384xf32> to vector<16x384xf32>
    %443 = arith.mulf %440, %442 : vector<16x384xf32>
    %444 = vector.shape_cast %443 : vector<16x384xf32> to vector<1x16x384xf32>
    %cst_117 = arith.constant dense<0.000000e+00> : vector<1xf32>
    %445 = vector.multi_reduction <add>, %444, %cst_117 [1, 2] : vector<1x16x384xf32> to vector<1xf32>
    %446 = vector.shape_cast %445 : vector<1xf32> to vector<1x1x1xf32>
    %447 = vector.extract %446[0, 0, 0] : f32 from vector<1x1x1xf32>
    %448 = vector.extract_strided_slice %378 {offsets = [0, 0, 0], sizes = [1, 16, 384], strides = [1, 1, 1]} : vector<3x16x384xf32> to vector<1x16x384xf32>
    %449 = vector.shape_cast %448 : vector<1x16x384xf32> to vector<16x384xf32>
    %450 = vector.extract_strided_slice %378 {offsets = [2, 0, 0], sizes = [1, 16, 384], strides = [1, 1, 1]} : vector<3x16x384xf32> to vector<1x16x384xf32>
    %451 = vector.shape_cast %450 : vector<1x16x384xf32> to vector<16x384xf32>
    %452 = arith.mulf %449, %451 : vector<16x384xf32>
    %453 = vector.shape_cast %452 : vector<16x384xf32> to vector<1x16x384xf32>
    %cst_118 = arith.constant dense<0.000000e+00> : vector<1xf32>
    %454 = vector.multi_reduction <add>, %453, %cst_118 [1, 2] : vector<1x16x384xf32> to vector<1xf32>
    %455 = vector.shape_cast %454 : vector<1xf32> to vector<1x1x1xf32>
    %456 = vector.extract %455[0, 0, 0] : f32 from vector<1x1x1xf32>
    %457 = vector.extract_strided_slice %378 {offsets = [1, 0, 0], sizes = [1, 16, 384], strides = [1, 1, 1]} : vector<3x16x384xf32> to vector<1x16x384xf32>
    %458 = vector.shape_cast %457 : vector<1x16x384xf32> to vector<16x384xf32>
    %459 = vector.extract_strided_slice %378 {offsets = [2, 0, 0], sizes = [1, 16, 384], strides = [1, 1, 1]} : vector<3x16x384xf32> to vector<1x16x384xf32>
    %460 = vector.shape_cast %459 : vector<1x16x384xf32> to vector<16x384xf32>
    %461 = arith.mulf %458, %460 : vector<16x384xf32>
    %462 = vector.shape_cast %461 : vector<16x384xf32> to vector<1x16x384xf32>
    %cst_119 = arith.constant dense<0.000000e+00> : vector<1xf32>
    %463 = vector.multi_reduction <add>, %462, %cst_119 [1, 2] : vector<1x16x384xf32> to vector<1xf32>
    %464 = vector.shape_cast %463 : vector<1xf32> to vector<1x1x1xf32>
    %465 = vector.extract %464[0, 0, 0] : f32 from vector<1x1x1xf32>
    %c0_120 = arith.constant 0 : index
    %c0_121 = arith.constant 0 : index
    %466 = memref.load %arg11[%c0_120, %c0_121] : memref<3x3xf32, #tpu.memory_space<smem>>
    %467 = arith.mulf %466, %420 : f32
    %c1_122 = arith.constant 1 : index
    %c1_123 = arith.constant 1 : index
    %468 = memref.load %arg11[%c1_122, %c1_123] : memref<3x3xf32, #tpu.memory_space<smem>>
    %469 = arith.mulf %468, %429 : f32
    %470 = arith.addf %467, %469 : f32
    %c2_124 = arith.constant 2 : index
    %c2_125 = arith.constant 2 : index
    %471 = memref.load %arg11[%c2_124, %c2_125] : memref<3x3xf32, #tpu.memory_space<smem>>
    %472 = arith.mulf %471, %438 : f32
    %473 = arith.addf %470, %472 : f32
    %c0_126 = arith.constant 0 : index
    %c1_127 = arith.constant 1 : index
    %474 = memref.load %arg11[%c0_126, %c1_127] : memref<3x3xf32, #tpu.memory_space<smem>>
    %475 = arith.mulf %474, %447 : f32
    %c0_128 = arith.constant 0 : index
    %c2_129 = arith.constant 2 : index
    %476 = memref.load %arg11[%c0_128, %c2_129] : memref<3x3xf32, #tpu.memory_space<smem>>
    %477 = arith.mulf %476, %456 : f32
    %478 = arith.addf %475, %477 : f32
    %c1_130 = arith.constant 1 : index
    %c2_131 = arith.constant 2 : index
    %479 = memref.load %arg11[%c1_130, %c2_131] : memref<3x3xf32, #tpu.memory_space<smem>>
    %480 = arith.mulf %479, %465 : f32
    %481 = arith.addf %478, %480 : f32
    %cst_132 = arith.constant 2.000000e+00 : f32
    %482 = arith.mulf %cst_132, %481 : f32
    %483 = arith.addf %473, %482 : f32
    %484 = vector.extract_strided_slice %411 {offsets = [0, 0, 0], sizes = [1, 16, 384], strides = [1, 1, 1]} : vector<3x16x384xf32> to vector<1x16x384xf32>
    %485 = vector.shape_cast %484 : vector<1x16x384xf32> to vector<16x384xf32>
    %486 = vector.extract_strided_slice %411 {offsets = [0, 0, 0], sizes = [1, 16, 384], strides = [1, 1, 1]} : vector<3x16x384xf32> to vector<1x16x384xf32>
    %487 = vector.shape_cast %486 : vector<1x16x384xf32> to vector<16x384xf32>
    %488 = arith.mulf %485, %487 : vector<16x384xf32>
    %489 = vector.shape_cast %488 : vector<16x384xf32> to vector<1x16x384xf32>
    %cst_133 = arith.constant dense<0.000000e+00> : vector<1xf32>
    %490 = vector.multi_reduction <add>, %489, %cst_133 [1, 2] : vector<1x16x384xf32> to vector<1xf32>
    %491 = vector.shape_cast %490 : vector<1xf32> to vector<1x1x1xf32>
    %492 = vector.extract %491[0, 0, 0] : f32 from vector<1x1x1xf32>
    %493 = vector.extract_strided_slice %411 {offsets = [1, 0, 0], sizes = [1, 16, 384], strides = [1, 1, 1]} : vector<3x16x384xf32> to vector<1x16x384xf32>
    %494 = vector.shape_cast %493 : vector<1x16x384xf32> to vector<16x384xf32>
    %495 = vector.extract_strided_slice %411 {offsets = [1, 0, 0], sizes = [1, 16, 384], strides = [1, 1, 1]} : vector<3x16x384xf32> to vector<1x16x384xf32>
    %496 = vector.shape_cast %495 : vector<1x16x384xf32> to vector<16x384xf32>
    %497 = arith.mulf %494, %496 : vector<16x384xf32>
    %498 = vector.shape_cast %497 : vector<16x384xf32> to vector<1x16x384xf32>
    %cst_134 = arith.constant dense<0.000000e+00> : vector<1xf32>
    %499 = vector.multi_reduction <add>, %498, %cst_134 [1, 2] : vector<1x16x384xf32> to vector<1xf32>
    %500 = vector.shape_cast %499 : vector<1xf32> to vector<1x1x1xf32>
    %501 = vector.extract %500[0, 0, 0] : f32 from vector<1x1x1xf32>
    %502 = vector.extract_strided_slice %411 {offsets = [2, 0, 0], sizes = [1, 16, 384], strides = [1, 1, 1]} : vector<3x16x384xf32> to vector<1x16x384xf32>
    %503 = vector.shape_cast %502 : vector<1x16x384xf32> to vector<16x384xf32>
    %504 = vector.extract_strided_slice %411 {offsets = [2, 0, 0], sizes = [1, 16, 384], strides = [1, 1, 1]} : vector<3x16x384xf32> to vector<1x16x384xf32>
    %505 = vector.shape_cast %504 : vector<1x16x384xf32> to vector<16x384xf32>
    %506 = arith.mulf %503, %505 : vector<16x384xf32>
    %507 = vector.shape_cast %506 : vector<16x384xf32> to vector<1x16x384xf32>
    %cst_135 = arith.constant dense<0.000000e+00> : vector<1xf32>
    %508 = vector.multi_reduction <add>, %507, %cst_135 [1, 2] : vector<1x16x384xf32> to vector<1xf32>
    %509 = vector.shape_cast %508 : vector<1xf32> to vector<1x1x1xf32>
    %510 = vector.extract %509[0, 0, 0] : f32 from vector<1x1x1xf32>
    %511 = vector.extract_strided_slice %411 {offsets = [0, 0, 0], sizes = [1, 16, 384], strides = [1, 1, 1]} : vector<3x16x384xf32> to vector<1x16x384xf32>
    %512 = vector.shape_cast %511 : vector<1x16x384xf32> to vector<16x384xf32>
    %513 = vector.extract_strided_slice %411 {offsets = [1, 0, 0], sizes = [1, 16, 384], strides = [1, 1, 1]} : vector<3x16x384xf32> to vector<1x16x384xf32>
    %514 = vector.shape_cast %513 : vector<1x16x384xf32> to vector<16x384xf32>
    %515 = arith.mulf %512, %514 : vector<16x384xf32>
    %516 = vector.shape_cast %515 : vector<16x384xf32> to vector<1x16x384xf32>
    %cst_136 = arith.constant dense<0.000000e+00> : vector<1xf32>
    %517 = vector.multi_reduction <add>, %516, %cst_136 [1, 2] : vector<1x16x384xf32> to vector<1xf32>
    %518 = vector.shape_cast %517 : vector<1xf32> to vector<1x1x1xf32>
    %519 = vector.extract %518[0, 0, 0] : f32 from vector<1x1x1xf32>
    %520 = vector.extract_strided_slice %411 {offsets = [0, 0, 0], sizes = [1, 16, 384], strides = [1, 1, 1]} : vector<3x16x384xf32> to vector<1x16x384xf32>
    %521 = vector.shape_cast %520 : vector<1x16x384xf32> to vector<16x384xf32>
    %522 = vector.extract_strided_slice %411 {offsets = [2, 0, 0], sizes = [1, 16, 384], strides = [1, 1, 1]} : vector<3x16x384xf32> to vector<1x16x384xf32>
    %523 = vector.shape_cast %522 : vector<1x16x384xf32> to vector<16x384xf32>
    %524 = arith.mulf %521, %523 : vector<16x384xf32>
    %525 = vector.shape_cast %524 : vector<16x384xf32> to vector<1x16x384xf32>
    %cst_137 = arith.constant dense<0.000000e+00> : vector<1xf32>
    %526 = vector.multi_reduction <add>, %525, %cst_137 [1, 2] : vector<1x16x384xf32> to vector<1xf32>
    %527 = vector.shape_cast %526 : vector<1xf32> to vector<1x1x1xf32>
    %528 = vector.extract %527[0, 0, 0] : f32 from vector<1x1x1xf32>
    %529 = vector.extract_strided_slice %411 {offsets = [1, 0, 0], sizes = [1, 16, 384], strides = [1, 1, 1]} : vector<3x16x384xf32> to vector<1x16x384xf32>
    %530 = vector.shape_cast %529 : vector<1x16x384xf32> to vector<16x384xf32>
    %531 = vector.extract_strided_slice %411 {offsets = [2, 0, 0], sizes = [1, 16, 384], strides = [1, 1, 1]} : vector<3x16x384xf32> to vector<1x16x384xf32>
    %532 = vector.shape_cast %531 : vector<1x16x384xf32> to vector<16x384xf32>
    %533 = arith.mulf %530, %532 : vector<16x384xf32>
    %534 = vector.shape_cast %533 : vector<16x384xf32> to vector<1x16x384xf32>
    %cst_138 = arith.constant dense<0.000000e+00> : vector<1xf32>
    %535 = vector.multi_reduction <add>, %534, %cst_138 [1, 2] : vector<1x16x384xf32> to vector<1xf32>
    %536 = vector.shape_cast %535 : vector<1xf32> to vector<1x1x1xf32>
    %537 = vector.extract %536[0, 0, 0] : f32 from vector<1x1x1xf32>
    %c0_139 = arith.constant 0 : index
    %c0_140 = arith.constant 0 : index
    %538 = memref.load %arg11[%c0_139, %c0_140] : memref<3x3xf32, #tpu.memory_space<smem>>
    %539 = arith.mulf %538, %492 : f32
    %c1_141 = arith.constant 1 : index
    %c1_142 = arith.constant 1 : index
    %540 = memref.load %arg11[%c1_141, %c1_142] : memref<3x3xf32, #tpu.memory_space<smem>>
    %541 = arith.mulf %540, %501 : f32
    %542 = arith.addf %539, %541 : f32
    %c2_143 = arith.constant 2 : index
    %c2_144 = arith.constant 2 : index
    %543 = memref.load %arg11[%c2_143, %c2_144] : memref<3x3xf32, #tpu.memory_space<smem>>
    %544 = arith.mulf %543, %510 : f32
    %545 = arith.addf %542, %544 : f32
    %c0_145 = arith.constant 0 : index
    %c1_146 = arith.constant 1 : index
    %546 = memref.load %arg11[%c0_145, %c1_146] : memref<3x3xf32, #tpu.memory_space<smem>>
    %547 = arith.mulf %546, %519 : f32
    %c0_147 = arith.constant 0 : index
    %c2_148 = arith.constant 2 : index
    %548 = memref.load %arg11[%c0_147, %c2_148] : memref<3x3xf32, #tpu.memory_space<smem>>
    %549 = arith.mulf %548, %528 : f32
    %550 = arith.addf %547, %549 : f32
    %c1_149 = arith.constant 1 : index
    %c2_150 = arith.constant 2 : index
    %551 = memref.load %arg11[%c1_149, %c2_150] : memref<3x3xf32, #tpu.memory_space<smem>>
    %552 = arith.mulf %551, %537 : f32
    %553 = arith.addf %550, %552 : f32
    %cst_151 = arith.constant 2.000000e+00 : f32
    %554 = arith.mulf %cst_151, %553 : f32
    %555 = arith.addf %545, %554 : f32
    %cst_152 = arith.constant dense<0.000000e+00> : vector<3x384xf32>
    %556 = vector.multi_reduction <add>, %411, %cst_152 [1] : vector<3x16x384xf32> to vector<3x384xf32>
    %557 = vector.shape_cast %556 : vector<3x384xf32> to vector<1x3x384xf32>
    %c0_153 = arith.constant 0 : index
    %c0_154 = arith.constant 0 : index
    %c0_155 = arith.constant 0 : index
    %558 = vector.load %arg12[%c0_153, %c0_154, %c0_155] : memref<1x3x384xf32, #tpu.memory_space<vmem>>, vector<1x3x384xf32>
    tpu.vector_store %arg12[%c0_153, %c0_154, %c0_155], %557 {strides = array<i32>} : memref<1x3x384xf32, #tpu.memory_space<vmem>>, vector<1x3x384xf32>,
    %559 = arith.addf %113, %298 : f32
    %560 = arith.addf %559, %483 : f32
    %561 = arith.addf %185, %370 : f32
    %562 = arith.addf %561, %555 : f32
    %563 = tpu.iota {dimensions = array<i32: 0>} : vector<8x128xi32>
    %564 = tpu.iota {dimensions = array<i32: 1>} : vector<8x128xi32>
    %cst_156 = arith.constant 0.000000e+00 : f32
    %565 = vector.broadcast %cst_156 : f32 to vector<8x128xf32>
    %c0_i32 = arith.constant 0 : i32
    %566 = vector.broadcast %c0_i32 : i32 to vector<8x128xi32>
    %567 = arith.cmpi eq, %563, %566 : vector<8x128xi32>
    %c0_i32_157 = arith.constant 0 : i32
    %568 = vector.broadcast %c0_i32_157 : i32 to vector<8x128xi32>
    %569 = arith.cmpi eq, %564, %568 : vector<8x128xi32>
    %570 = arith.andi %567, %569 : vector<8x128xi1>
    %571 = vector.broadcast %560 : f32 to vector<8x128xf32>
    %572 = arith.select %570, %571, %565 : vector<8x128xi1>, vector<8x128xf32>
    %c0_i32_158 = arith.constant 0 : i32
    %573 = vector.broadcast %c0_i32_158 : i32 to vector<8x128xi32>
    %574 = arith.cmpi eq, %563, %573 : vector<8x128xi32>
    %c1_i32 = arith.constant 1 : i32
    %575 = vector.broadcast %c1_i32 : i32 to vector<8x128xi32>
    %576 = arith.cmpi eq, %564, %575 : vector<8x128xi32>
    %577 = arith.andi %574, %576 : vector<8x128xi1>
    %578 = vector.broadcast %562 : f32 to vector<8x128xf32>
    %579 = arith.select %577, %578, %572 : vector<8x128xi1>, vector<8x128xf32>
    %580 = vector.shape_cast %579 : vector<8x128xf32> to vector<1x8x128xf32>
    %c0_159 = arith.constant 0 : index
    %c0_160 = arith.constant 0 : index
    %c0_161 = arith.constant 0 : index
    %581 = vector.load %arg13[%c0_159, %c0_160, %c0_161] : memref<1x8x128xf32, #tpu.memory_space<vmem>>, vector<1x8x128xf32>
    tpu.vector_store %arg13[%c0_159, %c0_160, %c0_161], %580 {strides = array<i32>} : memref<1x8x128xf32, #tpu.memory_space<vmem>>, vector<1x8x128xf32>,
    return
  }
  func.func @transform_0(%arg0: i32) -> (i32, i32, i32) {
    %c0_i32 = arith.constant 0 : i32
    %c0_i32_0 = arith.constant 0 : i32
    %c0_i32_1 = arith.constant 0 : i32
    return %c0_i32, %arg0, %c0_i32_0 : i32, i32, i32
  }
  func.func @transform_1(%arg0: i32) -> (i32, i32) {
    %c0_i32 = arith.constant 0 : i32
    %c0_i32_0 = arith.constant 0 : i32
    %c0_i32_1 = arith.constant 0 : i32
    return %c0_i32, %c0_i32_0 : i32, i32
  }
  func.func @transform_2(%arg0: i32) -> (i32, i32) {
    %c0_i32 = arith.constant 0 : i32
    %c0_i32_0 = arith.constant 0 : i32
    %c0_i32_1 = arith.constant 0 : i32
    return %c0_i32, %c0_i32_0 : i32, i32
  }
  func.func @transform_3(%arg0: i32) -> (i32, i32) {
    %c0_i32 = arith.constant 0 : i32
    %c0_i32_0 = arith.constant 0 : i32
    %c0_i32_1 = arith.constant 0 : i32
    return %c0_i32, %c0_i32_0 : i32, i32
  }
  func.func @transform_4(%arg0: i32) -> (i32, i32) {
    %c0_i32 = arith.constant 0 : i32
    %c0_i32_0 = arith.constant 0 : i32
    %c0_i32_1 = arith.constant 0 : i32
    return %c0_i32, %c0_i32_0 : i32, i32
  }
  func.func @transform_5(%arg0: i32) -> (i32, i32) {
    %c0_i32 = arith.constant 0 : i32
    %c0_i32_0 = arith.constant 0 : i32
    %c0_i32_1 = arith.constant 0 : i32
    return %c0_i32, %c0_i32_0 : i32, i32
  }
  func.func @transform_6(%arg0: i32) -> (i32, i32) {
    %c0_i32 = arith.constant 0 : i32
    %c0_i32_0 = arith.constant 0 : i32
    %c0_i32_1 = arith.constant 0 : i32
    return %c0_i32, %c0_i32_0 : i32, i32
  }
  func.func @transform_7(%arg0: i32) -> (i32, i32) {
    %c0_i32 = arith.constant 0 : i32
    %c0_i32_0 = arith.constant 0 : i32
    %c0_i32_1 = arith.constant 0 : i32
    return %c0_i32, %c0_i32_0 : i32, i32
  }
  func.func @transform_8(%arg0: i32) -> (i32, i32) {
    %c0_i32 = arith.constant 0 : i32
    %c0_i32_0 = arith.constant 0 : i32
    %c0_i32_1 = arith.constant 0 : i32
    return %c0_i32, %c0_i32_0 : i32, i32
  }
  func.func @transform_9(%arg0: i32) -> (i32, i32) {
    %c0_i32 = arith.constant 0 : i32
    %c0_i32_0 = arith.constant 0 : i32
    %c0_i32_1 = arith.constant 0 : i32
    return %c0_i32, %c0_i32_0 : i32, i32
  }
  func.func @transform_10(%arg0: i32) -> (i32, i32) {
    %c0_i32 = arith.constant 0 : i32
    %c0_i32_0 = arith.constant 0 : i32
    %c0_i32_1 = arith.constant 0 : i32
    return %c0_i32, %c0_i32_0 : i32, i32
  }
  func.func @transform_11(%arg0: i32) -> (i32, i32, i32) {
    %c0_i32 = arith.constant 0 : i32
    %c0_i32_0 = arith.constant 0 : i32
    %c0_i32_1 = arith.constant 0 : i32
    return %arg0, %c0_i32, %c0_i32_0 : i32, i32, i32
  }
  func.func @transform_12(%arg0: i32) -> (i32, i32, i32) {
    %c0_i32 = arith.constant 0 : i32
    %c0_i32_0 = arith.constant 0 : i32
    %c0_i32_1 = arith.constant 0 : i32
    return %arg0, %c0_i32, %c0_i32_0 : i32, i32, i32
  }
}

module attributes {stable_mosaic.version = 11 : i64} {
  func.func @_fc_fused_kernel(%arg0: i32, %arg1: memref<3x8x384xf32, #tpu.memory_space<vmem>>, %arg2: memref<384x512xbf16, #tpu.memory_space<vmem>>, %arg3: memref<1x256xf32, #tpu.memory_space<vmem>>, %arg4: memref<1x256xf32, #tpu.memory_space<vmem>>, %arg5: memref<256x256xbf16, #tpu.memory_space<vmem>>, %arg6: memref<1x128xf32, #tpu.memory_space<vmem>>, %arg7: memref<1x128xf32, #tpu.memory_space<vmem>>, %arg8: memref<128x16xbf16, #tpu.memory_space<vmem>>, %arg9: memref<3x3xf32, #tpu.memory_space<smem>>, %arg10: memref<3x8x16xf32, #tpu.memory_space<vmem>>, %arg11: memref<8x128xf32, #tpu.memory_space<vmem>>) attributes {dimension_semantics = [#tpu.dimension_semantics<arbitrary>], iteration_bounds = array<i64: 1>, scalar_prefetch = 0 : i64, scratch_operands = 0 : i64, tpu.core_type = #tpu.core_type<tc>, window_params = [{pipeline_mode = #tpu.pipeline_mode<synchronous>, transform_indices = @transform_0, window_bounds = array<i64: 3, 8, 384>}, {pipeline_mode = #tpu.pipeline_mode<synchronous>, transform_indices = @transform_1, window_bounds = array<i64: 384, 512>}, {pipeline_mode = #tpu.pipeline_mode<synchronous>, transform_indices = @transform_2, window_bounds = array<i64: 1, 256>}, {pipeline_mode = #tpu.pipeline_mode<synchronous>, transform_indices = @transform_3, window_bounds = array<i64: 1, 256>}, {pipeline_mode = #tpu.pipeline_mode<synchronous>, transform_indices = @transform_4, window_bounds = array<i64: 256, 256>}, {pipeline_mode = #tpu.pipeline_mode<synchronous>, transform_indices = @transform_5, window_bounds = array<i64: 1, 128>}, {pipeline_mode = #tpu.pipeline_mode<synchronous>, transform_indices = @transform_6, window_bounds = array<i64: 1, 128>}, {pipeline_mode = #tpu.pipeline_mode<synchronous>, transform_indices = @transform_7, window_bounds = array<i64: 128, 16>}, {transform_indices = @transform_8, window_bounds = array<i64: 3, 3>}, {pipeline_mode = #tpu.pipeline_mode<synchronous>, transform_indices = @transform_9, window_bounds = array<i64: 3, 8, 16>}, {pipeline_mode = #tpu.pipeline_mode<synchronous>, transform_indices = @transform_10, window_bounds = array<i64: 8, 128>}]} {
    %c0 = arith.constant 0 : index
    %c0_0 = arith.constant 0 : index
    %c0_1 = arith.constant 0 : index
    %0 = vector.load %arg1[%c0, %c0_0, %c0_1] : memref<3x8x384xf32, #tpu.memory_space<vmem>>, vector<3x8x384xf32>
    %c0_2 = arith.constant 0 : index
    %c0_3 = arith.constant 0 : index
    %1 = vector.load %arg2[%c0_2, %c0_3] : memref<384x512xbf16, #tpu.memory_space<vmem>>, vector<384x512xbf16>
    %c0_4 = arith.constant 0 : index
    %c0_5 = arith.constant 0 : index
    %2 = vector.load %arg3[%c0_4, %c0_5] : memref<1x256xf32, #tpu.memory_space<vmem>>, vector<1x256xf32>
    %c0_6 = arith.constant 0 : index
    %c0_7 = arith.constant 0 : index
    %3 = vector.load %arg4[%c0_6, %c0_7] : memref<1x256xf32, #tpu.memory_space<vmem>>, vector<1x256xf32>
    %4 = arith.truncf %0 : vector<3x8x384xf32> to vector<3x8x384xbf16>
    %5 = vector.shape_cast %4 : vector<3x8x384xbf16> to vector<24x384xbf16>
    %cst = arith.constant dense<0.000000e+00> : vector<24x512xf32>
    %6 = tpu.matmul %5, %1, %cst {dimension_numbers = #tpu.dot_dimension_numbers<[1], [0], [0], [1], [0, 0, 1, 1], [], []>} : vector<24x384xbf16>, vector<384x512xbf16>, vector<24x512xf32> -> vector<24x512xf32>
    %7 = vector.shape_cast %6 : vector<24x512xf32> to vector<3x8x512xf32>
    %8 = vector.extract_strided_slice %7 {offsets = [0, 0, 0], sizes = [3, 8, 256], strides = [1, 1, 1]} : vector<3x8x512xf32> to vector<3x8x256xf32>
    %9 = vector.extract_strided_slice %7 {offsets = [0, 0, 256], sizes = [3, 8, 256], strides = [1, 1, 1]} : vector<3x8x512xf32> to vector<3x8x256xf32>
    %10 = arith.mulf %8, %8 : vector<3x8x256xf32>
    %cst_8 = arith.constant dense<0.000000e+00> : vector<8x256xf32>
    %11 = vector.multi_reduction <add>, %10, %cst_8 [0] : vector<3x8x256xf32> to vector<8x256xf32>
    %12 = vector.shape_cast %11 : vector<8x256xf32> to vector<1x8x256xf32>
    %13 = math.sqrt %12 : vector<1x8x256xf32>
    %cst_9 = arith.constant 9.99999997E-7 : f32
    %14 = vector.broadcast %cst_9 : f32 to vector<1x8x256xf32>
    %15 = arith.addf %13, %14 : vector<1x8x256xf32>
    %16 = vector.shape_cast %2 : vector<1x256xf32> to vector<1x1x256xf32>
    %17 = vector.broadcast %16 : vector<1x1x256xf32> to vector<1x8x256xf32>
    %18 = arith.mulf %15, %17 : vector<1x8x256xf32>
    %19 = vector.shape_cast %3 : vector<1x256xf32> to vector<1x1x256xf32>
    %20 = vector.broadcast %19 : vector<1x1x256xf32> to vector<1x8x256xf32>
    %21 = arith.addf %18, %20 : vector<1x8x256xf32>
    %22 = arith.divf %21, %15 : vector<1x8x256xf32>
    %23 = vector.broadcast %22 : vector<1x8x256xf32> to vector<3x8x256xf32>
    %24 = arith.mulf %8, %23 : vector<3x8x256xf32>
    %25 = arith.mulf %24, %9 : vector<3x8x256xf32>
    %cst_10 = arith.constant dense<0.000000e+00> : vector<8x256xf32>
    %26 = vector.multi_reduction <add>, %25, %cst_10 [0] : vector<3x8x256xf32> to vector<8x256xf32>
    %27 = vector.shape_cast %26 : vector<8x256xf32> to vector<1x8x256xf32>
    %28 = arith.mulf %9, %9 : vector<3x8x256xf32>
    %cst_11 = arith.constant dense<0.000000e+00> : vector<8x256xf32>
    %29 = vector.multi_reduction <add>, %28, %cst_11 [0] : vector<3x8x256xf32> to vector<8x256xf32>
    %30 = vector.shape_cast %29 : vector<8x256xf32> to vector<1x8x256xf32>
    %cst_12 = arith.constant 9.99999997E-7 : f32
    %31 = vector.broadcast %cst_12 : f32 to vector<1x8x256xf32>
    %32 = arith.addf %30, %31 : vector<1x8x256xf32>
    %33 = arith.divf %27, %32 : vector<1x8x256xf32>
    %cst_13 = arith.constant 0.000000e+00 : f32
    %34 = vector.broadcast %cst_13 : f32 to vector<1x8x256xf32>
    %35 = arith.cmpf oge, %27, %34 : vector<1x8x256xf32>
    %36 = vector.broadcast %33 : vector<1x8x256xf32> to vector<3x8x256xf32>
    %37 = arith.mulf %36, %9 : vector<3x8x256xf32>
    %38 = arith.subf %24, %37 : vector<3x8x256xf32>
    %39 = vector.shape_cast %35 : vector<1x8x256xi1> to vector<1x8x256xi1>
    %40 = vector.broadcast %39 : vector<1x8x256xi1> to vector<3x8x256xi1>
    %41 = arith.select %40, %24, %38 : vector<3x8x256xi1>, vector<3x8x256xf32>
    %42 = vector.extract_strided_slice %8 {offsets = [0, 0, 0], sizes = [1, 8, 256], strides = [1, 1, 1]} : vector<3x8x256xf32> to vector<1x8x256xf32>
    %43 = vector.shape_cast %42 : vector<1x8x256xf32> to vector<8x256xf32>
    %44 = vector.extract_strided_slice %8 {offsets = [0, 0, 0], sizes = [1, 8, 256], strides = [1, 1, 1]} : vector<3x8x256xf32> to vector<1x8x256xf32>
    %45 = vector.shape_cast %44 : vector<1x8x256xf32> to vector<8x256xf32>
    %46 = arith.mulf %43, %45 : vector<8x256xf32>
    %47 = vector.shape_cast %46 : vector<8x256xf32> to vector<1x8x256xf32>
    %cst_14 = arith.constant dense<0.000000e+00> : vector<1xf32>
    %48 = vector.multi_reduction <add>, %47, %cst_14 [1, 2] : vector<1x8x256xf32> to vector<1xf32>
    %49 = vector.shape_cast %48 : vector<1xf32> to vector<1x1x1xf32>
    %50 = vector.extract %49[0, 0, 0] : f32 from vector<1x1x1xf32>
    %51 = vector.extract_strided_slice %8 {offsets = [1, 0, 0], sizes = [1, 8, 256], strides = [1, 1, 1]} : vector<3x8x256xf32> to vector<1x8x256xf32>
    %52 = vector.shape_cast %51 : vector<1x8x256xf32> to vector<8x256xf32>
    %53 = vector.extract_strided_slice %8 {offsets = [1, 0, 0], sizes = [1, 8, 256], strides = [1, 1, 1]} : vector<3x8x256xf32> to vector<1x8x256xf32>
    %54 = vector.shape_cast %53 : vector<1x8x256xf32> to vector<8x256xf32>
    %55 = arith.mulf %52, %54 : vector<8x256xf32>
    %56 = vector.shape_cast %55 : vector<8x256xf32> to vector<1x8x256xf32>
    %cst_15 = arith.constant dense<0.000000e+00> : vector<1xf32>
    %57 = vector.multi_reduction <add>, %56, %cst_15 [1, 2] : vector<1x8x256xf32> to vector<1xf32>
    %58 = vector.shape_cast %57 : vector<1xf32> to vector<1x1x1xf32>
    %59 = vector.extract %58[0, 0, 0] : f32 from vector<1x1x1xf32>
    %60 = vector.extract_strided_slice %8 {offsets = [2, 0, 0], sizes = [1, 8, 256], strides = [1, 1, 1]} : vector<3x8x256xf32> to vector<1x8x256xf32>
    %61 = vector.shape_cast %60 : vector<1x8x256xf32> to vector<8x256xf32>
    %62 = vector.extract_strided_slice %8 {offsets = [2, 0, 0], sizes = [1, 8, 256], strides = [1, 1, 1]} : vector<3x8x256xf32> to vector<1x8x256xf32>
    %63 = vector.shape_cast %62 : vector<1x8x256xf32> to vector<8x256xf32>
    %64 = arith.mulf %61, %63 : vector<8x256xf32>
    %65 = vector.shape_cast %64 : vector<8x256xf32> to vector<1x8x256xf32>
    %cst_16 = arith.constant dense<0.000000e+00> : vector<1xf32>
    %66 = vector.multi_reduction <add>, %65, %cst_16 [1, 2] : vector<1x8x256xf32> to vector<1xf32>
    %67 = vector.shape_cast %66 : vector<1xf32> to vector<1x1x1xf32>
    %68 = vector.extract %67[0, 0, 0] : f32 from vector<1x1x1xf32>
    %69 = vector.extract_strided_slice %8 {offsets = [0, 0, 0], sizes = [1, 8, 256], strides = [1, 1, 1]} : vector<3x8x256xf32> to vector<1x8x256xf32>
    %70 = vector.shape_cast %69 : vector<1x8x256xf32> to vector<8x256xf32>
    %71 = vector.extract_strided_slice %8 {offsets = [1, 0, 0], sizes = [1, 8, 256], strides = [1, 1, 1]} : vector<3x8x256xf32> to vector<1x8x256xf32>
    %72 = vector.shape_cast %71 : vector<1x8x256xf32> to vector<8x256xf32>
    %73 = arith.mulf %70, %72 : vector<8x256xf32>
    %74 = vector.shape_cast %73 : vector<8x256xf32> to vector<1x8x256xf32>
    %cst_17 = arith.constant dense<0.000000e+00> : vector<1xf32>
    %75 = vector.multi_reduction <add>, %74, %cst_17 [1, 2] : vector<1x8x256xf32> to vector<1xf32>
    %76 = vector.shape_cast %75 : vector<1xf32> to vector<1x1x1xf32>
    %77 = vector.extract %76[0, 0, 0] : f32 from vector<1x1x1xf32>
    %78 = vector.extract_strided_slice %8 {offsets = [0, 0, 0], sizes = [1, 8, 256], strides = [1, 1, 1]} : vector<3x8x256xf32> to vector<1x8x256xf32>
    %79 = vector.shape_cast %78 : vector<1x8x256xf32> to vector<8x256xf32>
    %80 = vector.extract_strided_slice %8 {offsets = [2, 0, 0], sizes = [1, 8, 256], strides = [1, 1, 1]} : vector<3x8x256xf32> to vector<1x8x256xf32>
    %81 = vector.shape_cast %80 : vector<1x8x256xf32> to vector<8x256xf32>
    %82 = arith.mulf %79, %81 : vector<8x256xf32>
    %83 = vector.shape_cast %82 : vector<8x256xf32> to vector<1x8x256xf32>
    %cst_18 = arith.constant dense<0.000000e+00> : vector<1xf32>
    %84 = vector.multi_reduction <add>, %83, %cst_18 [1, 2] : vector<1x8x256xf32> to vector<1xf32>
    %85 = vector.shape_cast %84 : vector<1xf32> to vector<1x1x1xf32>
    %86 = vector.extract %85[0, 0, 0] : f32 from vector<1x1x1xf32>
    %87 = vector.extract_strided_slice %8 {offsets = [1, 0, 0], sizes = [1, 8, 256], strides = [1, 1, 1]} : vector<3x8x256xf32> to vector<1x8x256xf32>
    %88 = vector.shape_cast %87 : vector<1x8x256xf32> to vector<8x256xf32>
    %89 = vector.extract_strided_slice %8 {offsets = [2, 0, 0], sizes = [1, 8, 256], strides = [1, 1, 1]} : vector<3x8x256xf32> to vector<1x8x256xf32>
    %90 = vector.shape_cast %89 : vector<1x8x256xf32> to vector<8x256xf32>
    %91 = arith.mulf %88, %90 : vector<8x256xf32>
    %92 = vector.shape_cast %91 : vector<8x256xf32> to vector<1x8x256xf32>
    %cst_19 = arith.constant dense<0.000000e+00> : vector<1xf32>
    %93 = vector.multi_reduction <add>, %92, %cst_19 [1, 2] : vector<1x8x256xf32> to vector<1xf32>
    %94 = vector.shape_cast %93 : vector<1xf32> to vector<1x1x1xf32>
    %95 = vector.extract %94[0, 0, 0] : f32 from vector<1x1x1xf32>
    %c0_20 = arith.constant 0 : index
    %c0_21 = arith.constant 0 : index
    %96 = memref.load %arg9[%c0_20, %c0_21] : memref<3x3xf32, #tpu.memory_space<smem>>
    %97 = arith.mulf %96, %50 : f32
    %c1 = arith.constant 1 : index
    %c1_22 = arith.constant 1 : index
    %98 = memref.load %arg9[%c1, %c1_22] : memref<3x3xf32, #tpu.memory_space<smem>>
    %99 = arith.mulf %98, %59 : f32
    %100 = arith.addf %97, %99 : f32
    %c2 = arith.constant 2 : index
    %c2_23 = arith.constant 2 : index
    %101 = memref.load %arg9[%c2, %c2_23] : memref<3x3xf32, #tpu.memory_space<smem>>
    %102 = arith.mulf %101, %68 : f32
    %103 = arith.addf %100, %102 : f32
    %c0_24 = arith.constant 0 : index
    %c1_25 = arith.constant 1 : index
    %104 = memref.load %arg9[%c0_24, %c1_25] : memref<3x3xf32, #tpu.memory_space<smem>>
    %105 = arith.mulf %104, %77 : f32
    %c0_26 = arith.constant 0 : index
    %c2_27 = arith.constant 2 : index
    %106 = memref.load %arg9[%c0_26, %c2_27] : memref<3x3xf32, #tpu.memory_space<smem>>
    %107 = arith.mulf %106, %86 : f32
    %108 = arith.addf %105, %107 : f32
    %c1_28 = arith.constant 1 : index
    %c2_29 = arith.constant 2 : index
    %109 = memref.load %arg9[%c1_28, %c2_29] : memref<3x3xf32, #tpu.memory_space<smem>>
    %110 = arith.mulf %109, %95 : f32
    %111 = arith.addf %108, %110 : f32
    %cst_30 = arith.constant 2.000000e+00 : f32
    %112 = arith.mulf %cst_30, %111 : f32
    %113 = arith.addf %103, %112 : f32
    %114 = vector.extract_strided_slice %41 {offsets = [0, 0, 0], sizes = [1, 8, 256], strides = [1, 1, 1]} : vector<3x8x256xf32> to vector<1x8x256xf32>
    %115 = vector.shape_cast %114 : vector<1x8x256xf32> to vector<8x256xf32>
    %116 = vector.extract_strided_slice %41 {offsets = [0, 0, 0], sizes = [1, 8, 256], strides = [1, 1, 1]} : vector<3x8x256xf32> to vector<1x8x256xf32>
    %117 = vector.shape_cast %116 : vector<1x8x256xf32> to vector<8x256xf32>
    %118 = arith.mulf %115, %117 : vector<8x256xf32>
    %119 = vector.shape_cast %118 : vector<8x256xf32> to vector<1x8x256xf32>
    %cst_31 = arith.constant dense<0.000000e+00> : vector<1xf32>
    %120 = vector.multi_reduction <add>, %119, %cst_31 [1, 2] : vector<1x8x256xf32> to vector<1xf32>
    %121 = vector.shape_cast %120 : vector<1xf32> to vector<1x1x1xf32>
    %122 = vector.extract %121[0, 0, 0] : f32 from vector<1x1x1xf32>
    %123 = vector.extract_strided_slice %41 {offsets = [1, 0, 0], sizes = [1, 8, 256], strides = [1, 1, 1]} : vector<3x8x256xf32> to vector<1x8x256xf32>
    %124 = vector.shape_cast %123 : vector<1x8x256xf32> to vector<8x256xf32>
    %125 = vector.extract_strided_slice %41 {offsets = [1, 0, 0], sizes = [1, 8, 256], strides = [1, 1, 1]} : vector<3x8x256xf32> to vector<1x8x256xf32>
    %126 = vector.shape_cast %125 : vector<1x8x256xf32> to vector<8x256xf32>
    %127 = arith.mulf %124, %126 : vector<8x256xf32>
    %128 = vector.shape_cast %127 : vector<8x256xf32> to vector<1x8x256xf32>
    %cst_32 = arith.constant dense<0.000000e+00> : vector<1xf32>
    %129 = vector.multi_reduction <add>, %128, %cst_32 [1, 2] : vector<1x8x256xf32> to vector<1xf32>
    %130 = vector.shape_cast %129 : vector<1xf32> to vector<1x1x1xf32>
    %131 = vector.extract %130[0, 0, 0] : f32 from vector<1x1x1xf32>
    %132 = vector.extract_strided_slice %41 {offsets = [2, 0, 0], sizes = [1, 8, 256], strides = [1, 1, 1]} : vector<3x8x256xf32> to vector<1x8x256xf32>
    %133 = vector.shape_cast %132 : vector<1x8x256xf32> to vector<8x256xf32>
    %134 = vector.extract_strided_slice %41 {offsets = [2, 0, 0], sizes = [1, 8, 256], strides = [1, 1, 1]} : vector<3x8x256xf32> to vector<1x8x256xf32>
    %135 = vector.shape_cast %134 : vector<1x8x256xf32> to vector<8x256xf32>
    %136 = arith.mulf %133, %135 : vector<8x256xf32>
    %137 = vector.shape_cast %136 : vector<8x256xf32> to vector<1x8x256xf32>
    %cst_33 = arith.constant dense<0.000000e+00> : vector<1xf32>
    %138 = vector.multi_reduction <add>, %137, %cst_33 [1, 2] : vector<1x8x256xf32> to vector<1xf32>
    %139 = vector.shape_cast %138 : vector<1xf32> to vector<1x1x1xf32>
    %140 = vector.extract %139[0, 0, 0] : f32 from vector<1x1x1xf32>
    %141 = vector.extract_strided_slice %41 {offsets = [0, 0, 0], sizes = [1, 8, 256], strides = [1, 1, 1]} : vector<3x8x256xf32> to vector<1x8x256xf32>
    %142 = vector.shape_cast %141 : vector<1x8x256xf32> to vector<8x256xf32>
    %143 = vector.extract_strided_slice %41 {offsets = [1, 0, 0], sizes = [1, 8, 256], strides = [1, 1, 1]} : vector<3x8x256xf32> to vector<1x8x256xf32>
    %144 = vector.shape_cast %143 : vector<1x8x256xf32> to vector<8x256xf32>
    %145 = arith.mulf %142, %144 : vector<8x256xf32>
    %146 = vector.shape_cast %145 : vector<8x256xf32> to vector<1x8x256xf32>
    %cst_34 = arith.constant dense<0.000000e+00> : vector<1xf32>
    %147 = vector.multi_reduction <add>, %146, %cst_34 [1, 2] : vector<1x8x256xf32> to vector<1xf32>
    %148 = vector.shape_cast %147 : vector<1xf32> to vector<1x1x1xf32>
    %149 = vector.extract %148[0, 0, 0] : f32 from vector<1x1x1xf32>
    %150 = vector.extract_strided_slice %41 {offsets = [0, 0, 0], sizes = [1, 8, 256], strides = [1, 1, 1]} : vector<3x8x256xf32> to vector<1x8x256xf32>
    %151 = vector.shape_cast %150 : vector<1x8x256xf32> to vector<8x256xf32>
    %152 = vector.extract_strided_slice %41 {offsets = [2, 0, 0], sizes = [1, 8, 256], strides = [1, 1, 1]} : vector<3x8x256xf32> to vector<1x8x256xf32>
    %153 = vector.shape_cast %152 : vector<1x8x256xf32> to vector<8x256xf32>
    %154 = arith.mulf %151, %153 : vector<8x256xf32>
    %155 = vector.shape_cast %154 : vector<8x256xf32> to vector<1x8x256xf32>
    %cst_35 = arith.constant dense<0.000000e+00> : vector<1xf32>
    %156 = vector.multi_reduction <add>, %155, %cst_35 [1, 2] : vector<1x8x256xf32> to vector<1xf32>
    %157 = vector.shape_cast %156 : vector<1xf32> to vector<1x1x1xf32>
    %158 = vector.extract %157[0, 0, 0] : f32 from vector<1x1x1xf32>
    %159 = vector.extract_strided_slice %41 {offsets = [1, 0, 0], sizes = [1, 8, 256], strides = [1, 1, 1]} : vector<3x8x256xf32> to vector<1x8x256xf32>
    %160 = vector.shape_cast %159 : vector<1x8x256xf32> to vector<8x256xf32>
    %161 = vector.extract_strided_slice %41 {offsets = [2, 0, 0], sizes = [1, 8, 256], strides = [1, 1, 1]} : vector<3x8x256xf32> to vector<1x8x256xf32>
    %162 = vector.shape_cast %161 : vector<1x8x256xf32> to vector<8x256xf32>
    %163 = arith.mulf %160, %162 : vector<8x256xf32>
    %164 = vector.shape_cast %163 : vector<8x256xf32> to vector<1x8x256xf32>
    %cst_36 = arith.constant dense<0.000000e+00> : vector<1xf32>
    %165 = vector.multi_reduction <add>, %164, %cst_36 [1, 2] : vector<1x8x256xf32> to vector<1xf32>
    %166 = vector.shape_cast %165 : vector<1xf32> to vector<1x1x1xf32>
    %167 = vector.extract %166[0, 0, 0] : f32 from vector<1x1x1xf32>
    %c0_37 = arith.constant 0 : index
    %c0_38 = arith.constant 0 : index
    %168 = memref.load %arg9[%c0_37, %c0_38] : memref<3x3xf32, #tpu.memory_space<smem>>
    %169 = arith.mulf %168, %122 : f32
    %c1_39 = arith.constant 1 : index
    %c1_40 = arith.constant 1 : index
    %170 = memref.load %arg9[%c1_39, %c1_40] : memref<3x3xf32, #tpu.memory_space<smem>>
    %171 = arith.mulf %170, %131 : f32
    %172 = arith.addf %169, %171 : f32
    %c2_41 = arith.constant 2 : index
    %c2_42 = arith.constant 2 : index
    %173 = memref.load %arg9[%c2_41, %c2_42] : memref<3x3xf32, #tpu.memory_space<smem>>
    %174 = arith.mulf %173, %140 : f32
    %175 = arith.addf %172, %174 : f32
    %c0_43 = arith.constant 0 : index
    %c1_44 = arith.constant 1 : index
    %176 = memref.load %arg9[%c0_43, %c1_44] : memref<3x3xf32, #tpu.memory_space<smem>>
    %177 = arith.mulf %176, %149 : f32
    %c0_45 = arith.constant 0 : index
    %c2_46 = arith.constant 2 : index
    %178 = memref.load %arg9[%c0_45, %c2_46] : memref<3x3xf32, #tpu.memory_space<smem>>
    %179 = arith.mulf %178, %158 : f32
    %180 = arith.addf %177, %179 : f32
    %c1_47 = arith.constant 1 : index
    %c2_48 = arith.constant 2 : index
    %181 = memref.load %arg9[%c1_47, %c2_48] : memref<3x3xf32, #tpu.memory_space<smem>>
    %182 = arith.mulf %181, %167 : f32
    %183 = arith.addf %180, %182 : f32
    %cst_49 = arith.constant 2.000000e+00 : f32
    %184 = arith.mulf %cst_49, %183 : f32
    %185 = arith.addf %175, %184 : f32
    %c0_50 = arith.constant 0 : index
    %c0_51 = arith.constant 0 : index
    %186 = vector.load %arg5[%c0_50, %c0_51] : memref<256x256xbf16, #tpu.memory_space<vmem>>, vector<256x256xbf16>
    %c0_52 = arith.constant 0 : index
    %c0_53 = arith.constant 0 : index
    %187 = vector.load %arg6[%c0_52, %c0_53] : memref<1x128xf32, #tpu.memory_space<vmem>>, vector<1x128xf32>
    %c0_54 = arith.constant 0 : index
    %c0_55 = arith.constant 0 : index
    %188 = vector.load %arg7[%c0_54, %c0_55] : memref<1x128xf32, #tpu.memory_space<vmem>>, vector<1x128xf32>
    %189 = arith.truncf %41 : vector<3x8x256xf32> to vector<3x8x256xbf16>
    %190 = vector.shape_cast %189 : vector<3x8x256xbf16> to vector<24x256xbf16>
    %cst_56 = arith.constant dense<0.000000e+00> : vector<24x256xf32>
    %191 = tpu.matmul %190, %186, %cst_56 {dimension_numbers = #tpu.dot_dimension_numbers<[1], [0], [0], [1], [0, 0, 1, 1], [], []>} : vector<24x256xbf16>, vector<256x256xbf16>, vector<24x256xf32> -> vector<24x256xf32>
    %192 = vector.shape_cast %191 : vector<24x256xf32> to vector<3x8x256xf32>
    %193 = vector.extract_strided_slice %192 {offsets = [0, 0, 0], sizes = [3, 8, 128], strides = [1, 1, 1]} : vector<3x8x256xf32> to vector<3x8x128xf32>
    %194 = vector.extract_strided_slice %192 {offsets = [0, 0, 128], sizes = [3, 8, 128], strides = [1, 1, 1]} : vector<3x8x256xf32> to vector<3x8x128xf32>
    %195 = arith.mulf %193, %193 : vector<3x8x128xf32>
    %cst_57 = arith.constant dense<0.000000e+00> : vector<8x128xf32>
    %196 = vector.multi_reduction <add>, %195, %cst_57 [0] : vector<3x8x128xf32> to vector<8x128xf32>
    %197 = vector.shape_cast %196 : vector<8x128xf32> to vector<1x8x128xf32>
    %198 = math.sqrt %197 : vector<1x8x128xf32>
    %cst_58 = arith.constant 9.99999997E-7 : f32
    %199 = vector.broadcast %cst_58 : f32 to vector<1x8x128xf32>
    %200 = arith.addf %198, %199 : vector<1x8x128xf32>
    %201 = vector.shape_cast %187 : vector<1x128xf32> to vector<1x1x128xf32>
    %202 = vector.broadcast %201 : vector<1x1x128xf32> to vector<1x8x128xf32>
    %203 = arith.mulf %200, %202 : vector<1x8x128xf32>
    %204 = vector.shape_cast %188 : vector<1x128xf32> to vector<1x1x128xf32>
    %205 = vector.broadcast %204 : vector<1x1x128xf32> to vector<1x8x128xf32>
    %206 = arith.addf %203, %205 : vector<1x8x128xf32>
    %207 = arith.divf %206, %200 : vector<1x8x128xf32>
    %208 = vector.broadcast %207 : vector<1x8x128xf32> to vector<3x8x128xf32>
    %209 = arith.mulf %193, %208 : vector<3x8x128xf32>
    %210 = arith.mulf %209, %194 : vector<3x8x128xf32>
    %cst_59 = arith.constant dense<0.000000e+00> : vector<8x128xf32>
    %211 = vector.multi_reduction <add>, %210, %cst_59 [0] : vector<3x8x128xf32> to vector<8x128xf32>
    %212 = vector.shape_cast %211 : vector<8x128xf32> to vector<1x8x128xf32>
    %213 = arith.mulf %194, %194 : vector<3x8x128xf32>
    %cst_60 = arith.constant dense<0.000000e+00> : vector<8x128xf32>
    %214 = vector.multi_reduction <add>, %213, %cst_60 [0] : vector<3x8x128xf32> to vector<8x128xf32>
    %215 = vector.shape_cast %214 : vector<8x128xf32> to vector<1x8x128xf32>
    %cst_61 = arith.constant 9.99999997E-7 : f32
    %216 = vector.broadcast %cst_61 : f32 to vector<1x8x128xf32>
    %217 = arith.addf %215, %216 : vector<1x8x128xf32>
    %218 = arith.divf %212, %217 : vector<1x8x128xf32>
    %cst_62 = arith.constant 0.000000e+00 : f32
    %219 = vector.broadcast %cst_62 : f32 to vector<1x8x128xf32>
    %220 = arith.cmpf oge, %212, %219 : vector<1x8x128xf32>
    %221 = vector.broadcast %218 : vector<1x8x128xf32> to vector<3x8x128xf32>
    %222 = arith.mulf %221, %194 : vector<3x8x128xf32>
    %223 = arith.subf %209, %222 : vector<3x8x128xf32>
    %224 = vector.shape_cast %220 : vector<1x8x128xi1> to vector<1x8x128xi1>
    %225 = vector.broadcast %224 : vector<1x8x128xi1> to vector<3x8x128xi1>
    %226 = arith.select %225, %209, %223 : vector<3x8x128xi1>, vector<3x8x128xf32>
    %227 = vector.extract_strided_slice %193 {offsets = [0, 0, 0], sizes = [1, 8, 128], strides = [1, 1, 1]} : vector<3x8x128xf32> to vector<1x8x128xf32>
    %228 = vector.shape_cast %227 : vector<1x8x128xf32> to vector<8x128xf32>
    %229 = vector.extract_strided_slice %193 {offsets = [0, 0, 0], sizes = [1, 8, 128], strides = [1, 1, 1]} : vector<3x8x128xf32> to vector<1x8x128xf32>
    %230 = vector.shape_cast %229 : vector<1x8x128xf32> to vector<8x128xf32>
    %231 = arith.mulf %228, %230 : vector<8x128xf32>
    %232 = vector.shape_cast %231 : vector<8x128xf32> to vector<1x8x128xf32>
    %cst_63 = arith.constant dense<0.000000e+00> : vector<1xf32>
    %233 = vector.multi_reduction <add>, %232, %cst_63 [1, 2] : vector<1x8x128xf32> to vector<1xf32>
    %234 = vector.shape_cast %233 : vector<1xf32> to vector<1x1x1xf32>
    %235 = vector.extract %234[0, 0, 0] : f32 from vector<1x1x1xf32>
    %236 = vector.extract_strided_slice %193 {offsets = [1, 0, 0], sizes = [1, 8, 128], strides = [1, 1, 1]} : vector<3x8x128xf32> to vector<1x8x128xf32>
    %237 = vector.shape_cast %236 : vector<1x8x128xf32> to vector<8x128xf32>
    %238 = vector.extract_strided_slice %193 {offsets = [1, 0, 0], sizes = [1, 8, 128], strides = [1, 1, 1]} : vector<3x8x128xf32> to vector<1x8x128xf32>
    %239 = vector.shape_cast %238 : vector<1x8x128xf32> to vector<8x128xf32>
    %240 = arith.mulf %237, %239 : vector<8x128xf32>
    %241 = vector.shape_cast %240 : vector<8x128xf32> to vector<1x8x128xf32>
    %cst_64 = arith.constant dense<0.000000e+00> : vector<1xf32>
    %242 = vector.multi_reduction <add>, %241, %cst_64 [1, 2] : vector<1x8x128xf32> to vector<1xf32>
    %243 = vector.shape_cast %242 : vector<1xf32> to vector<1x1x1xf32>
    %244 = vector.extract %243[0, 0, 0] : f32 from vector<1x1x1xf32>
    %245 = vector.extract_strided_slice %193 {offsets = [2, 0, 0], sizes = [1, 8, 128], strides = [1, 1, 1]} : vector<3x8x128xf32> to vector<1x8x128xf32>
    %246 = vector.shape_cast %245 : vector<1x8x128xf32> to vector<8x128xf32>
    %247 = vector.extract_strided_slice %193 {offsets = [2, 0, 0], sizes = [1, 8, 128], strides = [1, 1, 1]} : vector<3x8x128xf32> to vector<1x8x128xf32>
    %248 = vector.shape_cast %247 : vector<1x8x128xf32> to vector<8x128xf32>
    %249 = arith.mulf %246, %248 : vector<8x128xf32>
    %250 = vector.shape_cast %249 : vector<8x128xf32> to vector<1x8x128xf32>
    %cst_65 = arith.constant dense<0.000000e+00> : vector<1xf32>
    %251 = vector.multi_reduction <add>, %250, %cst_65 [1, 2] : vector<1x8x128xf32> to vector<1xf32>
    %252 = vector.shape_cast %251 : vector<1xf32> to vector<1x1x1xf32>
    %253 = vector.extract %252[0, 0, 0] : f32 from vector<1x1x1xf32>
    %254 = vector.extract_strided_slice %193 {offsets = [0, 0, 0], sizes = [1, 8, 128], strides = [1, 1, 1]} : vector<3x8x128xf32> to vector<1x8x128xf32>
    %255 = vector.shape_cast %254 : vector<1x8x128xf32> to vector<8x128xf32>
    %256 = vector.extract_strided_slice %193 {offsets = [1, 0, 0], sizes = [1, 8, 128], strides = [1, 1, 1]} : vector<3x8x128xf32> to vector<1x8x128xf32>
    %257 = vector.shape_cast %256 : vector<1x8x128xf32> to vector<8x128xf32>
    %258 = arith.mulf %255, %257 : vector<8x128xf32>
    %259 = vector.shape_cast %258 : vector<8x128xf32> to vector<1x8x128xf32>
    %cst_66 = arith.constant dense<0.000000e+00> : vector<1xf32>
    %260 = vector.multi_reduction <add>, %259, %cst_66 [1, 2] : vector<1x8x128xf32> to vector<1xf32>
    %261 = vector.shape_cast %260 : vector<1xf32> to vector<1x1x1xf32>
    %262 = vector.extract %261[0, 0, 0] : f32 from vector<1x1x1xf32>
    %263 = vector.extract_strided_slice %193 {offsets = [0, 0, 0], sizes = [1, 8, 128], strides = [1, 1, 1]} : vector<3x8x128xf32> to vector<1x8x128xf32>
    %264 = vector.shape_cast %263 : vector<1x8x128xf32> to vector<8x128xf32>
    %265 = vector.extract_strided_slice %193 {offsets = [2, 0, 0], sizes = [1, 8, 128], strides = [1, 1, 1]} : vector<3x8x128xf32> to vector<1x8x128xf32>
    %266 = vector.shape_cast %265 : vector<1x8x128xf32> to vector<8x128xf32>
    %267 = arith.mulf %264, %266 : vector<8x128xf32>
    %268 = vector.shape_cast %267 : vector<8x128xf32> to vector<1x8x128xf32>
    %cst_67 = arith.constant dense<0.000000e+00> : vector<1xf32>
    %269 = vector.multi_reduction <add>, %268, %cst_67 [1, 2] : vector<1x8x128xf32> to vector<1xf32>
    %270 = vector.shape_cast %269 : vector<1xf32> to vector<1x1x1xf32>
    %271 = vector.extract %270[0, 0, 0] : f32 from vector<1x1x1xf32>
    %272 = vector.extract_strided_slice %193 {offsets = [1, 0, 0], sizes = [1, 8, 128], strides = [1, 1, 1]} : vector<3x8x128xf32> to vector<1x8x128xf32>
    %273 = vector.shape_cast %272 : vector<1x8x128xf32> to vector<8x128xf32>
    %274 = vector.extract_strided_slice %193 {offsets = [2, 0, 0], sizes = [1, 8, 128], strides = [1, 1, 1]} : vector<3x8x128xf32> to vector<1x8x128xf32>
    %275 = vector.shape_cast %274 : vector<1x8x128xf32> to vector<8x128xf32>
    %276 = arith.mulf %273, %275 : vector<8x128xf32>
    %277 = vector.shape_cast %276 : vector<8x128xf32> to vector<1x8x128xf32>
    %cst_68 = arith.constant dense<0.000000e+00> : vector<1xf32>
    %278 = vector.multi_reduction <add>, %277, %cst_68 [1, 2] : vector<1x8x128xf32> to vector<1xf32>
    %279 = vector.shape_cast %278 : vector<1xf32> to vector<1x1x1xf32>
    %280 = vector.extract %279[0, 0, 0] : f32 from vector<1x1x1xf32>
    %c0_69 = arith.constant 0 : index
    %c0_70 = arith.constant 0 : index
    %281 = memref.load %arg9[%c0_69, %c0_70] : memref<3x3xf32, #tpu.memory_space<smem>>
    %282 = arith.mulf %281, %235 : f32
    %c1_71 = arith.constant 1 : index
    %c1_72 = arith.constant 1 : index
    %283 = memref.load %arg9[%c1_71, %c1_72] : memref<3x3xf32, #tpu.memory_space<smem>>
    %284 = arith.mulf %283, %244 : f32
    %285 = arith.addf %282, %284 : f32
    %c2_73 = arith.constant 2 : index
    %c2_74 = arith.constant 2 : index
    %286 = memref.load %arg9[%c2_73, %c2_74] : memref<3x3xf32, #tpu.memory_space<smem>>
    %287 = arith.mulf %286, %253 : f32
    %288 = arith.addf %285, %287 : f32
    %c0_75 = arith.constant 0 : index
    %c1_76 = arith.constant 1 : index
    %289 = memref.load %arg9[%c0_75, %c1_76] : memref<3x3xf32, #tpu.memory_space<smem>>
    %290 = arith.mulf %289, %262 : f32
    %c0_77 = arith.constant 0 : index
    %c2_78 = arith.constant 2 : index
    %291 = memref.load %arg9[%c0_77, %c2_78] : memref<3x3xf32, #tpu.memory_space<smem>>
    %292 = arith.mulf %291, %271 : f32
    %293 = arith.addf %290, %292 : f32
    %c1_79 = arith.constant 1 : index
    %c2_80 = arith.constant 2 : index
    %294 = memref.load %arg9[%c1_79, %c2_80] : memref<3x3xf32, #tpu.memory_space<smem>>
    %295 = arith.mulf %294, %280 : f32
    %296 = arith.addf %293, %295 : f32
    %cst_81 = arith.constant 2.000000e+00 : f32
    %297 = arith.mulf %cst_81, %296 : f32
    %298 = arith.addf %288, %297 : f32
    %299 = vector.extract_strided_slice %226 {offsets = [0, 0, 0], sizes = [1, 8, 128], strides = [1, 1, 1]} : vector<3x8x128xf32> to vector<1x8x128xf32>
    %300 = vector.shape_cast %299 : vector<1x8x128xf32> to vector<8x128xf32>
    %301 = vector.extract_strided_slice %226 {offsets = [0, 0, 0], sizes = [1, 8, 128], strides = [1, 1, 1]} : vector<3x8x128xf32> to vector<1x8x128xf32>
    %302 = vector.shape_cast %301 : vector<1x8x128xf32> to vector<8x128xf32>
    %303 = arith.mulf %300, %302 : vector<8x128xf32>
    %304 = vector.shape_cast %303 : vector<8x128xf32> to vector<1x8x128xf32>
    %cst_82 = arith.constant dense<0.000000e+00> : vector<1xf32>
    %305 = vector.multi_reduction <add>, %304, %cst_82 [1, 2] : vector<1x8x128xf32> to vector<1xf32>
    %306 = vector.shape_cast %305 : vector<1xf32> to vector<1x1x1xf32>
    %307 = vector.extract %306[0, 0, 0] : f32 from vector<1x1x1xf32>
    %308 = vector.extract_strided_slice %226 {offsets = [1, 0, 0], sizes = [1, 8, 128], strides = [1, 1, 1]} : vector<3x8x128xf32> to vector<1x8x128xf32>
    %309 = vector.shape_cast %308 : vector<1x8x128xf32> to vector<8x128xf32>
    %310 = vector.extract_strided_slice %226 {offsets = [1, 0, 0], sizes = [1, 8, 128], strides = [1, 1, 1]} : vector<3x8x128xf32> to vector<1x8x128xf32>
    %311 = vector.shape_cast %310 : vector<1x8x128xf32> to vector<8x128xf32>
    %312 = arith.mulf %309, %311 : vector<8x128xf32>
    %313 = vector.shape_cast %312 : vector<8x128xf32> to vector<1x8x128xf32>
    %cst_83 = arith.constant dense<0.000000e+00> : vector<1xf32>
    %314 = vector.multi_reduction <add>, %313, %cst_83 [1, 2] : vector<1x8x128xf32> to vector<1xf32>
    %315 = vector.shape_cast %314 : vector<1xf32> to vector<1x1x1xf32>
    %316 = vector.extract %315[0, 0, 0] : f32 from vector<1x1x1xf32>
    %317 = vector.extract_strided_slice %226 {offsets = [2, 0, 0], sizes = [1, 8, 128], strides = [1, 1, 1]} : vector<3x8x128xf32> to vector<1x8x128xf32>
    %318 = vector.shape_cast %317 : vector<1x8x128xf32> to vector<8x128xf32>
    %319 = vector.extract_strided_slice %226 {offsets = [2, 0, 0], sizes = [1, 8, 128], strides = [1, 1, 1]} : vector<3x8x128xf32> to vector<1x8x128xf32>
    %320 = vector.shape_cast %319 : vector<1x8x128xf32> to vector<8x128xf32>
    %321 = arith.mulf %318, %320 : vector<8x128xf32>
    %322 = vector.shape_cast %321 : vector<8x128xf32> to vector<1x8x128xf32>
    %cst_84 = arith.constant dense<0.000000e+00> : vector<1xf32>
    %323 = vector.multi_reduction <add>, %322, %cst_84 [1, 2] : vector<1x8x128xf32> to vector<1xf32>
    %324 = vector.shape_cast %323 : vector<1xf32> to vector<1x1x1xf32>
    %325 = vector.extract %324[0, 0, 0] : f32 from vector<1x1x1xf32>
    %326 = vector.extract_strided_slice %226 {offsets = [0, 0, 0], sizes = [1, 8, 128], strides = [1, 1, 1]} : vector<3x8x128xf32> to vector<1x8x128xf32>
    %327 = vector.shape_cast %326 : vector<1x8x128xf32> to vector<8x128xf32>
    %328 = vector.extract_strided_slice %226 {offsets = [1, 0, 0], sizes = [1, 8, 128], strides = [1, 1, 1]} : vector<3x8x128xf32> to vector<1x8x128xf32>
    %329 = vector.shape_cast %328 : vector<1x8x128xf32> to vector<8x128xf32>
    %330 = arith.mulf %327, %329 : vector<8x128xf32>
    %331 = vector.shape_cast %330 : vector<8x128xf32> to vector<1x8x128xf32>
    %cst_85 = arith.constant dense<0.000000e+00> : vector<1xf32>
    %332 = vector.multi_reduction <add>, %331, %cst_85 [1, 2] : vector<1x8x128xf32> to vector<1xf32>
    %333 = vector.shape_cast %332 : vector<1xf32> to vector<1x1x1xf32>
    %334 = vector.extract %333[0, 0, 0] : f32 from vector<1x1x1xf32>
    %335 = vector.extract_strided_slice %226 {offsets = [0, 0, 0], sizes = [1, 8, 128], strides = [1, 1, 1]} : vector<3x8x128xf32> to vector<1x8x128xf32>
    %336 = vector.shape_cast %335 : vector<1x8x128xf32> to vector<8x128xf32>
    %337 = vector.extract_strided_slice %226 {offsets = [2, 0, 0], sizes = [1, 8, 128], strides = [1, 1, 1]} : vector<3x8x128xf32> to vector<1x8x128xf32>
    %338 = vector.shape_cast %337 : vector<1x8x128xf32> to vector<8x128xf32>
    %339 = arith.mulf %336, %338 : vector<8x128xf32>
    %340 = vector.shape_cast %339 : vector<8x128xf32> to vector<1x8x128xf32>
    %cst_86 = arith.constant dense<0.000000e+00> : vector<1xf32>
    %341 = vector.multi_reduction <add>, %340, %cst_86 [1, 2] : vector<1x8x128xf32> to vector<1xf32>
    %342 = vector.shape_cast %341 : vector<1xf32> to vector<1x1x1xf32>
    %343 = vector.extract %342[0, 0, 0] : f32 from vector<1x1x1xf32>
    %344 = vector.extract_strided_slice %226 {offsets = [1, 0, 0], sizes = [1, 8, 128], strides = [1, 1, 1]} : vector<3x8x128xf32> to vector<1x8x128xf32>
    %345 = vector.shape_cast %344 : vector<1x8x128xf32> to vector<8x128xf32>
    %346 = vector.extract_strided_slice %226 {offsets = [2, 0, 0], sizes = [1, 8, 128], strides = [1, 1, 1]} : vector<3x8x128xf32> to vector<1x8x128xf32>
    %347 = vector.shape_cast %346 : vector<1x8x128xf32> to vector<8x128xf32>
    %348 = arith.mulf %345, %347 : vector<8x128xf32>
    %349 = vector.shape_cast %348 : vector<8x128xf32> to vector<1x8x128xf32>
    %cst_87 = arith.constant dense<0.000000e+00> : vector<1xf32>
    %350 = vector.multi_reduction <add>, %349, %cst_87 [1, 2] : vector<1x8x128xf32> to vector<1xf32>
    %351 = vector.shape_cast %350 : vector<1xf32> to vector<1x1x1xf32>
    %352 = vector.extract %351[0, 0, 0] : f32 from vector<1x1x1xf32>
    %c0_88 = arith.constant 0 : index
    %c0_89 = arith.constant 0 : index
    %353 = memref.load %arg9[%c0_88, %c0_89] : memref<3x3xf32, #tpu.memory_space<smem>>
    %354 = arith.mulf %353, %307 : f32
    %c1_90 = arith.constant 1 : index
    %c1_91 = arith.constant 1 : index
    %355 = memref.load %arg9[%c1_90, %c1_91] : memref<3x3xf32, #tpu.memory_space<smem>>
    %356 = arith.mulf %355, %316 : f32
    %357 = arith.addf %354, %356 : f32
    %c2_92 = arith.constant 2 : index
    %c2_93 = arith.constant 2 : index
    %358 = memref.load %arg9[%c2_92, %c2_93] : memref<3x3xf32, #tpu.memory_space<smem>>
    %359 = arith.mulf %358, %325 : f32
    %360 = arith.addf %357, %359 : f32
    %c0_94 = arith.constant 0 : index
    %c1_95 = arith.constant 1 : index
    %361 = memref.load %arg9[%c0_94, %c1_95] : memref<3x3xf32, #tpu.memory_space<smem>>
    %362 = arith.mulf %361, %334 : f32
    %c0_96 = arith.constant 0 : index
    %c2_97 = arith.constant 2 : index
    %363 = memref.load %arg9[%c0_96, %c2_97] : memref<3x3xf32, #tpu.memory_space<smem>>
    %364 = arith.mulf %363, %343 : f32
    %365 = arith.addf %362, %364 : f32
    %c1_98 = arith.constant 1 : index
    %c2_99 = arith.constant 2 : index
    %366 = memref.load %arg9[%c1_98, %c2_99] : memref<3x3xf32, #tpu.memory_space<smem>>
    %367 = arith.mulf %366, %352 : f32
    %368 = arith.addf %365, %367 : f32
    %cst_100 = arith.constant 2.000000e+00 : f32
    %369 = arith.mulf %cst_100, %368 : f32
    %370 = arith.addf %360, %369 : f32
    %c0_101 = arith.constant 0 : index
    %c0_102 = arith.constant 0 : index
    %371 = vector.load %arg8[%c0_101, %c0_102] : memref<128x16xbf16, #tpu.memory_space<vmem>>, vector<128x16xbf16>
    %372 = arith.truncf %226 : vector<3x8x128xf32> to vector<3x8x128xbf16>
    %373 = vector.shape_cast %372 : vector<3x8x128xbf16> to vector<24x128xbf16>
    %cst_103 = arith.constant dense<0.000000e+00> : vector<24x16xf32>
    %374 = tpu.matmul %373, %371, %cst_103 {dimension_numbers = #tpu.dot_dimension_numbers<[1], [0], [0], [1], [0, 0, 1, 1], [], []>} : vector<24x128xbf16>, vector<128x16xbf16>, vector<24x16xf32> -> vector<24x16xf32>
    %375 = vector.shape_cast %374 : vector<24x16xf32> to vector<3x8x16xf32>
    %376 = vector.extract_strided_slice %375 {offsets = [0, 0, 0], sizes = [1, 8, 16], strides = [1, 1, 1]} : vector<3x8x16xf32> to vector<1x8x16xf32>
    %377 = vector.shape_cast %376 : vector<1x8x16xf32> to vector<8x16xf32>
    %378 = vector.extract_strided_slice %375 {offsets = [0, 0, 0], sizes = [1, 8, 16], strides = [1, 1, 1]} : vector<3x8x16xf32> to vector<1x8x16xf32>
    %379 = vector.shape_cast %378 : vector<1x8x16xf32> to vector<8x16xf32>
    %380 = arith.mulf %377, %379 : vector<8x16xf32>
    %381 = vector.shape_cast %380 : vector<8x16xf32> to vector<1x8x16xf32>
    %cst_104 = arith.constant dense<0.000000e+00> : vector<1xf32>
    %382 = vector.multi_reduction <add>, %381, %cst_104 [1, 2] : vector<1x8x16xf32> to vector<1xf32>
    %383 = vector.shape_cast %382 : vector<1xf32> to vector<1x1x1xf32>
    %384 = vector.extract %383[0, 0, 0] : f32 from vector<1x1x1xf32>
    %385 = vector.extract_strided_slice %375 {offsets = [1, 0, 0], sizes = [1, 8, 16], strides = [1, 1, 1]} : vector<3x8x16xf32> to vector<1x8x16xf32>
    %386 = vector.shape_cast %385 : vector<1x8x16xf32> to vector<8x16xf32>
    %387 = vector.extract_strided_slice %375 {offsets = [1, 0, 0], sizes = [1, 8, 16], strides = [1, 1, 1]} : vector<3x8x16xf32> to vector<1x8x16xf32>
    %388 = vector.shape_cast %387 : vector<1x8x16xf32> to vector<8x16xf32>
    %389 = arith.mulf %386, %388 : vector<8x16xf32>
    %390 = vector.shape_cast %389 : vector<8x16xf32> to vector<1x8x16xf32>
    %cst_105 = arith.constant dense<0.000000e+00> : vector<1xf32>
    %391 = vector.multi_reduction <add>, %390, %cst_105 [1, 2] : vector<1x8x16xf32> to vector<1xf32>
    %392 = vector.shape_cast %391 : vector<1xf32> to vector<1x1x1xf32>
    %393 = vector.extract %392[0, 0, 0] : f32 from vector<1x1x1xf32>
    %394 = vector.extract_strided_slice %375 {offsets = [2, 0, 0], sizes = [1, 8, 16], strides = [1, 1, 1]} : vector<3x8x16xf32> to vector<1x8x16xf32>
    %395 = vector.shape_cast %394 : vector<1x8x16xf32> to vector<8x16xf32>
    %396 = vector.extract_strided_slice %375 {offsets = [2, 0, 0], sizes = [1, 8, 16], strides = [1, 1, 1]} : vector<3x8x16xf32> to vector<1x8x16xf32>
    %397 = vector.shape_cast %396 : vector<1x8x16xf32> to vector<8x16xf32>
    %398 = arith.mulf %395, %397 : vector<8x16xf32>
    %399 = vector.shape_cast %398 : vector<8x16xf32> to vector<1x8x16xf32>
    %cst_106 = arith.constant dense<0.000000e+00> : vector<1xf32>
    %400 = vector.multi_reduction <add>, %399, %cst_106 [1, 2] : vector<1x8x16xf32> to vector<1xf32>
    %401 = vector.shape_cast %400 : vector<1xf32> to vector<1x1x1xf32>
    %402 = vector.extract %401[0, 0, 0] : f32 from vector<1x1x1xf32>
    %403 = vector.extract_strided_slice %375 {offsets = [0, 0, 0], sizes = [1, 8, 16], strides = [1, 1, 1]} : vector<3x8x16xf32> to vector<1x8x16xf32>
    %404 = vector.shape_cast %403 : vector<1x8x16xf32> to vector<8x16xf32>
    %405 = vector.extract_strided_slice %375 {offsets = [1, 0, 0], sizes = [1, 8, 16], strides = [1, 1, 1]} : vector<3x8x16xf32> to vector<1x8x16xf32>
    %406 = vector.shape_cast %405 : vector<1x8x16xf32> to vector<8x16xf32>
    %407 = arith.mulf %404, %406 : vector<8x16xf32>
    %408 = vector.shape_cast %407 : vector<8x16xf32> to vector<1x8x16xf32>
    %cst_107 = arith.constant dense<0.000000e+00> : vector<1xf32>
    %409 = vector.multi_reduction <add>, %408, %cst_107 [1, 2] : vector<1x8x16xf32> to vector<1xf32>
    %410 = vector.shape_cast %409 : vector<1xf32> to vector<1x1x1xf32>
    %411 = vector.extract %410[0, 0, 0] : f32 from vector<1x1x1xf32>
    %412 = vector.extract_strided_slice %375 {offsets = [0, 0, 0], sizes = [1, 8, 16], strides = [1, 1, 1]} : vector<3x8x16xf32> to vector<1x8x16xf32>
    %413 = vector.shape_cast %412 : vector<1x8x16xf32> to vector<8x16xf32>
    %414 = vector.extract_strided_slice %375 {offsets = [2, 0, 0], sizes = [1, 8, 16], strides = [1, 1, 1]} : vector<3x8x16xf32> to vector<1x8x16xf32>
    %415 = vector.shape_cast %414 : vector<1x8x16xf32> to vector<8x16xf32>
    %416 = arith.mulf %413, %415 : vector<8x16xf32>
    %417 = vector.shape_cast %416 : vector<8x16xf32> to vector<1x8x16xf32>
    %cst_108 = arith.constant dense<0.000000e+00> : vector<1xf32>
    %418 = vector.multi_reduction <add>, %417, %cst_108 [1, 2] : vector<1x8x16xf32> to vector<1xf32>
    %419 = vector.shape_cast %418 : vector<1xf32> to vector<1x1x1xf32>
    %420 = vector.extract %419[0, 0, 0] : f32 from vector<1x1x1xf32>
    %421 = vector.extract_strided_slice %375 {offsets = [1, 0, 0], sizes = [1, 8, 16], strides = [1, 1, 1]} : vector<3x8x16xf32> to vector<1x8x16xf32>
    %422 = vector.shape_cast %421 : vector<1x8x16xf32> to vector<8x16xf32>
    %423 = vector.extract_strided_slice %375 {offsets = [2, 0, 0], sizes = [1, 8, 16], strides = [1, 1, 1]} : vector<3x8x16xf32> to vector<1x8x16xf32>
    %424 = vector.shape_cast %423 : vector<1x8x16xf32> to vector<8x16xf32>
    %425 = arith.mulf %422, %424 : vector<8x16xf32>
    %426 = vector.shape_cast %425 : vector<8x16xf32> to vector<1x8x16xf32>
    %cst_109 = arith.constant dense<0.000000e+00> : vector<1xf32>
    %427 = vector.multi_reduction <add>, %426, %cst_109 [1, 2] : vector<1x8x16xf32> to vector<1xf32>
    %428 = vector.shape_cast %427 : vector<1xf32> to vector<1x1x1xf32>
    %429 = vector.extract %428[0, 0, 0] : f32 from vector<1x1x1xf32>
    %c0_110 = arith.constant 0 : index
    %c0_111 = arith.constant 0 : index
    %430 = memref.load %arg9[%c0_110, %c0_111] : memref<3x3xf32, #tpu.memory_space<smem>>
    %431 = arith.mulf %430, %384 : f32
    %c1_112 = arith.constant 1 : index
    %c1_113 = arith.constant 1 : index
    %432 = memref.load %arg9[%c1_112, %c1_113] : memref<3x3xf32, #tpu.memory_space<smem>>
    %433 = arith.mulf %432, %393 : f32
    %434 = arith.addf %431, %433 : f32
    %c2_114 = arith.constant 2 : index
    %c2_115 = arith.constant 2 : index
    %435 = memref.load %arg9[%c2_114, %c2_115] : memref<3x3xf32, #tpu.memory_space<smem>>
    %436 = arith.mulf %435, %402 : f32
    %437 = arith.addf %434, %436 : f32
    %c0_116 = arith.constant 0 : index
    %c1_117 = arith.constant 1 : index
    %438 = memref.load %arg9[%c0_116, %c1_117] : memref<3x3xf32, #tpu.memory_space<smem>>
    %439 = arith.mulf %438, %411 : f32
    %c0_118 = arith.constant 0 : index
    %c2_119 = arith.constant 2 : index
    %440 = memref.load %arg9[%c0_118, %c2_119] : memref<3x3xf32, #tpu.memory_space<smem>>
    %441 = arith.mulf %440, %420 : f32
    %442 = arith.addf %439, %441 : f32
    %c1_120 = arith.constant 1 : index
    %c2_121 = arith.constant 2 : index
    %443 = memref.load %arg9[%c1_120, %c2_121] : memref<3x3xf32, #tpu.memory_space<smem>>
    %444 = arith.mulf %443, %429 : f32
    %445 = arith.addf %442, %444 : f32
    %cst_122 = arith.constant 2.000000e+00 : f32
    %446 = arith.mulf %cst_122, %445 : f32
    %447 = arith.addf %437, %446 : f32
    %c0_123 = arith.constant 0 : index
    %c0_124 = arith.constant 0 : index
    %c0_125 = arith.constant 0 : index
    %448 = vector.load %arg10[%c0_123, %c0_124, %c0_125] : memref<3x8x16xf32, #tpu.memory_space<vmem>>, vector<3x8x16xf32>
    tpu.vector_store %arg10[%c0_123, %c0_124, %c0_125], %375 {strides = array<i32>} : memref<3x8x16xf32, #tpu.memory_space<vmem>>, vector<3x8x16xf32>,
    %449 = arith.addf %113, %298 : f32
    %450 = arith.addf %449, %447 : f32
    %451 = arith.addf %185, %370 : f32
    %452 = arith.addf %451, %447 : f32
    %453 = tpu.iota {dimensions = array<i32: 0>} : vector<8x128xi32>
    %454 = tpu.iota {dimensions = array<i32: 1>} : vector<8x128xi32>
    %cst_126 = arith.constant 0.000000e+00 : f32
    %455 = vector.broadcast %cst_126 : f32 to vector<8x128xf32>
    %c0_i32 = arith.constant 0 : i32
    %456 = vector.broadcast %c0_i32 : i32 to vector<8x128xi32>
    %457 = arith.cmpi eq, %453, %456 : vector<8x128xi32>
    %c0_i32_127 = arith.constant 0 : i32
    %458 = vector.broadcast %c0_i32_127 : i32 to vector<8x128xi32>
    %459 = arith.cmpi eq, %454, %458 : vector<8x128xi32>
    %460 = arith.andi %457, %459 : vector<8x128xi1>
    %461 = vector.broadcast %450 : f32 to vector<8x128xf32>
    %462 = arith.select %460, %461, %455 : vector<8x128xi1>, vector<8x128xf32>
    %c0_i32_128 = arith.constant 0 : i32
    %463 = vector.broadcast %c0_i32_128 : i32 to vector<8x128xi32>
    %464 = arith.cmpi eq, %453, %463 : vector<8x128xi32>
    %c1_i32 = arith.constant 1 : i32
    %465 = vector.broadcast %c1_i32 : i32 to vector<8x128xi32>
    %466 = arith.cmpi eq, %454, %465 : vector<8x128xi32>
    %467 = arith.andi %464, %466 : vector<8x128xi1>
    %468 = vector.broadcast %452 : f32 to vector<8x128xf32>
    %469 = arith.select %467, %468, %462 : vector<8x128xi1>, vector<8x128xf32>
    %c0_129 = arith.constant 0 : index
    %c0_130 = arith.constant 0 : index
    %470 = vector.load %arg11[%c0_129, %c0_130] : memref<8x128xf32, #tpu.memory_space<vmem>>, vector<8x128xf32>
    tpu.vector_store %arg11[%c0_129, %c0_130], %469 {strides = array<i32>} : memref<8x128xf32, #tpu.memory_space<vmem>>, vector<8x128xf32>,
    return
  }
  func.func @transform_0(%arg0: i32) -> (i32, i32, i32) {
    %c0_i32 = arith.constant 0 : i32
    %c0_i32_0 = arith.constant 0 : i32
    %c0_i32_1 = arith.constant 0 : i32
    %c0_i32_2 = arith.constant 0 : i32
    return %c0_i32, %c0_i32_0, %c0_i32_1 : i32, i32, i32
  }
  func.func @transform_1(%arg0: i32) -> (i32, i32) {
    %c0_i32 = arith.constant 0 : i32
    %c0_i32_0 = arith.constant 0 : i32
    %c0_i32_1 = arith.constant 0 : i32
    return %c0_i32, %c0_i32_0 : i32, i32
  }
  func.func @transform_2(%arg0: i32) -> (i32, i32) {
    %c0_i32 = arith.constant 0 : i32
    %c0_i32_0 = arith.constant 0 : i32
    %c0_i32_1 = arith.constant 0 : i32
    return %c0_i32, %c0_i32_0 : i32, i32
  }
  func.func @transform_3(%arg0: i32) -> (i32, i32) {
    %c0_i32 = arith.constant 0 : i32
    %c0_i32_0 = arith.constant 0 : i32
    %c0_i32_1 = arith.constant 0 : i32
    return %c0_i32, %c0_i32_0 : i32, i32
  }
  func.func @transform_4(%arg0: i32) -> (i32, i32) {
    %c0_i32 = arith.constant 0 : i32
    %c0_i32_0 = arith.constant 0 : i32
    %c0_i32_1 = arith.constant 0 : i32
    return %c0_i32, %c0_i32_0 : i32, i32
  }
  func.func @transform_5(%arg0: i32) -> (i32, i32) {
    %c0_i32 = arith.constant 0 : i32
    %c0_i32_0 = arith.constant 0 : i32
    %c0_i32_1 = arith.constant 0 : i32
    return %c0_i32, %c0_i32_0 : i32, i32
  }
  func.func @transform_6(%arg0: i32) -> (i32, i32) {
    %c0_i32 = arith.constant 0 : i32
    %c0_i32_0 = arith.constant 0 : i32
    %c0_i32_1 = arith.constant 0 : i32
    return %c0_i32, %c0_i32_0 : i32, i32
  }
  func.func @transform_7(%arg0: i32) -> (i32, i32) {
    %c0_i32 = arith.constant 0 : i32
    %c0_i32_0 = arith.constant 0 : i32
    %c0_i32_1 = arith.constant 0 : i32
    return %c0_i32, %c0_i32_0 : i32, i32
  }
  func.func @transform_8(%arg0: i32) -> (i32, i32) {
    %c0_i32 = arith.constant 0 : i32
    %c0_i32_0 = arith.constant 0 : i32
    %c0_i32_1 = arith.constant 0 : i32
    return %c0_i32, %c0_i32_0 : i32, i32
  }
  func.func @transform_9(%arg0: i32) -> (i32, i32, i32) {
    %c0_i32 = arith.constant 0 : i32
    %c0_i32_0 = arith.constant 0 : i32
    %c0_i32_1 = arith.constant 0 : i32
    %c0_i32_2 = arith.constant 0 : i32
    return %c0_i32, %c0_i32_0, %c0_i32_1 : i32, i32, i32
  }
  func.func @transform_10(%arg0: i32) -> (i32, i32) {
    %c0_i32 = arith.constant 0 : i32
    %c0_i32_0 = arith.constant 0 : i32
    %c0_i32_1 = arith.constant 0 : i32
    return %c0_i32, %c0_i32_0 : i32, i32
  }
}

</mosaic_0001>

<llo_original>
// kernel: stnkd_dual_forward.2
$region0: #{stnkd_dual_forward.2}
  #allocation0 [shape = 'u32[]', space=smem, size = 0x4, offset = 0x4, fixed_abs, tag = 'smem constant byte address 0x4 - core index']
  #allocation1 [shape = 'u32[144,128]{1,0:T(1,128)}', space=vmem, size = 0x12000, scoped, tag = 'internal scratch']
  %s0 = inlined_call_operand.vmem [shape: f32[3,32,16], index: 0, kind: input, shape index: {}]
  %s1 = inlined_call_operand.vmem [shape: bf16[16,256], index: 1, kind: input, shape index: {}]
  %s2 = inlined_call_operand.vmem [shape: f32[1,128], index: 2, kind: input, shape index: {}]
  %s3 = inlined_call_operand.vmem [shape: f32[1,128], index: 3, kind: input, shape index: {}]
  %s4 = inlined_call_operand.vmem [shape: bf16[128,256], index: 4, kind: input, shape index: {}]
  %s5 = inlined_call_operand.vmem [shape: f32[1,128], index: 5, kind: input, shape index: {}]
  %s6 = inlined_call_operand.vmem [shape: f32[1,128], index: 6, kind: input, shape index: {}]
  %s7 = inlined_call_operand.vmem [shape: bf16[128,768], index: 7, kind: input, shape index: {}]
  %s8 = inlined_call_operand.vmem [shape: f32[1,384], index: 8, kind: input, shape index: {}]
  %s9 = inlined_call_operand.vmem [shape: f32[1,384], index: 9, kind: input, shape index: {}]
  %s10 = inlined_call_operand.vmem [shape: f32[3,3], index: 10, kind: input, shape index: {}]
  %s11 = inlined_call_operand.vmem [shape: f32[2,3,384], index: 11, kind: output, shape index: {0}]
  %s12 = inlined_call_operand.vmem [shape: f32[2,8,128], index: 12, kind: output, shape index: {1}]
  %13 = xla_tuple %s11, %s12
  %s14 = sld [smem:[#allocation0]]
  $region127: #{stnkd_dual_forward.2} parent=0
    _
  %s16 = ssub.s32 1, %s14
  %s17 = scalar_select 0, %s16, %s14
  $region1: #{stnkd_dual_forward.2} parent=0
    #allocation2 [shape = 'u8[49152]{0}', space=vmem, size = 0xc000, scoped, tag = 'input window, operand 0']
    #allocation3 [shape = 'u8[2048]{0}', space=smem, size = 0x800, scoped, tag = 'input window, operand 10, single buffered']
    #allocation4 [shape = 's32[2]{0}', space=sflag, size = 0x8, scoped, tag = 'scoped memory for stnkd_dual_forward.2']
    %18 = vsyncpa [#allocation4], 0
    loop: start=0, step=1, limit=4
    $region2: #{stnkd_dual_forward.2} parent=1 // loop_pre_header
      _
    $region3: #{stnkd_dual_forward.2} parent=1 // loop_header
      %s20 = sphi 0, %s24
      %p21 = scmp.ge.s32.totalorder %s20, 4
      %s30 = sphi 0, %s32
      %s33 = sphi 0, %s30
      %s34 = sphi 0, %s33
      %s50 = sphi 0, %s34
      %s54 = sphi 0, %s54
      %s56 = sphi 0, %s54
      %s57 = sphi 0, %s56
      %s71 = sphi 0, %s57
      %s75 = sphi 0, %s75
      %s77 = sphi 0, %s75
      %s78 = sphi 0, %s77
      %s92 = sphi 0, %s78
      %s96 = sphi 0, %s96
      %s98 = sphi 0, %s96
      %s99 = sphi 0, %s98
      %s113 = sphi 0, %s99
      %s117 = sphi 0, %s117
      %s119 = sphi 0, %s117
      %s120 = sphi 0, %s119
      %s134 = sphi 0, %s120
      %s138 = sphi 0, %s138
      %s140 = sphi 0, %s138
      %s141 = sphi 0, %s140
      %s155 = sphi 0, %s141
      %s159 = sphi 0, %s159
      %s161 = sphi 0, %s159
      %s162 = sphi 0, %s161
      %s176 = sphi 0, %s162
      %s180 = sphi 0, %s180
      %s182 = sphi 0, %s180
      %s183 = sphi 0, %s182
      %s197 = sphi 0, %s183
      %s201 = sphi 0, %s201
      %s203 = sphi 0, %s201
      %s204 = sphi 0, %s203
      %s218 = sphi 0, %s204
      %s222 = sphi 0, %s222
      %s224 = sphi 0, %s222
      %s225 = sphi 0, %s224
      %s239 = sphi 0, %s225
      %s243 = sphi 0, %s243
      %s245 = sphi 0, %s243
      %s246 = sphi 0, %s245
      %s260 = sphi 0, %s246
      %s266 = sphi 0, %s268
      %s269 = sphi 0, %s266
      %s270 = sphi 0, %s269
      %s286 = sphi 0, %s270
      %s292 = sphi 0, %s294
      %s295 = sphi 0, %s292
      %s296 = sphi 0, %s295
      %s312 = sphi 0, %s296
    $region4: #{stnkd_dual_forward.2} parent=1 // loop_header_branch
      %23 = sbr.rel (%p21) target = $region8
    $region5: #{stnkd_dual_forward.2} parent=1 // loop_body
      %s25 = ssub.s32 %s20, 1
      %s26 = ssub.s32 %s20, 2
      %s27 = sadd.s32 %s20, 1
      %s28 = ssub.s32 %s20, %s27
      %p29 = scmp.eq.s32.totalorder %s28, 0
      %s31 = sadd.s32 %s30, 1
      %s32 = scalar_select %p29, %s30, %s31
      %p35 = pneg %p29
      %p36 = scmp.eq.s32.totalorder %s20, 1
      %p37 = por %p35, %p36
      %p38 = scmp.ne.s32.totalorder %s30, %s33
      %p39 = scmp.eq.s32.totalorder %s20, 0
      %p40 = por %p38, %p39
      %p41 = scmp.ne.s32.totalorder %s30, %s33
      %p42 = scmp.eq.s32.totalorder %s25, 1
      %p43 = por %p41, %p42
      %p44 = scmp.ne.s32.totalorder %s33, %s34
      %p45 = scmp.eq.s32.totalorder %s25, 0
      %p46 = por %p44, %p45
      %p47 = scmp.ne.s32.totalorder %s33, %s34
      %p48 = scmp.eq.s32.totalorder %s26, 1
      %p49 = por %p47, %p48
      %p51 = scmp.ne.s32.totalorder %s34, %s50
      %p52 = scmp.eq.s32.totalorder %s26, 0
      %p53 = por %p51, %p52
      %s55 = sadd.s32 %s54, 1
      %p58 = scmp.eq.s32.totalorder %s20, 1
      %p59 = scmp.ne.s32.totalorder %s54, %s56
      %p60 = scmp.eq.s32.totalorder %s20, 0
      %p61 = por %p59, %p60
      %p62 = scmp.ne.s32.totalorder %s54, %s56
      %p63 = scmp.eq.s32.totalorder %s25, 1
      %p64 = por %p62, %p63
      %p65 = scmp.ne.s32.totalorder %s56, %s57
      %p66 = scmp.eq.s32.totalorder %s25, 0
      %p67 = por %p65, %p66
      %p68 = scmp.ne.s32.totalorder %s56, %s57
      %p69 = scmp.eq.s32.totalorder %s26, 1
      %p70 = por %p68, %p69
      %p72 = scmp.ne.s32.totalorder %s57, %s71
      %p73 = scmp.eq.s32.totalorder %s26, 0
      %p74 = por %p72, %p73
      %s76 = sadd.s32 %s75, 1
      %p79 = scmp.eq.s32.totalorder %s20, 1
      %p80 = scmp.ne.s32.totalorder %s75, %s77
      %p81 = scmp.eq.s32.totalorder %s20, 0
      %p82 = por %p80, %p81
      %p83 = scmp.ne.s32.totalorder %s75, %s77
      %p84 = scmp.eq.s32.totalorder %s25, 1
      %p85 = por %p83, %p84
      %p86 = scmp.ne.s32.totalorder %s77, %s78
      %p87 = scmp.eq.s32.totalorder %s25, 0
      %p88 = por %p86, %p87
      %p89 = scmp.ne.s32.totalorder %s77, %s78
      %p90 = scmp.eq.s32.totalorder %s26, 1
      %p91 = por %p89, %p90
      %p93 = scmp.ne.s32.totalorder %s78, %s92
      %p94 = scmp.eq.s32.totalorder %s26, 0
      %p95 = por %p93, %p94
      %s97 = sadd.s32 %s96, 1
      %p100 = scmp.eq.s32.totalorder %s20, 1
      %p101 = scmp.ne.s32.totalorder %s96, %s98
      %p102 = scmp.eq.s32.totalorder %s20, 0
      %p103 = por %p101, %p102
      %p104 = scmp.ne.s32.totalorder %s96, %s98
      %p105 = scmp.eq.s32.totalorder %s25, 1
      %p106 = por %p104, %p105
      %p107 = scmp.ne.s32.totalorder %s98, %s99
      %p108 = scmp.eq.s32.totalorder %s25, 0
      %p109 = por %p107, %p108
      %p110 = scmp.ne.s32.totalorder %s98, %s99
      %p111 = scmp.eq.s32.totalorder %s26, 1
      %p112 = por %p110, %p111
      %p114 = scmp.ne.s32.totalorder %s99, %s113
      %p115 = scmp.eq.s32.totalorder %s26, 0
      %p116 = por %p114, %p115
      %s118 = sadd.s32 %s117, 1
      %p121 = scmp.eq.s32.totalorder %s20, 1
      %p122 = scmp.ne.s32.totalorder %s117, %s119
      %p123 = scmp.eq.s32.totalorder %s20, 0
      %p124 = por %p122, %p123
      %p125 = scmp.ne.s32.totalorder %s117, %s119
      %p126 = scmp.eq.s32.totalorder %s25, 1
      %p127 = por %p125, %p126
      %p128 = scmp.ne.s32.totalorder %s119, %s120
      %p129 = scmp.eq.s32.totalorder %s25, 0
      %p130 = por %p128, %p129
      %p131 = scmp.ne.s32.totalorder %s119, %s120
      %p132 = scmp.eq.s32.totalorder %s26, 1
      %p133 = por %p131, %p132
      %p135 = scmp.ne.s32.totalorder %s120, %s134
      %p136 = scmp.eq.s32.totalorder %s26, 0
      %p137 = por %p135, %p136
      %s139 = sadd.s32 %s138, 1
      %p142 = scmp.eq.s32.totalorder %s20, 1
      %p143 = scmp.ne.s32.totalorder %s138, %s140
      %p144 = scmp.eq.s32.totalorder %s20, 0
      %p145 = por %p143, %p144
      %p146 = scmp.ne.s32.totalorder %s138, %s140
      %p147 = scmp.eq.s32.totalorder %s25, 1
      %p148 = por %p146, %p147
      %p149 = scmp.ne.s32.totalorder %s140, %s141
      %p150 = scmp.eq.s32.totalorder %s25, 0
      %p151 = por %p149, %p150
      %p152 = scmp.ne.s32.totalorder %s140, %s141
      %p153 = scmp.eq.s32.totalorder %s26, 1
      %p154 = por %p152, %p153
      %p156 = scmp.ne.s32.totalorder %s141, %s155
      %p157 = scmp.eq.s32.totalorder %s26, 0
      %p158 = por %p156, %p157
      %s160 = sadd.s32 %s159, 1
      %p163 = scmp.eq.s32.totalorder %s20, 1
      %p164 = scmp.ne.s32.totalorder %s159, %s161
      %p165 = scmp.eq.s32.totalorder %s20, 0
      %p166 = por %p164, %p165
      %p167 = scmp.ne.s32.totalorder %s159, %s161
      %p168 = scmp.eq.s32.totalorder %s25, 1
      %p169 = por %p167, %p168
      %p170 = scmp.ne.s32.totalorder %s161, %s162
      %p171 = scmp.eq.s32.totalorder %s25, 0
      %p172 = por %p170, %p171
      %p173 = scmp.ne.s32.totalorder %s161, %s162
      %p174 = scmp.eq.s32.totalorder %s26, 1
      %p175 = por %p173, %p174
      %p177 = scmp.ne.s32.totalorder %s162, %s176
      %p178 = scmp.eq.s32.totalorder %s26, 0
      %p179 = por %p177, %p178
      %s181 = sadd.s32 %s180, 1
      %p184 = scmp.eq.s32.totalorder %s20, 1
      %p185 = scmp.ne.s32.totalorder %s180, %s182
      %p186 = scmp.eq.s32.totalorder %s20, 0
      %p187 = por %p185, %p186
      %p188 = scmp.ne.s32.totalorder %s180, %s182
      %p189 = scmp.eq.s32.totalorder %s25, 1
      %p190 = por %p188, %p189
      %p191 = scmp.ne.s32.totalorder %s182, %s183
      %p192 = scmp.eq.s32.totalorder %s25, 0
      %p193 = por %p191, %p192
      %p194 = scmp.ne.s32.totalorder %s182, %s183
      %p195 = scmp.eq.s32.totalorder %s26, 1
      %p196 = por %p194, %p195
      %p198 = scmp.ne.s32.totalorder %s183, %s197
      %p199 = scmp.eq.s32.totalorder %s26, 0
      %p200 = por %p198, %p199
      %s202 = sadd.s32 %s201, 1
      %p205 = scmp.eq.s32.totalorder %s20, 1
      %p206 = scmp.ne.s32.totalorder %s201, %s203
      %p207 = scmp.eq.s32.totalorder %s20, 0
      %p208 = por %p206, %p207
      %p209 = scmp.ne.s32.totalorder %s201, %s203
      %p210 = scmp.eq.s32.totalorder %s25, 1
      %p211 = por %p209, %p210
      %p212 = scmp.ne.s32.totalorder %s203, %s204
      %p213 = scmp.eq.s32.totalorder %s25, 0
      %p214 = por %p212, %p213
      %p215 = scmp.ne.s32.totalorder %s203, %s204
      %p216 = scmp.eq.s32.totalorder %s26, 1
      %p217 = por %p215, %p216
      %p219 = scmp.ne.s32.totalorder %s204, %s218
      %p220 = scmp.eq.s32.totalorder %s26, 0
      %p221 = por %p219, %p220
      %s223 = sadd.s32 %s222, 1
      %p226 = scmp.eq.s32.totalorder %s20, 1
      %p227 = scmp.ne.s32.totalorder %s222, %s224
      %p228 = scmp.eq.s32.totalorder %s20, 0
      %p229 = por %p227, %p228
      %p230 = scmp.ne.s32.totalorder %s222, %s224
      %p231 = scmp.eq.s32.totalorder %s25, 1
      %p232 = por %p230, %p231
      %p233 = scmp.ne.s32.totalorder %s224, %s225
      %p234 = scmp.eq.s32.totalorder %s25, 0
      %p235 = por %p233, %p234
      %p236 = scmp.ne.s32.totalorder %s224, %s225
      %p237 = scmp.eq.s32.totalorder %s26, 1
      %p238 = por %p236, %p237
      %p240 = scmp.ne.s32.totalorder %s225, %s239
      %p241 = scmp.eq.s32.totalorder %s26, 0
      %p242 = por %p240, %p241
      %s244 = sadd.s32 %s243, 1
      %p247 = scmp.eq.s32.totalorder %s20, 1
      %p248 = scmp.ne.s32.totalorder %s243, %s245
      %p249 = scmp.eq.s32.totalorder %s20, 0
      %p250 = por %p248, %p249
      %p251 = scmp.ne.s32.totalorder %s243, %s245
      %p252 = scmp.eq.s32.totalorder %s25, 1
      %p253 = por %p251, %p252
      %p254 = scmp.ne.s32.totalorder %s245, %s246
      %p255 = scmp.eq.s32.totalorder %s25, 0
      %p256 = por %p254, %p255
      %p257 = scmp.ne.s32.totalorder %s245, %s246
      %p258 = scmp.eq.s32.totalorder %s26, 1
      %p259 = por %p257, %p258
      %p261 = scmp.ne.s32.totalorder %s246, %s260
      %p262 = scmp.eq.s32.totalorder %s26, 0
      %p263 = por %p261, %p262
      %s264 = ssub.s32 %s20, %s27
      %p265 = scmp.eq.s32.totalorder %s264, 0
      %s267 = sadd.s32 %s266, 1
      %s268 = scalar_select %p265, %s266, %s267
      %p271 = pneg %p265
      %p272 = scmp.eq.s32.totalorder %s20, 1
      %p273 = por %p271, %p272
      %p274 = scmp.ne.s32.totalorder %s266, %s269
      %p275 = scmp.eq.s32.totalorder %s20, 0
      %p276 = por %p274, %p275
      %p277 = scmp.ne.s32.totalorder %s266, %s269
      %p278 = scmp.eq.s32.totalorder %s25, 1
      %p279 = por %p277, %p278
      %p280 = scmp.ne.s32.totalorder %s269, %s270
      %p281 = scmp.eq.s32.totalorder %s25, 0
      %p282 = por %p280, %p281
      %p283 = scmp.ne.s32.totalorder %s269, %s270
      %p284 = scmp.eq.s32.totalorder %s26, 1
      %p285 = por %p283, %p284
      %p287 = scmp.ne.s32.totalorder %s270, %s286
      %p288 = scmp.eq.s32.totalorder %s26, 0
      %p289 = por %p287, %p288
      %s290 = ssub.s32 %s20, %s27
      %p291 = scmp.eq.s32.totalorder %s290, 0
      %s293 = sadd.s32 %s292, 1
      %s294 = scalar_select %p291, %s292, %s293
      %p297 = pneg %p291
      %p298 = scmp.eq.s32.totalorder %s20, 1
      %p299 = por %p297, %p298
      %p300 = scmp.ne.s32.totalorder %s292, %s295
      %p301 = scmp.eq.s32.totalorder %s20, 0
      %p302 = por %p300, %p301
      %p303 = scmp.ne.s32.totalorder %s292, %s295
      %p304 = scmp.eq.s32.totalorder %s25, 1
      %p305 = por %p303, %p304
      %p306 = scmp.ne.s32.totalorder %s295, %s296
      %p307 = scmp.eq.s32.totalorder %s25, 0
      %p308 = por %p306, %p307
      %p309 = scmp.ne.s32.totalorder %s295, %s296
      %p310 = scmp.eq.s32.totalorder %s26, 1
      %p311 = por %p309, %p310
      %p313 = scmp.ne.s32.totalorder %s296, %s312
      %p314 = scmp.eq.s32.totalorder %s26, 0
      %p315 = por %p313, %p314
      %p316 = scmp.le.s32.totalorder 1, %s20
      %p317 = scmp.lt.s32.totalorder %s20, 3
      %p318 = pnand %p316, %p317
      %p319 = pneg %p318
      // Predicated region
      $region9: #{stnkd_dual_forward.2} parent=5 // pred_check
        _
      $region10: #{stnkd_dual_forward.2} parent=5 // pred_check_branch
        %321 = sbr.rel (%p318) target = $region12
      $region11: #{stnkd_dual_forward.2} parent=5 // pred_region
        %s322 = ssub.s32 %s20, 1
        // Predicated region
        $region13: #{stnkd_dual_forward.2} parent=11 // pred_check
          %p323 = pneg %p67
        $region14: #{stnkd_dual_forward.2} parent=11 // pred_check_branch
          %325 = sbr.rel (%p323) target = $region16
        $region15: #{stnkd_dual_forward.2} parent=11 // pred_region
          _
        $region16: #{stnkd_dual_forward.2} parent=11 // pred_fallthru
          _
        // Predicated region
        $region17: #{stnkd_dual_forward.2} parent=11 // pred_check
          %p326 = pneg %p88
        $region18: #{stnkd_dual_forward.2} parent=11 // pred_check_branch
          %328 = sbr.rel (%p326) target = $region20
        $region19: #{stnkd_dual_forward.2} parent=11 // pred_region
          _
        $region20: #{stnkd_dual_forward.2} parent=11 // pred_fallthru
          _
        // Predicated region
        $region21: #{stnkd_dual_forward.2} parent=11 // pred_check
          %p329 = pneg %p109
        $region22: #{stnkd_dual_forward.2} parent=11 // pred_check_branch
          %331 = sbr.rel (%p329) target = $region24
        $region23: #{stnkd_dual_forward.2} parent=11 // pred_region
          _
        $region24: #{stnkd_dual_forward.2} parent=11 // pred_fallthru
          _
        // Predicated region
        $region25: #{stnkd_dual_forward.2} parent=11 // pred_check
          %p332 = pneg %p130
        $region26: #{stnkd_dual_forward.2} parent=11 // pred_check_branch
          %334 = sbr.rel (%p332) target = $region28
        $region27: #{stnkd_dual_forward.2} parent=11 // pred_region
          _
        $region28: #{stnkd_dual_forward.2} parent=11 // pred_fallthru
          _
        // Predicated region
        $region29: #{stnkd_dual_forward.2} parent=11 // pred_check
          %p335 = pneg %p151
        $region30: #{stnkd_dual_forward.2} parent=11 // pred_check_branch
          %337 = sbr.rel (%p335) target = $region32
        $region31: #{stnkd_dual_forward.2} parent=11 // pred_region
          _
        $region32: #{stnkd_dual_forward.2} parent=11 // pred_fallthru
          _
        // Predicated region
        $region33: #{stnkd_dual_forward.2} parent=11 // pred_check
          %p338 = pneg %p172
        $region34: #{stnkd_dual_forward.2} parent=11 // pred_check_branch
          %340 = sbr.rel (%p338) target = $region36
        $region35: #{stnkd_dual_forward.2} parent=11 // pred_region
          _
        $region36: #{stnkd_dual_forward.2} parent=11 // pred_fallthru
          _
        // Predicated region
        $region37: #{stnkd_dual_forward.2} parent=11 // pred_check
          %p341 = pneg %p193
        $region38: #{stnkd_dual_forward.2} parent=11 // pred_check_branch
          %343 = sbr.rel (%p341) target = $region40
        $region39: #{stnkd_dual_forward.2} parent=11 // pred_region
          _
        $region40: #{stnkd_dual_forward.2} parent=11 // pred_fallthru
          _
        // Predicated region
        $region41: #{stnkd_dual_forward.2} parent=11 // pred_check
          %p344 = pneg %p214
        $region42: #{stnkd_dual_forward.2} parent=11 // pred_check_branch
          %346 = sbr.rel (%p344) target = $region44
        $region43: #{stnkd_dual_forward.2} parent=11 // pred_region
          _
        $region44: #{stnkd_dual_forward.2} parent=11 // pred_fallthru
          _
        // Predicated region
        $region45: #{stnkd_dual_forward.2} parent=11 // pred_check
          %p347 = pneg %p235
        $region46: #{stnkd_dual_forward.2} parent=11 // pred_check_branch
          %349 = sbr.rel (%p347) target = $region48
        $region47: #{stnkd_dual_forward.2} parent=11 // pred_region
          _
        $region48: #{stnkd_dual_forward.2} parent=11 // pred_fallthru
          _
        // Predicated region
        $region49: #{stnkd_dual_forward.2} parent=11 // pred_check
          %p350 = pneg %p256
        $region50: #{stnkd_dual_forward.2} parent=11 // pred_check_branch
          %352 = sbr.rel (%p350) target = $region52
        $region51: #{stnkd_dual_forward.2} parent=11 // pred_region
          %s354 = ssub.s32 64, 64
          %355 = vsyncadd [#allocation4], %s354
          %s357 = sshll.u32 %s10, 4
          %s358 = int_to_ptr.vmem [resolvable:$true] %s357
          %360 = dma.vmem_to_smem %s358, 64, [#allocation3], [#allocation4]
        $region52: #{stnkd_dual_forward.2} parent=11 // pred_fallthru
          _
      $region12: #{stnkd_dual_forward.2} parent=5 // pred_fallthru
        _
      %p361 = scmp.lt.s32.totalorder %s20, 2
      // Predicated region
      $region53: #{stnkd_dual_forward.2} parent=5 // pred_check
        %p362 = pneg %p361
      $region54: #{stnkd_dual_forward.2} parent=5 // pred_check_branch
        %364 = sbr.rel (%p362) target = $region56
      $region55: #{stnkd_dual_forward.2} parent=5 // pred_region
        // Predicated region
        $region57: #{stnkd_dual_forward.2} parent=55 // pred_check
          %p365 = pneg %p40
        $region58: #{stnkd_dual_forward.2} parent=55 // pred_check_branch
          %367 = sbr.rel (%p365) target = $region60
        $region59: #{stnkd_dual_forward.2} parent=55 // pred_region
          %s368 = sand.u32 %s30, 1
          %s369 = sand.u32 %s30, 1
          %s370 = smul.addr %s369, 48
          %s371 = scalar_lea.vmem [#allocation2], %s370
          %s372 = smul.u32 2, %s20
          %s373 = smul.addr %s372, 8
          %s374 = scalar_lea.vmem %s0, %s373
          // Predicated region
          $region61: #{stnkd_dual_forward.2} parent=59 // pred_check
            _
          $region62: #{stnkd_dual_forward.2} parent=59 // pred_check_branch
            %376 = sbr.rel (0) target = $region64
          $region63: #{stnkd_dual_forward.2} parent=59 // pred_region
            // Predicated region
            $region65: #{stnkd_dual_forward.2} parent=63 // pred_check
              _
            $region66: #{stnkd_dual_forward.2} parent=63 // pred_check_branch
              %378 = sbr.rel (0) target = $region68
            $region67: #{stnkd_dual_forward.2} parent=63 // pred_region
              // Predicated region
              $region80: #{stnkd_dual_forward.2} parent=67 // pred_check
                _
              $region81: #{stnkd_dual_forward.2} parent=67 // pred_check_branch
                %403 = sbr.rel (0) target = $region83
              $region82: #{stnkd_dual_forward.2} parent=67 // pred_region
                loop: start=0, step=1, limit=1
                $region84: #{stnkd_dual_forward.2} parent=82 // loop_pre_header
                  _
                $region85: #{stnkd_dual_forward.2} parent=82 // loop_header
                  %s405 = sphi 0, %s409
                  %p406 = scmp.ge.s32.totalorder %s405, 1
                  %s410 = sphi %s374, %s374
                  %s411 = sphi %s371, %s371
                $region86: #{stnkd_dual_forward.2} parent=82 // loop_header_branch
                  %408 = sbr.rel (%p406) target = $region90
                $region87: #{stnkd_dual_forward.2} parent=82 // loop_body
                  %v412 = vld [vmem:[%s410] sm:$0xff]
                  %413 = vst [vmem:[%s411] sm:$0xff] %v412
                  %v414 = vld [vmem:[%s410 + $0x8] sm:$0xff]
                  %415 = vst [vmem:[%s411 + $0x8] sm:$0xff] %v414
                  %v416 = vld [vmem:[%s410 + $0x20] sm:$0xff]
                  %417 = vst [vmem:[%s411 + $0x10] sm:$0xff] %v416
                  %v418 = vld [vmem:[%s410 + $0x28] sm:$0xff]
                  %419 = vst [vmem:[%s411 + $0x18] sm:$0xff] %v418
                  %v420 = vld [vmem:[%s410 + $0x40] sm:$0xff]
                  %421 = vst [vmem:[%s411 + $0x20] sm:$0xff] %v420
                  %v422 = vld [vmem:[%s410 + $0x48] sm:$0xff]
                  %423 = vst [vmem:[%s411 + $0x28] sm:$0xff] %v422
                $region88: #{stnkd_dual_forward.2} parent=82 // loop_footer
                  %s409 = sadd.s32 1, %s405
                $region89: #{stnkd_dual_forward.2} parent=82 // loop_footer_branch
                  %404 = sbr.rel target = $region85
                $region90: #{stnkd_dual_forward.2} parent=82 // loop_exit
                  _
              $region83: #{stnkd_dual_forward.2} parent=67 // pred_fallthru
                _
              // Predicated region
              $region91: #{stnkd_dual_forward.2} parent=67 // pred_check
                _
              $region92: #{stnkd_dual_forward.2} parent=67 // pred_check_branch
                %425 = sbr.rel target = $region94
              $region93: #{stnkd_dual_forward.2} parent=67 // pred_region
                _
              $region94: #{stnkd_dual_forward.2} parent=67 // pred_fallthru
                _
            $region68: #{stnkd_dual_forward.2} parent=63 // pred_fallthru
              _
            // Predicated region
            $region69: #{stnkd_dual_forward.2} parent=63 // pred_check
              _
            $region70: #{stnkd_dual_forward.2} parent=63 // pred_check_branch
              %380 = sbr.rel target = $region72
            $region71: #{stnkd_dual_forward.2} parent=63 // pred_region
              loop: start=0, step=1, limit=1
              $region73: #{stnkd_dual_forward.2} parent=71 // loop_pre_header
                _
              $region74: #{stnkd_dual_forward.2} parent=71 // loop_header
                %s383 = sphi 0, %s387
                %p384 = scmp.ge.s32.totalorder %s383, 1
                %s388 = sphi %s374, %s374
                %s389 = sphi %s371, %s371
              $region75: #{stnkd_dual_forward.2} parent=71 // loop_header_branch
                %386 = sbr.rel (%p384) target = $region79
              $region76: #{stnkd_dual_forward.2} parent=71 // loop_body
                %v390 = vld [vmem:[%s388] sm:$0xff]
                %391 = vst [vmem:[%s389] sm:$0xff] %v390
                %v392 = vld [vmem:[%s388 + $0x8] sm:$0xff]
                %393 = vst [vmem:[%s389 + $0x8] sm:$0xff] %v392
                %v394 = vld [vmem:[%s388 + $0x20] sm:$0xff]
                %395 = vst [vmem:[%s389 + $0x10] sm:$0xff] %v394
                %v396 = vld [vmem:[%s388 + $0x28] sm:$0xff]
                %397 = vst [vmem:[%s389 + $0x18] sm:$0xff] %v396
                %v398 = vld [vmem:[%s388 + $0x40] sm:$0xff]
                %399 = vst [vmem:[%s389 + $0x20] sm:$0xff] %v398
                %v400 = vld [vmem:[%s388 + $0x48] sm:$0xff]
                %401 = vst [vmem:[%s389 + $0x28] sm:$0xff] %v400
              $region77: #{stnkd_dual_forward.2} parent=71 // loop_footer
                %s387 = sadd.s32 1, %s383
              $region78: #{stnkd_dual_forward.2} parent=71 // loop_footer_branch
                %382 = sbr.rel target = $region74
              $region79: #{stnkd_dual_forward.2} parent=71 // loop_exit
                _
            $region72: #{stnkd_dual_forward.2} parent=63 // pred_fallthru
              _
          $region64: #{stnkd_dual_forward.2} parent=59 // pred_fallthru
            _
          %426 = vnop
        $region60: #{stnkd_dual_forward.2} parent=55 // pred_fallthru
          _
      $region56: #{stnkd_dual_forward.2} parent=5 // pred_fallthru
        _
      %p427 = scmp.le.s32.totalorder 1, %s20
      %p428 = scmp.lt.s32.totalorder %s20, 3
      %p429 = pnand %p427, %p428
      %p430 = pneg %p429
      // Predicated region
      $region95: #{stnkd_dual_forward.2} parent=5 // pred_check
        _
      $region96: #{stnkd_dual_forward.2} parent=5 // pred_check_branch
        %432 = sbr.rel (%p429) target = $region98
      $region97: #{stnkd_dual_forward.2} parent=5 // pred_region
        %s433 = ssub.s32 %s20, 1
        %s434 = sand.u32 %s33, 1
        %s435 = sand.u32 %s33, 1
        %s436 = smul.addr %s435, 48
        %s437 = scalar_lea.vmem [#allocation2], %s436
        // Predicated region
        $region99: #{stnkd_dual_forward.2} parent=97 // pred_check
          %p438 = pneg %p46
        $region100: #{stnkd_dual_forward.2} parent=97 // pred_check_branch
          %440 = sbr.rel (%p438) target = $region102
        $region101: #{stnkd_dual_forward.2} parent=97 // pred_region
          _
        $region102: #{stnkd_dual_forward.2} parent=97 // pred_fallthru
          _
        // Predicated region
        $region103: #{stnkd_dual_forward.2} parent=97 // pred_check
          %p441 = pneg %p256
        $region104: #{stnkd_dual_forward.2} parent=97 // pred_check_branch
          %443 = sbr.rel (%p441) target = $region106
        $region105: #{stnkd_dual_forward.2} parent=97 // pred_region
          %444 = dma.done [#allocation4], 64
        $region106: #{stnkd_dual_forward.2} parent=97 // pred_fallthru
          _
        %445 = sfence
        %s446 = sand.u32 %s33, 1
        %s447 = sand.u32 %s33, 1
        %s448 = smul.addr %s447, 48
        %s449 = scalar_lea.vmem [#allocation2], %s448
        %p450 = pneg %p46
        %p451 = pneg %p43
        %p452 = pneg %p67
        %p453 = pneg %p64
        %p454 = pneg %p88
        %p455 = pneg %p85
        %p456 = pneg %p109
        %p457 = pneg %p106
        %p458 = pneg %p130
        %p459 = pneg %p127
        %p460 = pneg %p151
        %p461 = pneg %p148
        %p462 = pneg %p172
        %p463 = pneg %p169
        %p464 = pneg %p193
        %p465 = pneg %p190
        %p466 = pneg %p214
        %p467 = pneg %p211
        %p468 = pneg %p235
        %p469 = pneg %p232
        %p470 = pneg %p256
        %p471 = pneg %p253
        %p472 = pneg %p282
        %p473 = pneg %p279
        %p474 = scmp.lt.s32.totalorder %s25, 1
        %s475 = scalar_select %p474, %s25, 1
        %s476 = smul.addr %s475, 3
        %s477 = smul.addr %s476, 4
        %s478 = scalar_lea.vmem %s11, %s477
        %p479 = pneg %p308
        %p480 = pneg %p305
        %p481 = scmp.lt.s32.totalorder %s25, 1
        %s482 = scalar_select %p481, %s25, 1
        %s483 = smul.addr %s482, 8
        %s484 = scalar_lea.vmem %s12, %s483
        %s485 = smul.u32 2, %s25
        %p486 = scmp.lt.s32.totalorder %s25, 1
        %s487 = scalar_select %p486, %s25, 1
        %s488 = smul.addr %s487, 3
        %s489 = smul.addr %s488, 4
        %s490 = scalar_lea.vmem %s11, %s489
        %p491 = scmp.lt.s32.totalorder %s25, 1
        %s492 = scalar_select %p491, %s25, 1
        %s493 = smul.addr %s492, 8
        %s494 = scalar_lea.vmem %s12, %s493
        %v496 = vld [vmem:[%s437] sm:$0xff]
        %v497 = vld [vmem:[%s437 + $0x8] sm:$0xff]
        %v498 = vld [vmem:[%s437 + $0x10] sm:$0xff]
        %v499 = vld [vmem:[%s437 + $0x18] sm:$0xff]
        %v500 = vld [vmem:[%s437 + $0x20] sm:$0xff]
        %v501 = vld [vmem:[%s437 + $0x28] sm:$0xff]
        %v502 = vld [vmem:[%s1] sm:$0xff]
        %v503 = vld [vmem:[%s1 + $0x8] sm:$0xff]
        %v504 = vld [vmem:[%s2] sm:$0x1]
        %v505 = vld [vmem:[%s3] sm:$0x1]
        %v506 = vpack.c.bf16 %v497, %v496
        %v507 = vpack.c.bf16 %v499, %v498
        %v508 = vpack.c.bf16 %v501, %v500
        %v511 = vunpack.c.l.b16 %v502
        %v512 = vunpack.c.h.b16 %v502
        %v513 = vunpack.c.l.b16 %v503
        %v514 = vunpack.c.h.b16 %v503
        %v515 = vpack.c.b16 %v513, %v511
        %v516 = vpack.c.b16 %v514, %v512
        %vm519 = vcmask 130048
        %v521 = vsel %vm519, %v506, 0
        %v524 = vsel %vm519, %v507, 0
        %v527 = vsel %vm519, %v508, 0
        %529 = vmatprep.subr.bf16.mxu0 %v516
        %530 = vmatpush1.bf16.msra.mxu0 %v515
        %531 = vmatprep.subr.bf16.mxu0 0
        %532 = vmatpush1.bf16.msra.mxu0 0
        %533 = vmatprep.subr.bf16.mxu0 0
        %534 = vmatpush1.bf16.msra.mxu0 0
        %535 = vmatprep.subr.bf16.mxu0 0
        %536 = vmatpush1.bf16.msra.mxu0 0
        %537 = vmatprep.subr.bf16.mxu0 0
        %538 = vmatpush1.bf16.msra.mxu0 0
        %539 = vmatprep.subr.bf16.mxu0 0
        %540 = vmatpush1.bf16.msra.mxu0 0
        %541 = vmatprep.subr.bf16.mxu0 0
        %542 = vmatpush1.bf16.msra.mxu0 0
        %543 = vmatprep.subr.bf16.mxu0 0
        %544 = vmatpush1.bf16.msra.mxu0 0
        %545 = vmatprep.subr.bf16.mxu0 0
        %546 = vmatpush1.bf16.msra.mxu0 0
        %547 = vmatprep.subr.bf16.mxu0 0
        %548 = vmatpush1.bf16.msra.mxu0 0
        %549 = vmatprep.subr.bf16.mxu0 0
        %550 = vmatpush1.bf16.msra.mxu0 0
        %551 = vmatprep.subr.bf16.mxu0 0
        %552 = vmatpush1.bf16.msra.mxu0 0
        %553 = vmatprep.subr.bf16.mxu0 0
        %554 = vmatpush1.bf16.msra.mxu0 0
        %555 = vmatprep.subr.bf16.mxu0 0
        %556 = vmatpush1.bf16.msra.mxu0 0
        %557 = vmatprep.subr.bf16.mxu0 0
        %558 = vmatpush1.bf16.msra.mxu0 0
        %559 = vmatprep.subr.bf16.mxu0 0
        %560 = vmatpush1.bf16.msra.mxu0 0
        %561 = vmatprep.mubr.bf16.mxu0 0
        %562 = vmatmul.mubr.bf16.gmra.mrb[0].mxu0 %v521
        %v563 = vpop.f32.mrb[0].mxu0
        %v564 = vadd.f32 0.0, %v563
        %v565 = vpop.f32.mrb[0].mxu0
        %v566 = vadd.f32 0.0, %v565
        %v567 = vpop.f32.mrb[0].mxu0
        %v568 = vadd.f32 0.0, %v567
        %v569 = vpop.f32.mrb[0].mxu0
        %v570 = vadd.f32 0.0, %v569
        %571 = vmatprep.mubr.bf16.mxu0 0
        %572 = vmatmul.mubr.bf16.gmra.mrb[0].mxu0 %v524
        %v573 = vpop.f32.mrb[0].mxu0
        %v574 = vadd.f32 0.0, %v573
        %v575 = vpop.f32.mrb[0].mxu0
        %v576 = vadd.f32 0.0, %v575
        %v577 = vpop.f32.mrb[0].mxu0
        %v578 = vadd.f32 0.0, %v577
        %v579 = vpop.f32.mrb[0].mxu0
        %v580 = vadd.f32 0.0, %v579
        %581 = vmatprep.mubr.bf16.mxu0 0
        %582 = vmatmul.mubr.bf16.gmra.mrb[0].mxu0 %v527
        %v583 = vpop.f32.mrb[0].mxu0
        %v584 = vadd.f32 0.0, %v583
        %v585 = vpop.f32.mrb[0].mxu0
        %v586 = vadd.f32 0.0, %v585
        %v587 = vpop.f32.mrb[0].mxu0
        %v588 = vadd.f32 0.0, %v587
        %v589 = vpop.f32.mrb[0].mxu0
        %v590 = vadd.f32 0.0, %v589
        %591 = vdwg.mxu0
        %v592 = vmul.f32 %v564, %v564
        %v593 = vmul.f32 %v568, %v568
        %v594 = vmul.f32 %v574, %v574
        %v595 = vmul.f32 %v578, %v578
        %v596 = vmul.f32 %v584, %v584
        %v597 = vmul.f32 %v588, %v588
        %v598 = vadd.f32 %v592, %v594
        %v599 = vadd.f32 %v598, %v596
        %v600 = vadd.f32 %v593, %v595
        %v601 = vadd.f32 %v600, %v597
        %v602 = vrsqrt.pop %v599
        %v603 = vmul.f32 %v599, %v602
        %vm604 = vcmp.eq.f32.partialorder %v599, inf
        %v605 = vsel %vm604, %v599, %v603
        %vm606 = vcmp.eq.f32.partialorder %v599, 0.0
        %v607 = vand.u32 %v599, 2147483648
        %v608 = vsel %vm606, %v607, %v605
        %v609 = vrsqrt.pop %v601
        %v610 = vmul.f32 %v601, %v609
        %vm611 = vcmp.eq.f32.partialorder %v601, inf
        %v612 = vsel %vm611, %v601, %v610
        %vm613 = vcmp.eq.f32.partialorder %v601, 0.0
        %v614 = vand.u32 %v601, 2147483648
        %v615 = vsel %vm613, %v614, %v612
        %v616 = vadd.f32 %v608, 1e-06
        %v617 = vadd.f32 %v615, 1e-06
        %v619 = vlaneseq
        %v620 = vshrl.u32 %v619, 7
        %v621 = vsub.s32 0, %v620
        %v622 = vrot.slane %v504, %v621
        %v624 = vmul.f32 %v616, %v622
        %v625 = vmul.f32 %v617, %v622
        %v627 = vlaneseq
        %v628 = vshrl.u32 %v627, 7
        %v629 = vsub.s32 0, %v628
        %v630 = vrot.slane %v505, %v629
        %v632 = vadd.f32 %v624, %v630
        %v633 = vadd.f32 %v625, %v630
        %v634 = vrcp.pop %v616
        %v635 = vmul.f32 %v632, %v634
        %v636 = vrcp.pop %v617
        %v637 = vmul.f32 %v633, %v636
        %v638 = vmul.f32 %v564, %v635
        %v639 = vmul.f32 %v568, %v637
        %v640 = vmul.f32 %v574, %v635
        %v641 = vmul.f32 %v578, %v637
        %v642 = vmul.f32 %v584, %v635
        %v643 = vmul.f32 %v588, %v637
        %v644 = vmul.f32 %v638, %v566
        %v645 = vmul.f32 %v639, %v570
        %v646 = vmul.f32 %v640, %v576
        %v647 = vmul.f32 %v641, %v580
        %v648 = vmul.f32 %v642, %v586
        %v649 = vmul.f32 %v643, %v590
        %v650 = vadd.f32 %v644, %v646
        %v651 = vadd.f32 %v650, %v648
        %v652 = vadd.f32 %v645, %v647
        %v653 = vadd.f32 %v652, %v649
        %v654 = vmul.f32 %v566, %v566
        %v655 = vmul.f32 %v570, %v570
        %v656 = vmul.f32 %v576, %v576
        %v657 = vmul.f32 %v580, %v580
        %v658 = vmul.f32 %v586, %v586
        %v659 = vmul.f32 %v590, %v590
        %v660 = vadd.f32 %v654, %v656
        %v661 = vadd.f32 %v660, %v658
        %v662 = vadd.f32 %v655, %v657
        %v663 = vadd.f32 %v662, %v659
        %v664 = vadd.f32 %v661, 1e-06
        %v665 = vadd.f32 %v663, 1e-06
        %v666 = vrcp.pop %v664
        %v667 = vmul.f32 %v651, %v666
        %v668 = vrcp.pop %v665
        %v669 = vmul.f32 %v653, %v668
        %vm670 = vcmp.ge.f32.partialorder %v651, 0.0
        %vm671 = vcmp.ge.f32.partialorder %v653, 0.0
        %v672 = vmul.f32 %v667, %v566
        %v673 = vmul.f32 %v669, %v570
        %v674 = vmul.f32 %v667, %v576
        %v675 = vmul.f32 %v669, %v580
        %v676 = vmul.f32 %v667, %v586
        %v677 = vmul.f32 %v669, %v590
        %v678 = vsub.f32 %v638, %v672
        %v679 = vsub.f32 %v639, %v673
        %v680 = vsub.f32 %v640, %v674
        %v681 = vsub.f32 %v641, %v675
        %v682 = vsub.f32 %v642, %v676
        %v683 = vsub.f32 %v643, %v677
        %v684 = vsel %vm670, 1, 0
        %v685 = vsel %vm671, 1, 0
        %vm686 = vcmp.eq.s32.totalorder %v684, 1
        %vm687 = vcmp.eq.s32.totalorder %v685, 1
        %v688 = vsel %vm686, %v638, %v678
        %v689 = vsel %vm687, %v639, %v679
        %v690 = vsel %vm686, %v640, %v680
        %v691 = vsel %vm687, %v641, %v681
        %v692 = vsel %vm686, %v642, %v682
        %v693 = vsel %vm687, %v643, %v683
        %v694 = vadd.f32 %v592, %v593
        %695 = vadd.xlane.f32.xlu0 %v694
        %v696 = vpop.xlane.xlu0 %695
        %v697 = vrot.slane %v696, 4
        %v698 = vadd.f32 %v696, %v697
        %v699 = vrot.slane %v698, 2
        %v700 = vadd.f32 %v698, %v699
        %v701 = vrot.slane %v700, 1
        %v702 = vadd.f32 %v700, %v701
        %s703 = vtos %v702
        %v704 = vadd.f32 %v594, %v595
        %705 = vadd.xlane.f32.xlu0 %v704
        %v706 = vpop.xlane.xlu0 %705
        %v707 = vrot.slane %v706, 4
        %v708 = vadd.f32 %v706, %v707
        %v709 = vrot.slane %v708, 2
        %v710 = vadd.f32 %v708, %v709
        %v711 = vrot.slane %v710, 1
        %v712 = vadd.f32 %v710, %v711
        %s713 = vtos %v712
        %v714 = vadd.f32 %v596, %v597
        %715 = vadd.xlane.f32.xlu0 %v714
        %v716 = vpop.xlane.xlu0 %715
        %v717 = vrot.slane %v716, 4
        %v718 = vadd.f32 %v716, %v717
        %v719 = vrot.slane %v718, 2
        %v720 = vadd.f32 %v718, %v719
        %v721 = vrot.slane %v720, 1
        %v722 = vadd.f32 %v720, %v721
        %s723 = vtos %v722
        %v724 = vmul.f32 %v564, %v574
        %v725 = vmul.f32 %v568, %v578
        %v726 = vadd.f32 %v724, %v725
        %727 = vadd.xlane.f32.xlu0 %v726
        %v728 = vpop.xlane.xlu0 %727
        %v729 = vrot.slane %v728, 4
        %v730 = vadd.f32 %v728, %v729
        %v731 = vrot.slane %v730, 2
        %v732 = vadd.f32 %v730, %v731
        %v733 = vrot.slane %v732, 1
        %v734 = vadd.f32 %v732, %v733
        %s735 = vtos %v734
        %v736 = vmul.f32 %v564, %v584
        %v737 = vmul.f32 %v568, %v588
        %v738 = vadd.f32 %v736, %v737
        %739 = vadd.xlane.f32.xlu0 %v738
        %v740 = vpop.xlane.xlu0 %739
        %v741 = vrot.slane %v740, 4
        %v742 = vadd.f32 %v740, %v741
        %v743 = vrot.slane %v742, 2
        %v744 = vadd.f32 %v742, %v743
        %v745 = vrot.slane %v744, 1
        %v746 = vadd.f32 %v744, %v745
        %s747 = vtos %v746
        %v748 = vmul.f32 %v574, %v584
        %v749 = vmul.f32 %v578, %v588
        %v750 = vadd.f32 %v748, %v749
        %751 = vadd.xlane.f32.xlu0 %v750
        %v752 = vpop.xlane.xlu0 %751
        %v753 = vrot.slane %v752, 4
        %v754 = vadd.f32 %v752, %v753
        %v755 = vrot.slane %v754, 2
        %v756 = vadd.f32 %v754, %v755
        %v757 = vrot.slane %v756, 1
        %v758 = vadd.f32 %v756, %v757
        %s759 = vtos %v758
        %s760 = sld [smem:[#allocation3]]
        %s761 = smul.f32 %s760, %s703
        %s762 = sld [smem:[#allocation3 + $0x81]]
        %s763 = smul.f32 %s762, %s713
        %s764 = sadd.f32 %s761, %s763
        %s765 = sld [smem:[#allocation3 + $0x102]]
        %s766 = smul.f32 %s765, %s723
        %s767 = sadd.f32 %s764, %s766
        %s768 = sld [smem:[#allocation3 + $0x1]]
        %s769 = smul.f32 %s768, %s735
        %s770 = sld [smem:[#allocation3 + $0x2]]
        %s771 = smul.f32 %s770, %s747
        %s772 = sadd.f32 %s769, %s771
        %s773 = sld [smem:[#allocation3 + $0x82]]
        %s774 = smul.f32 %s773, %s759
        %s775 = sadd.f32 %s772, %s774
        %s776 = smul.f32 %s775, 2.0
        %s777 = sadd.f32 %s767, %s776
        %v778 = vmul.f32 %v688, %v688
        %v779 = vmul.f32 %v689, %v689
        %v780 = vadd.f32 %v778, %v779
        %781 = vadd.xlane.f32.xlu0 %v780
        %v782 = vpop.xlane.xlu0 %781
        %v783 = vrot.slane %v782, 4
        %v784 = vadd.f32 %v782, %v783
        %v785 = vrot.slane %v784, 2
        %v786 = vadd.f32 %v784, %v785
        %v787 = vrot.slane %v786, 1
        %v788 = vadd.f32 %v786, %v787
        %s789 = vtos %v788
        %v790 = vmul.f32 %v690, %v690
        %v791 = vmul.f32 %v691, %v691
        %v792 = vadd.f32 %v790, %v791
        %793 = vadd.xlane.f32.xlu0 %v792
        %v794 = vpop.xlane.xlu0 %793
        %v795 = vrot.slane %v794, 4
        %v796 = vadd.f32 %v794, %v795
        %v797 = vrot.slane %v796, 2
        %v798 = vadd.f32 %v796, %v797
        %v799 = vrot.slane %v798, 1
        %v800 = vadd.f32 %v798, %v799
        %s801 = vtos %v800
        %v802 = vmul.f32 %v692, %v692
        %v803 = vmul.f32 %v693, %v693
        %v804 = vadd.f32 %v802, %v803
        %805 = vadd.xlane.f32.xlu0 %v804
        %v806 = vpop.xlane.xlu0 %805
        %v807 = vrot.slane %v806, 4
        %v808 = vadd.f32 %v806, %v807
        %v809 = vrot.slane %v808, 2
        %v810 = vadd.f32 %v808, %v809
        %v811 = vrot.slane %v810, 1
        %v812 = vadd.f32 %v810, %v811
        %s813 = vtos %v812
        %v814 = vmul.f32 %v688, %v690
        %v815 = vmul.f32 %v689, %v691
        %v816 = vadd.f32 %v814, %v815
        %817 = vadd.xlane.f32.xlu0 %v816
        %v818 = vpop.xlane.xlu0 %817
        %v819 = vrot.slane %v818, 4
        %v820 = vadd.f32 %v818, %v819
        %v821 = vrot.slane %v820, 2
        %v822 = vadd.f32 %v820, %v821
        %v823 = vrot.slane %v822, 1
        %v824 = vadd.f32 %v822, %v823
        %s825 = vtos %v824
        %v826 = vmul.f32 %v688, %v692
        %v827 = vmul.f32 %v689, %v693
        %v828 = vadd.f32 %v826, %v827
        %829 = vadd.xlane.f32.xlu0 %v828
        %v830 = vpop.xlane.xlu0 %829
        %v831 = vrot.slane %v830, 4
        %v832 = vadd.f32 %v830, %v831
        %v833 = vrot.slane %v832, 2
        %v834 = vadd.f32 %v832, %v833
        %v835 = vrot.slane %v834, 1
        %v836 = vadd.f32 %v834, %v835
        %s837 = vtos %v836
        %v838 = vmul.f32 %v690, %v692
        %v839 = vmul.f32 %v691, %v693
        %v840 = vadd.f32 %v838, %v839
        %841 = vadd.xlane.f32.xlu0 %v840
        %v842 = vpop.xlane.xlu0 %841
        %v843 = vrot.slane %v842, 4
        %v844 = vadd.f32 %v842, %v843
        %v845 = vrot.slane %v844, 2
        %v846 = vadd.f32 %v844, %v845
        %v847 = vrot.slane %v846, 1
        %v848 = vadd.f32 %v846, %v847
        %s849 = vtos %v848
        %s850 = smul.f32 %s760, %s789
        %s851 = smul.f32 %s762, %s801
        %s852 = sadd.f32 %s850, %s851
        %s853 = smul.f32 %s765, %s813
        %s854 = sadd.f32 %s852, %s853
        %s855 = smul.f32 %s768, %s825
        %s856 = smul.f32 %s770, %s837
        %s857 = sadd.f32 %s855, %s856
        %s858 = smul.f32 %s773, %s849
        %s859 = sadd.f32 %s857, %s858
        %s860 = smul.f32 %s859, 2.0
        %s861 = sadd.f32 %s854, %s860
        %v862 = vld [vmem:[%s4] sm:$0xff]
        %v863 = vld [vmem:[%s4 + $0x8] sm:$0xff]
        %v864 = vld [vmem:[%s4 + $0x10] sm:$0xff]
        %v865 = vld [vmem:[%s4 + $0x18] sm:$0xff]
        %v866 = vld [vmem:[%s4 + $0x20] sm:$0xff]
        %v867 = vld [vmem:[%s4 + $0x28] sm:$0xff]
        %v868 = vld [vmem:[%s4 + $0x30] sm:$0xff]
        %v869 = vld [vmem:[%s4 + $0x38] sm:$0xff]
        %v870 = vld [vmem:[%s4 + $0x40] sm:$0xff]
        %v871 = vld [vmem:[%s4 + $0x48] sm:$0xff]
        %v872 = vld [vmem:[%s4 + $0x50] sm:$0xff]
        %v873 = vld [vmem:[%s4 + $0x58] sm:$0xff]
        %v874 = vld [vmem:[%s4 + $0x60] sm:$0xff]
        %v875 = vld [vmem:[%s4 + $0x68] sm:$0xff]
        %v876 = vld [vmem:[%s4 + $0x70] sm:$0xff]
        %v877 = vld [vmem:[%s4 + $0x78] sm:$0xff]
        %v878 = vld [vmem:[%s5] sm:$0x1]
        %v879 = vld [vmem:[%s6] sm:$0x1]
        %v880 = vpack.c.bf16 %v689, %v688
        %v881 = vpack.c.bf16 %v691, %v690
        %v882 = vpack.c.bf16 %v693, %v692
        %v899 = vunpack.c.l.b16 %v862
        %v900 = vunpack.c.h.b16 %v862
        %v901 = vunpack.c.l.b16 %v863
        %v902 = vunpack.c.h.b16 %v863
        %v903 = vunpack.c.l.b16 %v864
        %v904 = vunpack.c.h.b16 %v864
        %v905 = vunpack.c.l.b16 %v865
        %v906 = vunpack.c.h.b16 %v865
        %v907 = vunpack.c.l.b16 %v866
        %v908 = vunpack.c.h.b16 %v866
        %v909 = vunpack.c.l.b16 %v867
        %v910 = vunpack.c.h.b16 %v867
        %v911 = vunpack.c.l.b16 %v868
        %v912 = vunpack.c.h.b16 %v868
        %v913 = vunpack.c.l.b16 %v869
        %v914 = vunpack.c.h.b16 %v869
        %v915 = vunpack.c.l.b16 %v870
        %v916 = vunpack.c.h.b16 %v870
        %v917 = vunpack.c.l.b16 %v871
        %v918 = vunpack.c.h.b16 %v871
        %v919 = vunpack.c.l.b16 %v872
        %v920 = vunpack.c.h.b16 %v872
        %v921 = vunpack.c.l.b16 %v873
        %v922 = vunpack.c.h.b16 %v873
        %v923 = vunpack.c.l.b16 %v874
        %v924 = vunpack.c.h.b16 %v874
        %v925 = vunpack.c.l.b16 %v875
        %v926 = vunpack.c.h.b16 %v875
        %v927 = vunpack.c.l.b16 %v876
        %v928 = vunpack.c.h.b16 %v876
        %v929 = vunpack.c.l.b16 %v877
        %v930 = vunpack.c.h.b16 %v877
        %v931 = vpack.c.b16 %v901, %v899
        %v932 = vpack.c.b16 %v902, %v900
        %v933 = vpack.c.b16 %v905, %v903
        %v934 = vpack.c.b16 %v906, %v904
        %v935 = vpack.c.b16 %v909, %v907
        %v936 = vpack.c.b16 %v910, %v908
        %v937 = vpack.c.b16 %v913, %v911
        %v938 = vpack.c.b16 %v914, %v912
        %v939 = vpack.c.b16 %v917, %v915
        %v940 = vpack.c.b16 %v918, %v916
        %v941 = vpack.c.b16 %v921, %v919
        %v942 = vpack.c.b16 %v922, %v920
        %v943 = vpack.c.b16 %v925, %v923
        %v944 = vpack.c.b16 %v926, %v924
        %v945 = vpack.c.b16 %v929, %v927
        %v946 = vpack.c.b16 %v930, %v928
        %963 = vmatprep.subr.bf16.mxu0 %v932
        %964 = vmatpush1.bf16.msra.mxu0 %v931
        %965 = vmatprep.subr.bf16.mxu0 %v934
        %966 = vmatpush1.bf16.msra.mxu0 %v933
        %967 = vmatprep.subr.bf16.mxu0 %v936
        %968 = vmatpush1.bf16.msra.mxu0 %v935
        %969 = vmatprep.subr.bf16.mxu0 %v938
        %970 = vmatpush1.bf16.msra.mxu0 %v937
        %971 = vmatprep.subr.bf16.mxu0 %v940
        %972 = vmatpush1.bf16.msra.mxu0 %v939
        %973 = vmatprep.subr.bf16.mxu0 %v942
        %974 = vmatpush1.bf16.msra.mxu0 %v941
        %975 = vmatprep.subr.bf16.mxu0 %v944
        %976 = vmatpush1.bf16.msra.mxu0 %v943
        %977 = vmatprep.subr.bf16.mxu0 %v946
        %978 = vmatpush1.bf16.msra.mxu0 %v945
        %979 = vmatprep.subr.bf16.mxu0 0
        %980 = vmatpush1.bf16.msra.mxu0 0
        %981 = vmatprep.subr.bf16.mxu0 0
        %982 = vmatpush1.bf16.msra.mxu0 0
        %983 = vmatprep.subr.bf16.mxu0 0
        %984 = vmatpush1.bf16.msra.mxu0 0
        %985 = vmatprep.subr.bf16.mxu0 0
        %986 = vmatpush1.bf16.msra.mxu0 0
        %987 = vmatprep.subr.bf16.mxu0 0
        %988 = vmatpush1.bf16.msra.mxu0 0
        %989 = vmatprep.subr.bf16.mxu0 0
        %990 = vmatpush1.bf16.msra.mxu0 0
        %991 = vmatprep.subr.bf16.mxu0 0
        %992 = vmatpush1.bf16.msra.mxu0 0
        %993 = vmatprep.subr.bf16.mxu0 0
        %994 = vmatpush1.bf16.msra.mxu0 0
        %995 = vmatprep.mubr.bf16.mxu0 0
        %996 = vmatmul.mubr.bf16.gmra.mrb[0].mxu0 %v880
        %v997 = vpop.f32.mrb[0].mxu0
        %v998 = vadd.f32 0.0, %v997
        %v999 = vpop.f32.mrb[0].mxu0
        %v1000 = vadd.f32 0.0, %v999
        %v1001 = vpop.f32.mrb[0].mxu0
        %v1002 = vadd.f32 0.0, %v1001
        %v1003 = vpop.f32.mrb[0].mxu0
        %v1004 = vadd.f32 0.0, %v1003
        %1005 = vmatprep.mubr.bf16.mxu0 0
        %1006 = vmatmul.mubr.bf16.gmra.mrb[0].mxu0 %v881
        %v1007 = vpop.f32.mrb[0].mxu0
        %v1008 = vadd.f32 0.0, %v1007
        %v1009 = vpop.f32.mrb[0].mxu0
        %v1010 = vadd.f32 0.0, %v1009
        %v1011 = vpop.f32.mrb[0].mxu0
        %v1012 = vadd.f32 0.0, %v1011
        %v1013 = vpop.f32.mrb[0].mxu0
        %v1014 = vadd.f32 0.0, %v1013
        %1015 = vmatprep.mubr.bf16.mxu0 0
        %1016 = vmatmul.mubr.bf16.gmra.mrb[0].mxu0 %v882
        %v1017 = vpop.f32.mrb[0].mxu0
        %v1018 = vadd.f32 0.0, %v1017
        %v1019 = vpop.f32.mrb[0].mxu0
        %v1020 = vadd.f32 0.0, %v1019
        %v1021 = vpop.f32.mrb[0].mxu0
        %v1022 = vadd.f32 0.0, %v1021
        %v1023 = vpop.f32.mrb[0].mxu0
        %v1024 = vadd.f32 0.0, %v1023
        %1025 = vdwg.mxu0
        %v1026 = vmul.f32 %v998, %v998
        %v1027 = vmul.f32 %v1002, %v1002
        %v1028 = vmul.f32 %v1008, %v1008
        %v1029 = vmul.f32 %v1012, %v1012
        %v1030 = vmul.f32 %v1018, %v1018
        %v1031 = vmul.f32 %v1022, %v1022
        %v1032 = vadd.f32 %v1026, %v1028
        %v1033 = vadd.f32 %v1032, %v1030
        %v1034 = vadd.f32 %v1027, %v1029
        %v1035 = vadd.f32 %v1034, %v1031
        %v1036 = vrsqrt.pop %v1033
        %v1037 = vmul.f32 %v1033, %v1036
        %vm1038 = vcmp.eq.f32.partialorder %v1033, inf
        %v1039 = vsel %vm1038, %v1033, %v1037
        %vm1040 = vcmp.eq.f32.partialorder %v1033, 0.0
        %v1041 = vand.u32 %v1033, 2147483648
        %v1042 = vsel %vm1040, %v1041, %v1039
        %v1043 = vrsqrt.pop %v1035
        %v1044 = vmul.f32 %v1035, %v1043
        %vm1045 = vcmp.eq.f32.partialorder %v1035, inf
        %v1046 = vsel %vm1045, %v1035, %v1044
        %vm1047 = vcmp.eq.f32.partialorder %v1035, 0.0
        %v1048 = vand.u32 %v1035, 2147483648
        %v1049 = vsel %vm1047, %v1048, %v1046
        %v1050 = vadd.f32 %v1042, 1e-06
        %v1051 = vadd.f32 %v1049, 1e-06
        %v1053 = vlaneseq
        %v1054 = vshrl.u32 %v1053, 7
        %v1055 = vsub.s32 0, %v1054
        %v1056 = vrot.slane %v878, %v1055
        %v1058 = vmul.f32 %v1050, %v1056
        %v1059 = vmul.f32 %v1051, %v1056
        %v1061 = vlaneseq
        %v1062 = vshrl.u32 %v1061, 7
        %v1063 = vsub.s32 0, %v1062
        %v1064 = vrot.slane %v879, %v1063
        %v1066 = vadd.f32 %v1058, %v1064
        %v1067 = vadd.f32 %v1059, %v1064
        %v1068 = vrcp.pop %v1050
        %v1069 = vmul.f32 %v1066, %v1068
        %v1070 = vrcp.pop %v1051
        %v1071 = vmul.f32 %v1067, %v1070
        %v1072 = vmul.f32 %v998, %v1069
        %v1073 = vmul.f32 %v1002, %v1071
        %v1074 = vmul.f32 %v1008, %v1069
        %v1075 = vmul.f32 %v1012, %v1071
        %v1076 = vmul.f32 %v1018, %v1069
        %v1077 = vmul.f32 %v1022, %v1071
        %v1078 = vmul.f32 %v1072, %v1000
        %v1079 = vmul.f32 %v1073, %v1004
        %v1080 = vmul.f32 %v1074, %v1010
        %v1081 = vmul.f32 %v1075, %v1014
        %v1082 = vmul.f32 %v1076, %v1020
        %v1083 = vmul.f32 %v1077, %v1024
        %v1084 = vadd.f32 %v1078, %v1080
        %v1085 = vadd.f32 %v1084, %v1082
        %v1086 = vadd.f32 %v1079, %v1081
        %v1087 = vadd.f32 %v1086, %v1083
        %v1088 = vmul.f32 %v1000, %v1000
        %v1089 = vmul.f32 %v1004, %v1004
        %v1090 = vmul.f32 %v1010, %v1010
        %v1091 = vmul.f32 %v1014, %v1014
        %v1092 = vmul.f32 %v1020, %v1020
        %v1093 = vmul.f32 %v1024, %v1024
        %v1094 = vadd.f32 %v1088, %v1090
        %v1095 = vadd.f32 %v1094, %v1092
        %v1096 = vadd.f32 %v1089, %v1091
        %v1097 = vadd.f32 %v1096, %v1093
        %v1098 = vadd.f32 %v1095, 1e-06
        %v1099 = vadd.f32 %v1097, 1e-06
        %v1100 = vrcp.pop %v1098
        %v1101 = vmul.f32 %v1085, %v1100
        %v1102 = vrcp.pop %v1099
        %v1103 = vmul.f32 %v1087, %v1102
        %vm1104 = vcmp.ge.f32.partialorder %v1085, 0.0
        %vm1105 = vcmp.ge.f32.partialorder %v1087, 0.0
        %v1106 = vmul.f32 %v1101, %v1000
        %v1107 = vmul.f32 %v1103, %v1004
        %v1108 = vmul.f32 %v1101, %v1010
        %v1109 = vmul.f32 %v1103, %v1014
        %v1110 = vmul.f32 %v1101, %v1020
        %v1111 = vmul.f32 %v1103, %v1024
        %v1112 = vsub.f32 %v1072, %v1106
        %v1113 = vsub.f32 %v1073, %v1107
        %v1114 = vsub.f32 %v1074, %v1108
        %v1115 = vsub.f32 %v1075, %v1109
        %v1116 = vsub.f32 %v1076, %v1110
        %v1117 = vsub.f32 %v1077, %v1111
        %v1118 = vsel %vm1104, 1, 0
        %v1119 = vsel %vm1105, 1, 0
        %vm1120 = vcmp.eq.s32.totalorder %v1118, 1
        %vm1121 = vcmp.eq.s32.totalorder %v1119, 1
        %v1122 = vsel %vm1120, %v1072, %v1112
        %v1123 = vsel %vm1121, %v1073, %v1113
        %v1124 = vsel %vm1120, %v1074, %v1114
        %v1125 = vsel %vm1121, %v1075, %v1115
        %v1126 = vsel %vm1120, %v1076, %v1116
        %v1127 = vsel %vm1121, %v1077, %v1117
        %v1128 = vadd.f32 %v1026, %v1027
        %1129 = vadd.xlane.f32.xlu0 %v1128
        %v1130 = vpop.xlane.xlu0 %1129
        %v1131 = vrot.slane %v1130, 4
        %v1132 = vadd.f32 %v1130, %v1131
        %v1133 = vrot.slane %v1132, 2
        %v1134 = vadd.f32 %v1132, %v1133
        %v1135 = vrot.slane %v1134, 1
        %v1136 = vadd.f32 %v1134, %v1135
        %s1137 = vtos %v1136
        %v1138 = vadd.f32 %v1028, %v1029
        %1139 = vadd.xlane.f32.xlu0 %v1138
        %v1140 = vpop.xlane.xlu0 %1139
        %v1141 = vrot.slane %v1140, 4
        %v1142 = vadd.f32 %v1140, %v1141
        %v1143 = vrot.slane %v1142, 2
        %v1144 = vadd.f32 %v1142, %v1143
        %v1145 = vrot.slane %v1144, 1
        %v1146 = vadd.f32 %v1144, %v1145
        %s1147 = vtos %v1146
        %v1148 = vadd.f32 %v1030, %v1031
        %1149 = vadd.xlane.f32.xlu0 %v1148
        %v1150 = vpop.xlane.xlu0 %1149
        %v1151 = vrot.slane %v1150, 4
        %v1152 = vadd.f32 %v1150, %v1151
        %v1153 = vrot.slane %v1152, 2
        %v1154 = vadd.f32 %v1152, %v1153
        %v1155 = vrot.slane %v1154, 1
        %v1156 = vadd.f32 %v1154, %v1155
        %s1157 = vtos %v1156
        %v1158 = vmul.f32 %v998, %v1008
        %v1159 = vmul.f32 %v1002, %v1012
        %v1160 = vadd.f32 %v1158, %v1159
        %1161 = vadd.xlane.f32.xlu0 %v1160
        %v1162 = vpop.xlane.xlu0 %1161
        %v1163 = vrot.slane %v1162, 4
        %v1164 = vadd.f32 %v1162, %v1163
        %v1165 = vrot.slane %v1164, 2
        %v1166 = vadd.f32 %v1164, %v1165
        %v1167 = vrot.slane %v1166, 1
        %v1168 = vadd.f32 %v1166, %v1167
        %s1169 = vtos %v1168
        %v1170 = vmul.f32 %v998, %v1018
        %v1171 = vmul.f32 %v1002, %v1022
        %v1172 = vadd.f32 %v1170, %v1171
        %1173 = vadd.xlane.f32.xlu0 %v1172
        %v1174 = vpop.xlane.xlu0 %1173
        %v1175 = vrot.slane %v1174, 4
        %v1176 = vadd.f32 %v1174, %v1175
        %v1177 = vrot.slane %v1176, 2
        %v1178 = vadd.f32 %v1176, %v1177
        %v1179 = vrot.slane %v1178, 1
        %v1180 = vadd.f32 %v1178, %v1179
        %s1181 = vtos %v1180
        %v1182 = vmul.f32 %v1008, %v1018
        %v1183 = vmul.f32 %v1012, %v1022
        %v1184 = vadd.f32 %v1182, %v1183
        %1185 = vadd.xlane.f32.xlu0 %v1184
        %v1186 = vpop.xlane.xlu0 %1185
        %v1187 = vrot.slane %v1186, 4
        %v1188 = vadd.f32 %v1186, %v1187
        %v1189 = vrot.slane %v1188, 2
        %v1190 = vadd.f32 %v1188, %v1189
        %v1191 = vrot.slane %v1190, 1
        %v1192 = vadd.f32 %v1190, %v1191
        %s1193 = vtos %v1192
        %s1194 = smul.f32 %s760, %s1137
        %s1195 = smul.f32 %s762, %s1147
        %s1196 = sadd.f32 %s1194, %s1195
        %s1197 = smul.f32 %s765, %s1157
        %s1198 = sadd.f32 %s1196, %s1197
        %s1199 = smul.f32 %s768, %s1169
        %s1200 = smul.f32 %s770, %s1181
        %s1201 = sadd.f32 %s1199, %s1200
        %s1202 = smul.f32 %s773, %s1193
        %s1203 = sadd.f32 %s1201, %s1202
        %s1204 = smul.f32 %s1203, 2.0
        %s1205 = sadd.f32 %s1198, %s1204
        %v1206 = vmul.f32 %v1122, %v1122
        %v1207 = vmul.f32 %v1123, %v1123
        %v1208 = vadd.f32 %v1206, %v1207
        %1209 = vadd.xlane.f32.xlu0 %v1208
        %v1210 = vpop.xlane.xlu0 %1209
        %v1211 = vrot.slane %v1210, 4
        %v1212 = vadd.f32 %v1210, %v1211
        %v1213 = vrot.slane %v1212, 2
        %v1214 = vadd.f32 %v1212, %v1213
        %v1215 = vrot.slane %v1214, 1
        %v1216 = vadd.f32 %v1214, %v1215
        %s1217 = vtos %v1216
        %v1218 = vmul.f32 %v1124, %v1124
        %v1219 = vmul.f32 %v1125, %v1125
        %v1220 = vadd.f32 %v1218, %v1219
        %1221 = vadd.xlane.f32.xlu0 %v1220
        %v1222 = vpop.xlane.xlu0 %1221
        %v1223 = vrot.slane %v1222, 4
        %v1224 = vadd.f32 %v1222, %v1223
        %v1225 = vrot.slane %v1224, 2
        %v1226 = vadd.f32 %v1224, %v1225
        %v1227 = vrot.slane %v1226, 1
        %v1228 = vadd.f32 %v1226, %v1227
        %s1229 = vtos %v1228
        %v1230 = vmul.f32 %v1126, %v1126
        %v1231 = vmul.f32 %v1127, %v1127
        %v1232 = vadd.f32 %v1230, %v1231
        %1233 = vadd.xlane.f32.xlu0 %v1232
        %v1234 = vpop.xlane.xlu0 %1233
        %v1235 = vrot.slane %v1234, 4
        %v1236 = vadd.f32 %v1234, %v1235
        %v1237 = vrot.slane %v1236, 2
        %v1238 = vadd.f32 %v1236, %v1237
        %v1239 = vrot.slane %v1238, 1
        %v1240 = vadd.f32 %v1238, %v1239
        %s1241 = vtos %v1240
        %v1242 = vmul.f32 %v1122, %v1124
        %v1243 = vmul.f32 %v1123, %v1125
        %v1244 = vadd.f32 %v1242, %v1243
        %1245 = vadd.xlane.f32.xlu0 %v1244
        %v1246 = vpop.xlane.xlu0 %1245
        %v1247 = vrot.slane %v1246, 4
        %v1248 = vadd.f32 %v1246, %v1247
        %v1249 = vrot.slane %v1248, 2
        %v1250 = vadd.f32 %v1248, %v1249
        %v1251 = vrot.slane %v1250, 1
        %v1252 = vadd.f32 %v1250, %v1251
        %s1253 = vtos %v1252
        %v1254 = vmul.f32 %v1122, %v1126
        %v1255 = vmul.f32 %v1123, %v1127
        %v1256 = vadd.f32 %v1254, %v1255
        %1257 = vadd.xlane.f32.xlu0 %v1256
        %v1258 = vpop.xlane.xlu0 %1257
        %v1259 = vrot.slane %v1258, 4
        %v1260 = vadd.f32 %v1258, %v1259
        %v1261 = vrot.slane %v1260, 2
        %v1262 = vadd.f32 %v1260, %v1261
        %v1263 = vrot.slane %v1262, 1
        %v1264 = vadd.f32 %v1262, %v1263
        %s1265 = vtos %v1264
        %v1266 = vmul.f32 %v1124, %v1126
        %v1267 = vmul.f32 %v1125, %v1127
        %v1268 = vadd.f32 %v1266, %v1267
        %1269 = vadd.xlane.f32.xlu0 %v1268
        %v1270 = vpop.xlane.xlu0 %1269
        %v1271 = vrot.slane %v1270, 4
        %v1272 = vadd.f32 %v1270, %v1271
        %v1273 = vrot.slane %v1272, 2
        %v1274 = vadd.f32 %v1272, %v1273
        %v1275 = vrot.slane %v1274, 1
        %v1276 = vadd.f32 %v1274, %v1275
        %s1277 = vtos %v1276
        %s1278 = smul.f32 %s760, %s1217
        %s1279 = smul.f32 %s762, %s1229
        %s1280 = sadd.f32 %s1278, %s1279
        %s1281 = smul.f32 %s765, %s1241
        %s1282 = sadd.f32 %s1280, %s1281
        %s1283 = smul.f32 %s768, %s1253
        %s1284 = smul.f32 %s770, %s1265
        %s1285 = sadd.f32 %s1283, %s1284
        %s1286 = smul.f32 %s773, %s1277
        %s1287 = sadd.f32 %s1285, %s1286
        %s1288 = smul.f32 %s1287, 2.0
        %s1289 = sadd.f32 %s1282, %s1288
        %v1290 = vld [vmem:[%s7] sm:$0xff]
        %v1291 = vld [vmem:[%s7 + $0x8] sm:$0xff]
        %v1292 = vld [vmem:[%s7 + $0x10] sm:$0xff]
        %v1293 = vld [vmem:[%s7 + $0x18] sm:$0xff]
        %v1294 = vld [vmem:[%s7 + $0x20] sm:$0xff]
        %v1295 = vld [vmem:[%s7 + $0x28] sm:$0xff]
        %v1296 = vld [vmem:[%s7 + $0x30] sm:$0xff]
        %v1297 = vld [vmem:[%s7 + $0x38] sm:$0xff]
        %v1298 = vld [vmem:[%s7 + $0x40] sm:$0xff]
        %v1299 = vld [vmem:[%s7 + $0x48] sm:$0xff]
        %v1300 = vld [vmem:[%s7 + $0x50] sm:$0xff]
        %v1301 = vld [vmem:[%s7 + $0x58] sm:$0xff]
        %v1302 = vld [vmem:[%s7 + $0x60] sm:$0xff]
        %v1303 = vld [vmem:[%s7 + $0x68] sm:$0xff]
        %v1304 = vld [vmem:[%s7 + $0x70] sm:$0xff]
        %v1305 = vld [vmem:[%s7 + $0x78] sm:$0xff]
        %v1306 = vld [vmem:[%s7 + $0x80] sm:$0xff]
        %v1307 = vld [vmem:[%s7 + $0x88] sm:$0xff]
        %v1308 = vld [vmem:[%s7 + $0x90] sm:$0xff]
        %v1309 = vld [vmem:[%s7 + $0x98] sm:$0xff]
        %v1310 = vld [vmem:[%s7 + $0xa0] sm:$0xff]
        %v1311 = vld [vmem:[%s7 + $0xa8] sm:$0xff]
        %v1312 = vld [vmem:[%s7 + $0xb0] sm:$0xff]
        %v1313 = vld [vmem:[%s7 + $0xb8] sm:$0xff]
        %v1314 = vld [vmem:[%s7 + $0xc0] sm:$0xff]
        %v1315 = vld [vmem:[%s7 + $0xc8] sm:$0xff]
        %v1316 = vld [vmem:[%s7 + $0xd0] sm:$0xff]
        %v1317 = vld [vmem:[%s7 + $0xd8] sm:$0xff]
        %v1318 = vld [vmem:[%s7 + $0xe0] sm:$0xff]
        %v1319 = vld [vmem:[%s7 + $0xe8] sm:$0xff]
        %v1320 = vld [vmem:[%s7 + $0xf0] sm:$0xff]
        %v1321 = vld [vmem:[%s7 + $0xf8] sm:$0xff]
        %v1322 = vld [vmem:[%s7 + $0x100] sm:$0xff]
        %v1323 = vld [vmem:[%s7 + $0x108] sm:$0xff]
        %v1324 = vld [vmem:[%s7 + $0x110] sm:$0xff]
        %v1325 = vld [vmem:[%s7 + $0x118] sm:$0xff]
        %v1326 = vld [vmem:[%s7 + $0x120] sm:$0xff]
        %v1327 = vld [vmem:[%s7 + $0x128] sm:$0xff]
        %v1328 = vld [vmem:[%s7 + $0x130] sm:$0xff]
        %v1329 = vld [vmem:[%s7 + $0x138] sm:$0xff]
        %v1330 = vld [vmem:[%s7 + $0x140] sm:$0xff]
        %v1331 = vld [vmem:[%s7 + $0x148] sm:$0xff]
        %v1332 = vld [vmem:[%s7 + $0x150] sm:$0xff]
        %v1333 = vld [vmem:[%s7 + $0x158] sm:$0xff]
        %v1334 = vld [vmem:[%s7 + $0x160] sm:$0xff]
        %v1335 = vld [vmem:[%s7 + $0x168] sm:$0xff]
        %v1336 = vld [vmem:[%s7 + $0x170] sm:$0xff]
        %v1337 = vld [vmem:[%s7 + $0x178] sm:$0xff]
        %v1338 = vld [vmem:[%s8] sm:$0x7]
        %v1339 = vld [vmem:[%s9] sm:$0x7]
        %v1340 = vpack.c.bf16 %v1123, %v1122
        %v1341 = vpack.c.bf16 %v1125, %v1124
        %v1342 = vpack.c.bf16 %v1127, %v1126
        %v1391 = vunpack.c.l.b16 %v1290
        %v1392 = vunpack.c.h.b16 %v1290
        %v1393 = vunpack.c.l.b16 %v1291
        %v1394 = vunpack.c.h.b16 %v1291
        %v1395 = vunpack.c.l.b16 %v1292
        %v1396 = vunpack.c.h.b16 %v1292
        %v1397 = vunpack.c.l.b16 %v1293
        %v1398 = vunpack.c.h.b16 %v1293
        %v1399 = vunpack.c.l.b16 %v1294
        %v1400 = vunpack.c.h.b16 %v1294
        %v1401 = vunpack.c.l.b16 %v1295
        %v1402 = vunpack.c.h.b16 %v1295
        %v1403 = vunpack.c.l.b16 %v1296
        %v1404 = vunpack.c.h.b16 %v1296
        %v1405 = vunpack.c.l.b16 %v1297
        %v1406 = vunpack.c.h.b16 %v1297
        %v1407 = vunpack.c.l.b16 %v1298
        %v1408 = vunpack.c.h.b16 %v1298
        %v1409 = vunpack.c.l.b16 %v1299
        %v1410 = vunpack.c.h.b16 %v1299
        %v1411 = vunpack.c.l.b16 %v1300
        %v1412 = vunpack.c.h.b16 %v1300
        %v1413 = vunpack.c.l.b16 %v1301
        %v1414 = vunpack.c.h.b16 %v1301
        %v1415 = vunpack.c.l.b16 %v1302
        %v1416 = vunpack.c.h.b16 %v1302
        %v1417 = vunpack.c.l.b16 %v1303
        %v1418 = vunpack.c.h.b16 %v1303
        %v1419 = vunpack.c.l.b16 %v1304
        %v1420 = vunpack.c.h.b16 %v1304
        %v1421 = vunpack.c.l.b16 %v1305
        %v1422 = vunpack.c.h.b16 %v1305
        %v1423 = vunpack.c.l.b16 %v1306
        %v1424 = vunpack.c.h.b16 %v1306
        %v1425 = vunpack.c.l.b16 %v1307
        %v1426 = vunpack.c.h.b16 %v1307
        %v1427 = vunpack.c.l.b16 %v1308
        %v1428 = vunpack.c.h.b16 %v1308
        %v1429 = vunpack.c.l.b16 %v1309
        %v1430 = vunpack.c.h.b16 %v1309
        %v1431 = vunpack.c.l.b16 %v1310
        %v1432 = vunpack.c.h.b16 %v1310
        %v1433 = vunpack.c.l.b16 %v1311
        %v1434 = vunpack.c.h.b16 %v1311
        %v1435 = vunpack.c.l.b16 %v1312
        %v1436 = vunpack.c.h.b16 %v1312
        %v1437 = vunpack.c.l.b16 %v1313
        %v1438 = vunpack.c.h.b16 %v1313
        %v1439 = vunpack.c.l.b16 %v1314
        %v1440 = vunpack.c.h.b16 %v1314
        %v1441 = vunpack.c.l.b16 %v1315
        %v1442 = vunpack.c.h.b16 %v1315
        %v1443 = vunpack.c.l.b16 %v1316
        %v1444 = vunpack.c.h.b16 %v1316
        %v1445 = vunpack.c.l.b16 %v1317
        %v1446 = vunpack.c.h.b16 %v1317
        %v1447 = vunpack.c.l.b16 %v1318
        %v1448 = vunpack.c.h.b16 %v1318
        %v1449 = vunpack.c.l.b16 %v1319
        %v1450 = vunpack.c.h.b16 %v1319
        %v1451 = vunpack.c.l.b16 %v1320
        %v1452 = vunpack.c.h.b16 %v1320
        %v1453 = vunpack.c.l.b16 %v1321
        %v1454 = vunpack.c.h.b16 %v1321
        %v1455 = vunpack.c.l.b16 %v1322
        %v1456 = vunpack.c.h.b16 %v1322
        %v1457 = vunpack.c.l.b16 %v1323
        %v1458 = vunpack.c.h.b16 %v1323
        %v1459 = vunpack.c.l.b16 %v1324
        %v1460 = vunpack.c.h.b16 %v1324
        %v1461 = vunpack.c.l.b16 %v1325
        %v1462 = vunpack.c.h.b16 %v1325
        %v1463 = vunpack.c.l.b16 %v1326
        %v1464 = vunpack.c.h.b16 %v1326
        %v1465 = vunpack.c.l.b16 %v1327
        %v1466 = vunpack.c.h.b16 %v1327
        %v1467 = vunpack.c.l.b16 %v1328
        %v1468 = vunpack.c.h.b16 %v1328
        %v1469 = vunpack.c.l.b16 %v1329
        %v1470 = vunpack.c.h.b16 %v1329
        %v1471 = vunpack.c.l.b16 %v1330
        %v1472 = vunpack.c.h.b16 %v1330
        %v1473 = vunpack.c.l.b16 %v1331
        %v1474 = vunpack.c.h.b16 %v1331
        %v1475 = vunpack.c.l.b16 %v1332
        %v1476 = vunpack.c.h.b16 %v1332
        %v1477 = vunpack.c.l.b16 %v1333
        %v1478 = vunpack.c.h.b16 %v1333
        %v1479 = vunpack.c.l.b16 %v1334
        %v1480 = vunpack.c.h.b16 %v1334
        %v1481 = vunpack.c.l.b16 %v1335
        %v1482 = vunpack.c.h.b16 %v1335
        %v1483 = vunpack.c.l.b16 %v1336
        %v1484 = vunpack.c.h.b16 %v1336
        %v1485 = vunpack.c.l.b16 %v1337
        %v1486 = vunpack.c.h.b16 %v1337
        %v1487 = vpack.c.b16 %v1397, %v1391
        %v1488 = vpack.c.b16 %v1398, %v1392
        %v1489 = vpack.c.b16 %v1399, %v1393
        %v1490 = vpack.c.b16 %v1400, %v1394
        %v1491 = vpack.c.b16 %v1401, %v1395
        %v1492 = vpack.c.b16 %v1402, %v1396
        %v1493 = vpack.c.b16 %v1409, %v1403
        %v1494 = vpack.c.b16 %v1410, %v1404
        %v1495 = vpack.c.b16 %v1411, %v1405
        %v1496 = vpack.c.b16 %v1412, %v1406
        %v1497 = vpack.c.b16 %v1413, %v1407
        %v1498 = vpack.c.b16 %v1414, %v1408
        %v1499 = vpack.c.b16 %v1421, %v1415
        %v1500 = vpack.c.b16 %v1422, %v1416
        %v1501 = vpack.c.b16 %v1423, %v1417
        %v1502 = vpack.c.b16 %v1424, %v1418
        %v1503 = vpack.c.b16 %v1425, %v1419
        %v1504 = vpack.c.b16 %v1426, %v1420
        %v1505 = vpack.c.b16 %v1433, %v1427
        %v1506 = vpack.c.b16 %v1434, %v1428
        %v1507 = vpack.c.b16 %v1435, %v1429
        %v1508 = vpack.c.b16 %v1436, %v1430
        %v1509 = vpack.c.b16 %v1437, %v1431
        %v1510 = vpack.c.b16 %v1438, %v1432
        %v1511 = vpack.c.b16 %v1445, %v1439
        %v1512 = vpack.c.b16 %v1446, %v1440
        %v1513 = vpack.c.b16 %v1447, %v1441
        %v1514 = vpack.c.b16 %v1448, %v1442
        %v1515 = vpack.c.b16 %v1449, %v1443
        %v1516 = vpack.c.b16 %v1450, %v1444
        %v1517 = vpack.c.b16 %v1457, %v1451
        %v1518 = vpack.c.b16 %v1458, %v1452
        %v1519 = vpack.c.b16 %v1459, %v1453
        %v1520 = vpack.c.b16 %v1460, %v1454
        %v1521 = vpack.c.b16 %v1461, %v1455
        %v1522 = vpack.c.b16 %v1462, %v1456
        %v1523 = vpack.c.b16 %v1469, %v1463
        %v1524 = vpack.c.b16 %v1470, %v1464
        %v1525 = vpack.c.b16 %v1471, %v1465
        %v1526 = vpack.c.b16 %v1472, %v1466
        %v1527 = vpack.c.b16 %v1473, %v1467
        %v1528 = vpack.c.b16 %v1474, %v1468
        %v1529 = vpack.c.b16 %v1481, %v1475
        %v1530 = vpack.c.b16 %v1482, %v1476
        %v1531 = vpack.c.b16 %v1483, %v1477
        %v1532 = vpack.c.b16 %v1484, %v1478
        %v1533 = vpack.c.b16 %v1485, %v1479
        %v1534 = vpack.c.b16 %v1486, %v1480
        %1583 = vmatprep.subr.bf16.mxu0 %v1488
        %1584 = vmatpush1.bf16.msra.mxu0 %v1487
        %1585 = vmatprep.subr.bf16.mxu0 %v1494
        %1586 = vmatpush1.bf16.msra.mxu0 %v1493
        %1587 = vmatprep.subr.bf16.mxu0 %v1500
        %1588 = vmatpush1.bf16.msra.mxu0 %v1499
        %1589 = vmatprep.subr.bf16.mxu0 %v1506
        %1590 = vmatpush1.bf16.msra.mxu0 %v1505
        %1591 = vmatprep.subr.bf16.mxu0 %v1512
        %1592 = vmatpush1.bf16.msra.mxu0 %v1511
        %1593 = vmatprep.subr.bf16.mxu0 %v1518
        %1594 = vmatpush1.bf16.msra.mxu0 %v1517
        %1595 = vmatprep.subr.bf16.mxu0 %v1524
        %1596 = vmatpush1.bf16.msra.mxu0 %v1523
        %1597 = vmatprep.subr.bf16.mxu0 %v1530
        %1598 = vmatpush1.bf16.msra.mxu0 %v1529
        %1599 = vmatprep.subr.bf16.mxu0 0
        %1600 = vmatpush1.bf16.msra.mxu0 0
        %1601 = vmatprep.subr.bf16.mxu0 0
        %1602 = vmatpush1.bf16.msra.mxu0 0
        %1603 = vmatprep.subr.bf16.mxu0 0
        %1604 = vmatpush1.bf16.msra.mxu0 0
        %1605 = vmatprep.subr.bf16.mxu0 0
        %1606 = vmatpush1.bf16.msra.mxu0 0
        %1607 = vmatprep.subr.bf16.mxu0 0
        %1608 = vmatpush1.bf16.msra.mxu0 0
        %1609 = vmatprep.subr.bf16.mxu0 0
        %1610 = vmatpush1.bf16.msra.mxu0 0
        %1611 = vmatprep.subr.bf16.mxu0 0
        %1612 = vmatpush1.bf16.msra.mxu0 0
        %1613 = vmatprep.subr.bf16.mxu0 0
        %1614 = vmatpush1.bf16.msra.mxu0 0
        %1615 = vmatprep.mubr.bf16.mxu0 0
        %1616 = vmatmul.mubr.bf16.gmra.mrb[0].mxu0 %v1340
        %v1617 = vpop.f32.mrb[0].mxu0
        %v1618 = vadd.f32 0.0, %v1617
        %v1619 = vpop.f32.mrb[0].mxu0
        %v1620 = vadd.f32 0.0, %v1619
        %v1621 = vpop.f32.mrb[0].mxu0
        %v1622 = vadd.f32 0.0, %v1621
        %v1623 = vpop.f32.mrb[0].mxu0
        %v1624 = vadd.f32 0.0, %v1623
        %1625 = vmatprep.mubr.bf16.mxu0 0
        %1626 = vmatmul.mubr.bf16.gmra.mrb[0].mxu0 %v1341
        %v1627 = vpop.f32.mrb[0].mxu0
        %v1628 = vadd.f32 0.0, %v1627
        %v1629 = vpop.f32.mrb[0].mxu0
        %v1630 = vadd.f32 0.0, %v1629
        %v1631 = vpop.f32.mrb[0].mxu0
        %v1632 = vadd.f32 0.0, %v1631
        %v1633 = vpop.f32.mrb[0].mxu0
        %v1634 = vadd.f32 0.0, %v1633
        %1635 = vmatprep.mubr.bf16.mxu0 0
        %1636 = vmatmul.mubr.bf16.gmra.mrb[0].mxu0 %v1342
        %v1637 = vpop.f32.mrb[0].mxu0
        %v1638 = vadd.f32 0.0, %v1637
        %v1639 = vpop.f32.mrb[0].mxu0
        %v1640 = vadd.f32 0.0, %v1639
        %v1641 = vpop.f32.mrb[0].mxu0
        %v1642 = vadd.f32 0.0, %v1641
        %v1643 = vpop.f32.mrb[0].mxu0
        %v1644 = vadd.f32 0.0, %v1643
        %1645 = vdwg.mxu0
        %1646 = vmatprep.subr.bf16.mxu0 %v1490
        %1647 = vmatpush1.bf16.msra.mxu0 %v1489
        %1648 = vmatprep.subr.bf16.mxu0 %v1496
        %1649 = vmatpush1.bf16.msra.mxu0 %v1495
        %1650 = vmatprep.subr.bf16.mxu0 %v1502
        %1651 = vmatpush1.bf16.msra.mxu0 %v1501
        %1652 = vmatprep.subr.bf16.mxu0 %v1508
        %1653 = vmatpush1.bf16.msra.mxu0 %v1507
        %1654 = vmatprep.subr.bf16.mxu0 %v1514
        %1655 = vmatpush1.bf16.msra.mxu0 %v1513
        %1656 = vmatprep.subr.bf16.mxu0 %v1520
        %1657 = vmatpush1.bf16.msra.mxu0 %v1519
        %1658 = vmatprep.subr.bf16.mxu0 %v1526
        %1659 = vmatpush1.bf16.msra.mxu0 %v1525
        %1660 = vmatprep.subr.bf16.mxu0 %v1532
        %1661 = vmatpush1.bf16.msra.mxu0 %v1531
        %1662 = vmatprep.subr.bf16.mxu0 0
        %1663 = vmatpush1.bf16.msra.mxu0 0
        %1664 = vmatprep.subr.bf16.mxu0 0
        %1665 = vmatpush1.bf16.msra.mxu0 0
        %1666 = vmatprep.subr.bf16.mxu0 0
        %1667 = vmatpush1.bf16.msra.mxu0 0
        %1668 = vmatprep.subr.bf16.mxu0 0
        %1669 = vmatpush1.bf16.msra.mxu0 0
        %1670 = vmatprep.subr.bf16.mxu0 0
        %1671 = vmatpush1.bf16.msra.mxu0 0
        %1672 = vmatprep.subr.bf16.mxu0 0
        %1673 = vmatpush1.bf16.msra.mxu0 0
        %1674 = vmatprep.subr.bf16.mxu0 0
        %1675 = vmatpush1.bf16.msra.mxu0 0
        %1676 = vmatprep.subr.bf16.mxu0 0
        %1677 = vmatpush1.bf16.msra.mxu0 0
        %1678 = vmatprep.mubr.bf16.mxu0 0
        %1679 = vmatmul.mubr.bf16.gmra.mrb[0].mxu0 %v1340
        %v1680 = vpop.f32.mrb[0].mxu0
        %v1681 = vadd.f32 0.0, %v1680
        %v1682 = vpop.f32.mrb[0].mxu0
        %v1683 = vadd.f32 0.0, %v1682
        %v1684 = vpop.f32.mrb[0].mxu0
        %v1685 = vadd.f32 0.0, %v1684
        %v1686 = vpop.f32.mrb[0].mxu0
        %v1687 = vadd.f32 0.0, %v1686
        %1688 = vmatprep.mubr.bf16.mxu0 0
        %1689 = vmatmul.mubr.bf16.gmra.mrb[0].mxu0 %v1341
        %v1690 = vpop.f32.mrb[0].mxu0
        %v1691 = vadd.f32 0.0, %v1690
        %v1692 = vpop.f32.mrb[0].mxu0
        %v1693 = vadd.f32 0.0, %v1692
        %v1694 = vpop.f32.mrb[0].mxu0
        %v1695 = vadd.f32 0.0, %v1694
        %v1696 = vpop.f32.mrb[0].mxu0
        %v1697 = vadd.f32 0.0, %v1696
        %1698 = vmatprep.mubr.bf16.mxu0 0
        %1699 = vmatmul.mubr.bf16.gmra.mrb[0].mxu0 %v1342
        %v1700 = vpop.f32.mrb[0].mxu0
        %v1701 = vadd.f32 0.0, %v1700
        %v1702 = vpop.f32.mrb[0].mxu0
        %v1703 = vadd.f32 0.0, %v1702
        %v1704 = vpop.f32.mrb[0].mxu0
        %v1705 = vadd.f32 0.0, %v1704
        %v1706 = vpop.f32.mrb[0].mxu0
        %v1707 = vadd.f32 0.0, %v1706
        %1708 = vdwg.mxu0
        %1709 = vmatprep.subr.bf16.mxu0 %v1492
        %1710 = vmatpush1.bf16.msra.mxu0 %v1491
        %1711 = vmatprep.subr.bf16.mxu0 %v1498
        %1712 = vmatpush1.bf16.msra.mxu0 %v1497
        %1713 = vmatprep.subr.bf16.mxu0 %v1504
        %1714 = vmatpush1.bf16.msra.mxu0 %v1503
        %1715 = vmatprep.subr.bf16.mxu0 %v1510
        %1716 = vmatpush1.bf16.msra.mxu0 %v1509
        %1717 = vmatprep.subr.bf16.mxu0 %v1516
        %1718 = vmatpush1.bf16.msra.mxu0 %v1515
        %1719 = vmatprep.subr.bf16.mxu0 %v1522
        %1720 = vmatpush1.bf16.msra.mxu0 %v1521
        %1721 = vmatprep.subr.bf16.mxu0 %v1528
        %1722 = vmatpush1.bf16.msra.mxu0 %v1527
        %1723 = vmatprep.subr.bf16.mxu0 %v1534
        %1724 = vmatpush1.bf16.msra.mxu0 %v1533
        %1725 = vmatprep.subr.bf16.mxu0 0
        %1726 = vmatpush1.bf16.msra.mxu0 0
        %1727 = vmatprep.subr.bf16.mxu0 0
        %1728 = vmatpush1.bf16.msra.mxu0 0
        %1729 = vmatprep.subr.bf16.mxu0 0
        %1730 = vmatpush1.bf16.msra.mxu0 0
        %1731 = vmatprep.subr.bf16.mxu0 0
        %1732 = vmatpush1.bf16.msra.mxu0 0
        %1733 = vmatprep.subr.bf16.mxu0 0
        %1734 = vmatpush1.bf16.msra.mxu0 0
        %1735 = vmatprep.subr.bf16.mxu0 0
        %1736 = vmatpush1.bf16.msra.mxu0 0
        %1737 = vmatprep.subr.bf16.mxu0 0
        %1738 = vmatpush1.bf16.msra.mxu0 0
        %1739 = vmatprep.subr.bf16.mxu0 0
        %1740 = vmatpush1.bf16.msra.mxu0 0
        %1741 = vmatprep.mubr.bf16.mxu0 0
        %1742 = vmatmul.mubr.bf16.gmra.mrb[0].mxu0 %v1340
        %v1743 = vpop.f32.mrb[0].mxu0
        %v1744 = vadd.f32 0.0, %v1743
        %v1745 = vpop.f32.mrb[0].mxu0
        %v1746 = vadd.f32 0.0, %v1745
        %v1747 = vpop.f32.mrb[0].mxu0
        %v1748 = vadd.f32 0.0, %v1747
        %v1749 = vpop.f32.mrb[0].mxu0
        %v1750 = vadd.f32 0.0, %v1749
        %1751 = vmatprep.mubr.bf16.mxu0 0
        %1752 = vmatmul.mubr.bf16.gmra.mrb[0].mxu0 %v1341
        %v1753 = vpop.f32.mrb[0].mxu0
        %v1754 = vadd.f32 0.0, %v1753
        %v1755 = vpop.f32.mrb[0].mxu0
        %v1756 = vadd.f32 0.0, %v1755
        %v1757 = vpop.f32.mrb[0].mxu0
        %v1758 = vadd.f32 0.0, %v1757
        %v1759 = vpop.f32.mrb[0].mxu0
        %v1760 = vadd.f32 0.0, %v1759
        %1761 = vmatprep.mubr.bf16.mxu0 0
        %1762 = vmatmul.mubr.bf16.gmra.mrb[0].mxu0 %v1342
        %v1763 = vpop.f32.mrb[0].mxu0
        %v1764 = vadd.f32 0.0, %v1763
        %v1765 = vpop.f32.mrb[0].mxu0
        %v1766 = vadd.f32 0.0, %v1765
        %v1767 = vpop.f32.mrb[0].mxu0
        %v1768 = vadd.f32 0.0, %v1767
        %v1769 = vpop.f32.mrb[0].mxu0
        %v1770 = vadd.f32 0.0, %v1769
        %1771 = vdwg.mxu0
        %v1772 = vmul.f32 %v1618, %v1618
        %v1773 = vmul.f32 %v1620, %v1620
        %v1774 = vmul.f32 %v1681, %v1681
        %v1775 = vmul.f32 %v1622, %v1622
        %v1776 = vmul.f32 %v1624, %v1624
        %v1777 = vmul.f32 %v1685, %v1685
        %v1778 = vmul.f32 %v1628, %v1628
        %v1779 = vmul.f32 %v1630, %v1630
        %v1780 = vmul.f32 %v1691, %v1691
        %v1781 = vmul.f32 %v1632, %v1632
        %v1782 = vmul.f32 %v1634, %v1634
        %v1783 = vmul.f32 %v1695, %v1695
        %v1784 = vmul.f32 %v1638, %v1638
        %v1785 = vmul.f32 %v1640, %v1640
        %v1786 = vmul.f32 %v1701, %v1701
        %v1787 = vmul.f32 %v1642, %v1642
        %v1788 = vmul.f32 %v1644, %v1644
        %v1789 = vmul.f32 %v1705, %v1705
        %v1790 = vadd.f32 %v1772, %v1778
        %v1791 = vadd.f32 %v1790, %v1784
        %v1792 = vadd.f32 %v1773, %v1779
        %v1793 = vadd.f32 %v1792, %v1785
        %v1794 = vadd.f32 %v1774, %v1780
        %v1795 = vadd.f32 %v1794, %v1786
        %v1796 = vadd.f32 %v1775, %v1781
        %v1797 = vadd.f32 %v1796, %v1787
        %v1798 = vadd.f32 %v1776, %v1782
        %v1799 = vadd.f32 %v1798, %v1788
        %v1800 = vadd.f32 %v1777, %v1783
        %v1801 = vadd.f32 %v1800, %v1789
        %v1802 = vrsqrt.pop %v1791
        %v1803 = vmul.f32 %v1791, %v1802
        %vm1804 = vcmp.eq.f32.partialorder %v1791, inf
        %v1805 = vsel %vm1804, %v1791, %v1803
        %vm1806 = vcmp.eq.f32.partialorder %v1791, 0.0
        %v1807 = vand.u32 %v1791, 2147483648
        %v1808 = vsel %vm1806, %v1807, %v1805
        %v1809 = vrsqrt.pop %v1793
        %v1810 = vmul.f32 %v1793, %v1809
        %vm1811 = vcmp.eq.f32.partialorder %v1793, inf
        %v1812 = vsel %vm1811, %v1793, %v1810
        %vm1813 = vcmp.eq.f32.partialorder %v1793, 0.0
        %v1814 = vand.u32 %v1793, 2147483648
        %v1815 = vsel %vm1813, %v1814, %v1812
        %v1816 = vrsqrt.pop %v1795
        %v1817 = vmul.f32 %v1795, %v1816
        %vm1818 = vcmp.eq.f32.partialorder %v1795, inf
        %v1819 = vsel %vm1818, %v1795, %v1817
        %vm1820 = vcmp.eq.f32.partialorder %v1795, 0.0
        %v1821 = vand.u32 %v1795, 2147483648
        %v1822 = vsel %vm1820, %v1821, %v1819
        %v1823 = vrsqrt.pop %v1797
        %v1824 = vmul.f32 %v1797, %v1823
        %vm1825 = vcmp.eq.f32.partialorder %v1797, inf
        %v1826 = vsel %vm1825, %v1797, %v1824
        %vm1827 = vcmp.eq.f32.partialorder %v1797, 0.0
        %v1828 = vand.u32 %v1797, 2147483648
        %v1829 = vsel %vm1827, %v1828, %v1826
        %v1830 = vrsqrt.pop %v1799
        %v1831 = vmul.f32 %v1799, %v1830
        %vm1832 = vcmp.eq.f32.partialorder %v1799, inf
        %v1833 = vsel %vm1832, %v1799, %v1831
        %vm1834 = vcmp.eq.f32.partialorder %v1799, 0.0
        %v1835 = vand.u32 %v1799, 2147483648
        %v1836 = vsel %vm1834, %v1835, %v1833
        %v1837 = vrsqrt.pop %v1801
        %v1838 = vmul.f32 %v1801, %v1837
        %vm1839 = vcmp.eq.f32.partialorder %v1801, inf
        %v1840 = vsel %vm1839, %v1801, %v1838
        %vm1841 = vcmp.eq.f32.partialorder %v1801, 0.0
        %v1842 = vand.u32 %v1801, 2147483648
        %v1843 = vsel %vm1841, %v1842, %v1840
        %v1844 = vadd.f32 %v1808, 1e-06
        %v1845 = vadd.f32 %v1815, 1e-06
        %v1846 = vadd.f32 %v1822, 1e-06
        %v1847 = vadd.f32 %v1829, 1e-06
        %v1848 = vadd.f32 %v1836, 1e-06
        %v1849 = vadd.f32 %v1843, 1e-06
        %v1851 = vlaneseq
        %v1852 = vshrl.u32 %v1851, 7
        %v1853 = vsub.s32 0, %v1852
        %v1854 = vrot.slane %v1338, %v1853
        %v1855 = vlaneseq
        %v1856 = vshrl.u32 %v1855, 7
        %v1857 = vsub.s32 1, %v1856
        %v1858 = vrot.slane %v1338, %v1857
        %v1859 = vlaneseq
        %v1860 = vshrl.u32 %v1859, 7
        %v1861 = vsub.s32 2, %v1860
        %v1862 = vrot.slane %v1338, %v1861
        %v1866 = vmul.f32 %v1844, %v1854
        %v1867 = vmul.f32 %v1845, %v1858
        %v1868 = vmul.f32 %v1846, %v1862
        %v1869 = vmul.f32 %v1847, %v1854
        %v1870 = vmul.f32 %v1848, %v1858
        %v1871 = vmul.f32 %v1849, %v1862
        %v1873 = vlaneseq
        %v1874 = vshrl.u32 %v1873, 7
        %v1875 = vsub.s32 0, %v1874
        %v1876 = vrot.slane %v1339, %v1875
        %v1877 = vlaneseq
        %v1878 = vshrl.u32 %v1877, 7
        %v1879 = vsub.s32 1, %v1878
        %v1880 = vrot.slane %v1339, %v1879
        %v1881 = vlaneseq
        %v1882 = vshrl.u32 %v1881, 7
        %v1883 = vsub.s32 2, %v1882
        %v1884 = vrot.slane %v1339, %v1883
        %v1888 = vadd.f32 %v1866, %v1876
        %v1889 = vadd.f32 %v1867, %v1880
        %v1890 = vadd.f32 %v1868, %v1884
        %v1891 = vadd.f32 %v1869, %v1876
        %v1892 = vadd.f32 %v1870, %v1880
        %v1893 = vadd.f32 %v1871, %v1884
        %v1894 = vrcp.pop %v1844
        %v1895 = vmul.f32 %v1888, %v1894
        %v1896 = vrcp.pop %v1845
        %v1897 = vmul.f32 %v1889, %v1896
        %v1898 = vrcp.pop %v1846
        %v1899 = vmul.f32 %v1890, %v1898
        %v1900 = vrcp.pop %v1847
        %v1901 = vmul.f32 %v1891, %v1900
        %v1902 = vrcp.pop %v1848
        %v1903 = vmul.f32 %v1892, %v1902
        %v1904 = vrcp.pop %v1849
        %v1905 = vmul.f32 %v1893, %v1904
        %v1906 = vmul.f32 %v1618, %v1895
        %v1907 = vmul.f32 %v1620, %v1897
        %v1908 = vmul.f32 %v1681, %v1899
        %v1909 = vmul.f32 %v1622, %v1901
        %v1910 = vmul.f32 %v1624, %v1903
        %v1911 = vmul.f32 %v1685, %v1905
        %v1912 = vmul.f32 %v1628, %v1895
        %v1913 = vmul.f32 %v1630, %v1897
        %v1914 = vmul.f32 %v1691, %v1899
        %v1915 = vmul.f32 %v1632, %v1901
        %v1916 = vmul.f32 %v1634, %v1903
        %v1917 = vmul.f32 %v1695, %v1905
        %v1918 = vmul.f32 %v1638, %v1895
        %v1919 = vmul.f32 %v1640, %v1897
        %v1920 = vmul.f32 %v1701, %v1899
        %v1921 = vmul.f32 %v1642, %v1901
        %v1922 = vmul.f32 %v1644, %v1903
        %v1923 = vmul.f32 %v1705, %v1905
        %v1924 = vmul.f32 %v1906, %v1683
        %v1925 = vmul.f32 %v1907, %v1744
        %v1926 = vmul.f32 %v1908, %v1746
        %v1927 = vmul.f32 %v1909, %v1687
        %v1928 = vmul.f32 %v1910, %v1748
        %v1929 = vmul.f32 %v1911, %v1750
        %v1930 = vmul.f32 %v1912, %v1693
        %v1931 = vmul.f32 %v1913, %v1754
        %v1932 = vmul.f32 %v1914, %v1756
        %v1933 = vmul.f32 %v1915, %v1697
        %v1934 = vmul.f32 %v1916, %v1758
        %v1935 = vmul.f32 %v1917, %v1760
        %v1936 = vmul.f32 %v1918, %v1703
        %v1937 = vmul.f32 %v1919, %v1764
        %v1938 = vmul.f32 %v1920, %v1766
        %v1939 = vmul.f32 %v1921, %v1707
        %v1940 = vmul.f32 %v1922, %v1768
        %v1941 = vmul.f32 %v1923, %v1770
        %v1942 = vadd.f32 %v1924, %v1930
        %v1943 = vadd.f32 %v1942, %v1936
        %v1944 = vadd.f32 %v1925, %v1931
        %v1945 = vadd.f32 %v1944, %v1937
        %v1946 = vadd.f32 %v1926, %v1932
        %v1947 = vadd.f32 %v1946, %v1938
        %v1948 = vadd.f32 %v1927, %v1933
        %v1949 = vadd.f32 %v1948, %v1939
        %v1950 = vadd.f32 %v1928, %v1934
        %v1951 = vadd.f32 %v1950, %v1940
        %v1952 = vadd.f32 %v1929, %v1935
        %v1953 = vadd.f32 %v1952, %v1941
        %v1954 = vmul.f32 %v1683, %v1683
        %v1955 = vmul.f32 %v1744, %v1744
        %v1956 = vmul.f32 %v1746, %v1746
        %v1957 = vmul.f32 %v1687, %v1687
        %v1958 = vmul.f32 %v1748, %v1748
        %v1959 = vmul.f32 %v1750, %v1750
        %v1960 = vmul.f32 %v1693, %v1693
        %v1961 = vmul.f32 %v1754, %v1754
        %v1962 = vmul.f32 %v1756, %v1756
        %v1963 = vmul.f32 %v1697, %v1697
        %v1964 = vmul.f32 %v1758, %v1758
        %v1965 = vmul.f32 %v1760, %v1760
        %v1966 = vmul.f32 %v1703, %v1703
        %v1967 = vmul.f32 %v1764, %v1764
        %v1968 = vmul.f32 %v1766, %v1766
        %v1969 = vmul.f32 %v1707, %v1707
        %v1970 = vmul.f32 %v1768, %v1768
        %v1971 = vmul.f32 %v1770, %v1770
        %v1972 = vadd.f32 %v1954, %v1960
        %v1973 = vadd.f32 %v1972, %v1966
        %v1974 = vadd.f32 %v1955, %v1961
        %v1975 = vadd.f32 %v1974, %v1967
        %v1976 = vadd.f32 %v1956, %v1962
        %v1977 = vadd.f32 %v1976, %v1968
        %v1978 = vadd.f32 %v1957, %v1963
        %v1979 = vadd.f32 %v1978, %v1969
        %v1980 = vadd.f32 %v1958, %v1964
        %v1981 = vadd.f32 %v1980, %v1970
        %v1982 = vadd.f32 %v1959, %v1965
        %v1983 = vadd.f32 %v1982, %v1971
        %v1984 = vadd.f32 %v1973, 1e-06
        %v1985 = vadd.f32 %v1975, 1e-06
        %v1986 = vadd.f32 %v1977, 1e-06
        %v1987 = vadd.f32 %v1979, 1e-06
        %v1988 = vadd.f32 %v1981, 1e-06
        %v1989 = vadd.f32 %v1983, 1e-06
        %v1990 = vrcp.pop %v1984
        %v1991 = vmul.f32 %v1943, %v1990
        %v1992 = vrcp.pop %v1985
        %v1993 = vmul.f32 %v1945, %v1992
        %v1994 = vrcp.pop %v1986
        %v1995 = vmul.f32 %v1947, %v1994
        %v1996 = vrcp.pop %v1987
        %v1997 = vmul.f32 %v1949, %v1996
        %v1998 = vrcp.pop %v1988
        %v1999 = vmul.f32 %v1951, %v1998
        %v2000 = vrcp.pop %v1989
        %v2001 = vmul.f32 %v1953, %v2000
        %vm2002 = vcmp.ge.f32.partialorder %v1943, 0.0
        %vm2003 = vcmp.ge.f32.partialorder %v1945, 0.0
        %vm2004 = vcmp.ge.f32.partialorder %v1947, 0.0
        %vm2005 = vcmp.ge.f32.partialorder %v1949, 0.0
        %vm2006 = vcmp.ge.f32.partialorder %v1951, 0.0
        %vm2007 = vcmp.ge.f32.partialorder %v1953, 0.0
        %v2008 = vmul.f32 %v1991, %v1683
        %v2009 = vmul.f32 %v1993, %v1744
        %v2010 = vmul.f32 %v1995, %v1746
        %v2011 = vmul.f32 %v1997, %v1687
        %v2012 = vmul.f32 %v1999, %v1748
        %v2013 = vmul.f32 %v2001, %v1750
        %v2014 = vmul.f32 %v1991, %v1693
        %v2015 = vmul.f32 %v1993, %v1754
        %v2016 = vmul.f32 %v1995, %v1756
        %v2017 = vmul.f32 %v1997, %v1697
        %v2018 = vmul.f32 %v1999, %v1758
        %v2019 = vmul.f32 %v2001, %v1760
        %v2020 = vmul.f32 %v1991, %v1703
        %v2021 = vmul.f32 %v1993, %v1764
        %v2022 = vmul.f32 %v1995, %v1766
        %v2023 = vmul.f32 %v1997, %v1707
        %v2024 = vmul.f32 %v1999, %v1768
        %v2025 = vmul.f32 %v2001, %v1770
        %v2026 = vsub.f32 %v1906, %v2008
        %v2027 = vsub.f32 %v1907, %v2009
        %v2028 = vsub.f32 %v1908, %v2010
        %v2029 = vsub.f32 %v1909, %v2011
        %v2030 = vsub.f32 %v1910, %v2012
        %v2031 = vsub.f32 %v1911, %v2013
        %v2032 = vsub.f32 %v1912, %v2014
        %v2033 = vsub.f32 %v1913, %v2015
        %v2034 = vsub.f32 %v1914, %v2016
        %v2035 = vsub.f32 %v1915, %v2017
        %v2036 = vsub.f32 %v1916, %v2018
        %v2037 = vsub.f32 %v1917, %v2019
        %v2038 = vsub.f32 %v1918, %v2020
        %v2039 = vsub.f32 %v1919, %v2021
        %v2040 = vsub.f32 %v1920, %v2022
        %v2041 = vsub.f32 %v1921, %v2023
        %v2042 = vsub.f32 %v1922, %v2024
        %v2043 = vsub.f32 %v1923, %v2025
        %v2044 = vsel %vm2002, 1, 0
        %v2045 = vsel %vm2003, 1, 0
        %v2046 = vsel %vm2004, 1, 0
        %v2047 = vsel %vm2005, 1, 0
        %v2048 = vsel %vm2006, 1, 0
        %v2049 = vsel %vm2007, 1, 0
        %vm2050 = vcmp.eq.s32.totalorder %v2044, 1
        %vm2051 = vcmp.eq.s32.totalorder %v2045, 1
        %vm2052 = vcmp.eq.s32.totalorder %v2046, 1
        %vm2053 = vcmp.eq.s32.totalorder %v2047, 1
        %vm2054 = vcmp.eq.s32.totalorder %v2048, 1
        %vm2055 = vcmp.eq.s32.totalorder %v2049, 1
        %v2056 = vsel %vm2050, %v1906, %v2026
        %v2057 = vsel %vm2051, %v1907, %v2027
        %v2058 = vsel %vm2052, %v1908, %v2028
        %v2059 = vsel %vm2053, %v1909, %v2029
        %v2060 = vsel %vm2054, %v1910, %v2030
        %v2061 = vsel %vm2055, %v1911, %v2031
        %v2062 = vsel %vm2050, %v1912, %v2032
        %v2063 = vsel %vm2051, %v1913, %v2033
        %v2064 = vsel %vm2052, %v1914, %v2034
        %v2065 = vsel %vm2053, %v1915, %v2035
        %v2066 = vsel %vm2054, %v1916, %v2036
        %v2067 = vsel %vm2055, %v1917, %v2037
        %v2068 = vsel %vm2050, %v1918, %v2038
        %v2069 = vsel %vm2051, %v1919, %v2039
        %v2070 = vsel %vm2052, %v1920, %v2040
        %v2071 = vsel %vm2053, %v1921, %v2041
        %v2072 = vsel %vm2054, %v1922, %v2042
        %v2073 = vsel %vm2055, %v1923, %v2043
        %v2074 = vadd.f32 %v1772, %v1773
        %v2075 = vadd.f32 %v2074, %v1774
        %v2076 = vadd.f32 %v2075, %v1775
        %v2077 = vadd.f32 %v2076, %v1776
        %v2078 = vadd.f32 %v2077, %v1777
        %2079 = vadd.xlane.f32.xlu0 %v2078
        %v2080 = vpop.xlane.xlu0 %2079
        %v2081 = vrot.slane %v2080, 4
        %v2082 = vadd.f32 %v2080, %v2081
        %v2083 = vrot.slane %v2082, 2
        %v2084 = vadd.f32 %v2082, %v2083
        %v2085 = vrot.slane %v2084, 1
        %v2086 = vadd.f32 %v2084, %v2085
        %s2087 = vtos %v2086
        %v2088 = vadd.f32 %v1778, %v1779
        %v2089 = vadd.f32 %v2088, %v1780
        %v2090 = vadd.f32 %v2089, %v1781
        %v2091 = vadd.f32 %v2090, %v1782
        %v2092 = vadd.f32 %v2091, %v1783
        %2093 = vadd.xlane.f32.xlu0 %v2092
        %v2094 = vpop.xlane.xlu0 %2093
        %v2095 = vrot.slane %v2094, 4
        %v2096 = vadd.f32 %v2094, %v2095
        %v2097 = vrot.slane %v2096, 2
        %v2098 = vadd.f32 %v2096, %v2097
        %v2099 = vrot.slane %v2098, 1
        %v2100 = vadd.f32 %v2098, %v2099
        %s2101 = vtos %v2100
        %v2102 = vadd.f32 %v1784, %v1785
        %v2103 = vadd.f32 %v2102, %v1786
        %v2104 = vadd.f32 %v2103, %v1787
        %v2105 = vadd.f32 %v2104, %v1788
        %v2106 = vadd.f32 %v2105, %v1789
        %2107 = vadd.xlane.f32.xlu0 %v2106
        %v2108 = vpop.xlane.xlu0 %2107
        %v2109 = vrot.slane %v2108, 4
        %v2110 = vadd.f32 %v2108, %v2109
        %v2111 = vrot.slane %v2110, 2
        %v2112 = vadd.f32 %v2110, %v2111
        %v2113 = vrot.slane %v2112, 1
        %v2114 = vadd.f32 %v2112, %v2113
        %s2115 = vtos %v2114
        %v2116 = vmul.f32 %v1618, %v1628
        %v2117 = vmul.f32 %v1620, %v1630
        %v2118 = vmul.f32 %v1681, %v1691
        %v2119 = vmul.f32 %v1622, %v1632
        %v2120 = vmul.f32 %v1624, %v1634
        %v2121 = vmul.f32 %v1685, %v1695
        %v2122 = vadd.f32 %v2116, %v2117
        %v2123 = vadd.f32 %v2122, %v2118
        %v2124 = vadd.f32 %v2123, %v2119
        %v2125 = vadd.f32 %v2124, %v2120
        %v2126 = vadd.f32 %v2125, %v2121
        %2127 = vadd.xlane.f32.xlu0 %v2126
        %v2128 = vpop.xlane.xlu0 %2127
        %v2129 = vrot.slane %v2128, 4
        %v2130 = vadd.f32 %v2128, %v2129
        %v2131 = vrot.slane %v2130, 2
        %v2132 = vadd.f32 %v2130, %v2131
        %v2133 = vrot.slane %v2132, 1
        %v2134 = vadd.f32 %v2132, %v2133
        %s2135 = vtos %v2134
        %v2136 = vmul.f32 %v1618, %v1638
        %v2137 = vmul.f32 %v1620, %v1640
        %v2138 = vmul.f32 %v1681, %v1701
        %v2139 = vmul.f32 %v1622, %v1642
        %v2140 = vmul.f32 %v1624, %v1644
        %v2141 = vmul.f32 %v1685, %v1705
        %v2142 = vadd.f32 %v2136, %v2137
        %v2143 = vadd.f32 %v2142, %v2138
        %v2144 = vadd.f32 %v2143, %v2139
        %v2145 = vadd.f32 %v2144, %v2140
        %v2146 = vadd.f32 %v2145, %v2141
        %2147 = vadd.xlane.f32.xlu0 %v2146
        %v2148 = vpop.xlane.xlu0 %2147
        %v2149 = vrot.slane %v2148, 4
        %v2150 = vadd.f32 %v2148, %v2149
        %v2151 = vrot.slane %v2150, 2
        %v2152 = vadd.f32 %v2150, %v2151
        %v2153 = vrot.slane %v2152, 1
        %v2154 = vadd.f32 %v2152, %v2153
        %s2155 = vtos %v2154
        %v2156 = vmul.f32 %v1628, %v1638
        %v2157 = vmul.f32 %v1630, %v1640
        %v2158 = vmul.f32 %v1691, %v1701
        %v2159 = vmul.f32 %v1632, %v1642
        %v2160 = vmul.f32 %v1634, %v1644
        %v2161 = vmul.f32 %v1695, %v1705
        %v2162 = vadd.f32 %v2156, %v2157
        %v2163 = vadd.f32 %v2162, %v2158
        %v2164 = vadd.f32 %v2163, %v2159
        %v2165 = vadd.f32 %v2164, %v2160
        %v2166 = vadd.f32 %v2165, %v2161
        %2167 = vadd.xlane.f32.xlu0 %v2166
        %v2168 = vpop.xlane.xlu0 %2167
        %v2169 = vrot.slane %v2168, 4
        %v2170 = vadd.f32 %v2168, %v2169
        %v2171 = vrot.slane %v2170, 2
        %v2172 = vadd.f32 %v2170, %v2171
        %v2173 = vrot.slane %v2172, 1
        %v2174 = vadd.f32 %v2172, %v2173
        %s2175 = vtos %v2174
        %s2176 = smul.f32 %s760, %s2087
        %s2177 = smul.f32 %s762, %s2101
        %s2178 = sadd.f32 %s2176, %s2177
        %s2179 = smul.f32 %s765, %s2115
        %s2180 = sadd.f32 %s2178, %s2179
        %s2181 = smul.f32 %s768, %s2135
        %s2182 = smul.f32 %s770, %s2155
        %s2183 = sadd.f32 %s2181, %s2182
        %s2184 = smul.f32 %s773, %s2175
        %s2185 = sadd.f32 %s2183, %s2184
        %s2186 = smul.f32 %s2185, 2.0
        %s2187 = sadd.f32 %s2180, %s2186
        %v2188 = vmul.f32 %v2056, %v2056
        %v2189 = vmul.f32 %v2057, %v2057
        %v2190 = vmul.f32 %v2058, %v2058
        %v2191 = vmul.f32 %v2059, %v2059
        %v2192 = vmul.f32 %v2060, %v2060
        %v2193 = vmul.f32 %v2061, %v2061
        %v2194 = vadd.f32 %v2188, %v2189
        %v2195 = vadd.f32 %v2194, %v2190
        %v2196 = vadd.f32 %v2195, %v2191
        %v2197 = vadd.f32 %v2196, %v2192
        %v2198 = vadd.f32 %v2197, %v2193
        %2199 = vadd.xlane.f32.xlu0 %v2198
        %v2200 = vpop.xlane.xlu0 %2199
        %v2201 = vrot.slane %v2200, 4
        %v2202 = vadd.f32 %v2200, %v2201
        %v2203 = vrot.slane %v2202, 2
        %v2204 = vadd.f32 %v2202, %v2203
        %v2205 = vrot.slane %v2204, 1
        %v2206 = vadd.f32 %v2204, %v2205
        %s2207 = vtos %v2206
        %v2208 = vmul.f32 %v2062, %v2062
        %v2209 = vmul.f32 %v2063, %v2063
        %v2210 = vmul.f32 %v2064, %v2064
        %v2211 = vmul.f32 %v2065, %v2065
        %v2212 = vmul.f32 %v2066, %v2066
        %v2213 = vmul.f32 %v2067, %v2067
        %v2214 = vadd.f32 %v2208, %v2209
        %v2215 = vadd.f32 %v2214, %v2210
        %v2216 = vadd.f32 %v2215, %v2211
        %v2217 = vadd.f32 %v2216, %v2212
        %v2218 = vadd.f32 %v2217, %v2213
        %2219 = vadd.xlane.f32.xlu0 %v2218
        %v2220 = vpop.xlane.xlu0 %2219
        %v2221 = vrot.slane %v2220, 4
        %v2222 = vadd.f32 %v2220, %v2221
        %v2223 = vrot.slane %v2222, 2
        %v2224 = vadd.f32 %v2222, %v2223
        %v2225 = vrot.slane %v2224, 1
        %v2226 = vadd.f32 %v2224, %v2225
        %s2227 = vtos %v2226
        %v2228 = vmul.f32 %v2068, %v2068
        %v2229 = vmul.f32 %v2069, %v2069
        %v2230 = vmul.f32 %v2070, %v2070
        %v2231 = vmul.f32 %v2071, %v2071
        %v2232 = vmul.f32 %v2072, %v2072
        %v2233 = vmul.f32 %v2073, %v2073
        %v2234 = vadd.f32 %v2228, %v2229
        %v2235 = vadd.f32 %v2234, %v2230
        %v2236 = vadd.f32 %v2235, %v2231
        %v2237 = vadd.f32 %v2236, %v2232
        %v2238 = vadd.f32 %v2237, %v2233
        %2239 = vadd.xlane.f32.xlu0 %v2238
        %v2240 = vpop.xlane.xlu0 %2239
        %v2241 = vrot.slane %v2240, 4
        %v2242 = vadd.f32 %v2240, %v2241
        %v2243 = vrot.slane %v2242, 2
        %v2244 = vadd.f32 %v2242, %v2243
        %v2245 = vrot.slane %v2244, 1
        %v2246 = vadd.f32 %v2244, %v2245
        %s2247 = vtos %v2246
        %v2248 = vmul.f32 %v2056, %v2062
        %v2249 = vmul.f32 %v2057, %v2063
        %v2250 = vmul.f32 %v2058, %v2064
        %v2251 = vmul.f32 %v2059, %v2065
        %v2252 = vmul.f32 %v2060, %v2066
        %v2253 = vmul.f32 %v2061, %v2067
        %v2254 = vadd.f32 %v2248, %v2249
        %v2255 = vadd.f32 %v2254, %v2250
        %v2256 = vadd.f32 %v2255, %v2251
        %v2257 = vadd.f32 %v2256, %v2252
        %v2258 = vadd.f32 %v2257, %v2253
        %2259 = vadd.xlane.f32.xlu0 %v2258
        %v2260 = vpop.xlane.xlu0 %2259
        %v2261 = vrot.slane %v2260, 4
        %v2262 = vadd.f32 %v2260, %v2261
        %v2263 = vrot.slane %v2262, 2
        %v2264 = vadd.f32 %v2262, %v2263
        %v2265 = vrot.slane %v2264, 1
        %v2266 = vadd.f32 %v2264, %v2265
        %s2267 = vtos %v2266
        %v2268 = vmul.f32 %v2056, %v2068
        %v2269 = vmul.f32 %v2057, %v2069
        %v2270 = vmul.f32 %v2058, %v2070
        %v2271 = vmul.f32 %v2059, %v2071
        %v2272 = vmul.f32 %v2060, %v2072
        %v2273 = vmul.f32 %v2061, %v2073
        %v2274 = vadd.f32 %v2268, %v2269
        %v2275 = vadd.f32 %v2274, %v2270
        %v2276 = vadd.f32 %v2275, %v2271
        %v2277 = vadd.f32 %v2276, %v2272
        %v2278 = vadd.f32 %v2277, %v2273
        %2279 = vadd.xlane.f32.xlu0 %v2278
        %v2280 = vpop.xlane.xlu0 %2279
        %v2281 = vrot.slane %v2280, 4
        %v2282 = vadd.f32 %v2280, %v2281
        %v2283 = vrot.slane %v2282, 2
        %v2284 = vadd.f32 %v2282, %v2283
        %v2285 = vrot.slane %v2284, 1
        %v2286 = vadd.f32 %v2284, %v2285
        %s2287 = vtos %v2286
        %v2288 = vmul.f32 %v2062, %v2068
        %v2289 = vmul.f32 %v2063, %v2069
        %v2290 = vmul.f32 %v2064, %v2070
        %v2291 = vmul.f32 %v2065, %v2071
        %v2292 = vmul.f32 %v2066, %v2072
        %v2293 = vmul.f32 %v2067, %v2073
        %v2294 = vadd.f32 %v2288, %v2289
        %v2295 = vadd.f32 %v2294, %v2290
        %v2296 = vadd.f32 %v2295, %v2291
        %v2297 = vadd.f32 %v2296, %v2292
        %v2298 = vadd.f32 %v2297, %v2293
        %2299 = vadd.xlane.f32.xlu0 %v2298
        %v2300 = vpop.xlane.xlu0 %2299
        %v2301 = vrot.slane %v2300, 4
        %v2302 = vadd.f32 %v2300, %v2301
        %v2303 = vrot.slane %v2302, 2
        %v2304 = vadd.f32 %v2302, %v2303
        %v2305 = vrot.slane %v2304, 1
        %v2306 = vadd.f32 %v2304, %v2305
        %s2307 = vtos %v2306
        %s2308 = smul.f32 %s760, %s2207
        %s2309 = smul.f32 %s762, %s2227
        %s2310 = sadd.f32 %s2308, %s2309
        %s2311 = smul.f32 %s765, %s2247
        %s2312 = sadd.f32 %s2310, %s2311
        %s2313 = smul.f32 %s768, %s2267
        %s2314 = smul.f32 %s770, %s2287
        %s2315 = sadd.f32 %s2313, %s2314
        %s2316 = smul.f32 %s773, %s2307
        %s2317 = sadd.f32 %s2315, %s2316
        %s2318 = smul.f32 %s2317, 2.0
        %s2319 = sadd.f32 %s2312, %s2318
        %v2320 = vadd.f32 %v2056, %v2059
        %v2321 = vrot.slane %v2320, 4
        %v2322 = vadd.f32 %v2320, %v2321
        %v2323 = vrot.slane %v2322, 2
        %v2324 = vadd.f32 %v2322, %v2323
        %v2325 = vrot.slane %v2324, 1
        %v2326 = vadd.f32 %v2324, %v2325
        %v2327 = vadd.f32 %v2057, %v2060
        %v2328 = vrot.slane %v2327, 4
        %v2329 = vadd.f32 %v2327, %v2328
        %v2330 = vrot.slane %v2329, 2
        %v2331 = vadd.f32 %v2329, %v2330
        %v2332 = vrot.slane %v2331, 1
        %v2333 = vadd.f32 %v2331, %v2332
        %v2334 = vadd.f32 %v2058, %v2061
        %v2335 = vrot.slane %v2334, 4
        %v2336 = vadd.f32 %v2334, %v2335
        %v2337 = vrot.slane %v2336, 2
        %v2338 = vadd.f32 %v2336, %v2337
        %v2339 = vrot.slane %v2338, 1
        %v2340 = vadd.f32 %v2338, %v2339
        %v2341 = vadd.f32 %v2062, %v2065
        %v2342 = vrot.slane %v2341, 4
        %v2343 = vadd.f32 %v2341, %v2342
        %v2344 = vrot.slane %v2343, 2
        %v2345 = vadd.f32 %v2343, %v2344
        %v2346 = vrot.slane %v2345, 1
        %v2347 = vadd.f32 %v2345, %v2346
        %v2348 = vadd.f32 %v2063, %v2066
        %v2349 = vrot.slane %v2348, 4
        %v2350 = vadd.f32 %v2348, %v2349
        %v2351 = vrot.slane %v2350, 2
        %v2352 = vadd.f32 %v2350, %v2351
        %v2353 = vrot.slane %v2352, 1
        %v2354 = vadd.f32 %v2352, %v2353
        %v2355 = vadd.f32 %v2064, %v2067
        %v2356 = vrot.slane %v2355, 4
        %v2357 = vadd.f32 %v2355, %v2356
        %v2358 = vrot.slane %v2357, 2
        %v2359 = vadd.f32 %v2357, %v2358
        %v2360 = vrot.slane %v2359, 1
        %v2361 = vadd.f32 %v2359, %v2360
        %v2362 = vadd.f32 %v2068, %v2071
        %v2363 = vrot.slane %v2362, 4
        %v2364 = vadd.f32 %v2362, %v2363
        %v2365 = vrot.slane %v2364, 2
        %v2366 = vadd.f32 %v2364, %v2365
        %v2367 = vrot.slane %v2366, 1
        %v2368 = vadd.f32 %v2366, %v2367
        %v2369 = vadd.f32 %v2069, %v2072
        %v2370 = vrot.slane %v2369, 4
        %v2371 = vadd.f32 %v2369, %v2370
        %v2372 = vrot.slane %v2371, 2
        %v2373 = vadd.f32 %v2371, %v2372
        %v2374 = vrot.slane %v2373, 1
        %v2375 = vadd.f32 %v2373, %v2374
        %v2376 = vadd.f32 %v2070, %v2073
        %v2377 = vrot.slane %v2376, 4
        %v2378 = vadd.f32 %v2376, %v2377
        %v2379 = vrot.slane %v2378, 2
        %v2380 = vadd.f32 %v2378, %v2379
        %v2381 = vrot.slane %v2380, 1
        %v2382 = vadd.f32 %v2380, %v2381
        %v2392 = vcombine.low %v2326, %v2333
        %v2393 = vcombine.low %v2347, %v2354
        %v2394 = vcombine.low %v2368, %v2375
        %v2395 = vrot.slane %v2393, 7
        %vm2396 = vcmask 1041409
        %v2397 = vsel %vm2396, %v2395, %v2392
        %vm2398 = vcmask 1045509
        %v2399 = vsel %vm2398, %v2395, %v2397
        %v2400 = vrot.slane %v2394, 6
        %vm2401 = vcmask 1042434
        %v2402 = vsel %vm2401, %v2400, %v2399
        %vm2403 = vcmask 1046534
        %v2404 = vsel %vm2403, %v2400, %v2402
        %v2405 = vrot.slane %v2361, 7
        %v2406 = vsel %vm2396, %v2405, %v2340
        %v2407 = vsel %vm2398, %v2405, %v2406
        %v2408 = vrot.slane %v2382, 6
        %v2409 = vsel %vm2401, %v2408, %v2407
        %v2410 = vsel %vm2403, %v2408, %v2409
        %2413 = vst [vmem:[%s490] sm:$0x77] %v2404
        %2414 = vst [vmem:[%s490 + $0x8] sm:$0x7] %v2410
        %s2415 = sadd.f32 %s777, %s1205
        %s2416 = sadd.f32 %s2415, %s2187
        %s2417 = sadd.f32 %s861, %s1289
        %s2418 = sadd.f32 %s2417, %s2319
        %v2419 = vlaneseq
        %v2420 = vshrl.u32 %v2419, 7
        %v2421 = vlaneseq
        %v2422 = vand.u32 %v2421, 127
        %vm2423 = vcmp.eq.s32.totalorder %v2420, 0
        %vm2424 = vcmp.eq.s32.totalorder %v2422, 0
        %vm2425 = vmand %vm2423, %vm2424
        %v2426 = vstv %s2416
        %v2427 = vsel %vm2425, %v2426, 0.0
        %vm2428 = vcmp.eq.s32.totalorder %v2422, 1
        %vm2429 = vmand %vm2423, %vm2428
        %v2430 = vstv %s2418
        %v2431 = vsel %vm2429, %v2430, %v2427
        %2432 = vst [vmem:[%s494] sm:$0xff] %v2431
        %p2433 = scmp.lt.s32.totalorder %s25, 1
        %s2434 = scalar_select %p2433, %s25, 1
        %s2435 = smul.addr %s2434, 3
        %s2436 = smul.addr %s2435, 4
        %s2437 = scalar_lea.vmem %s11, %s2436
        %p2438 = scmp.lt.s32.totalorder %s25, 1
        %s2439 = scalar_select %p2438, %s25, 1
        %s2440 = smul.addr %s2439, 8
        %s2441 = scalar_lea.vmem %s12, %s2440
        // Predicated region
        $region107: #{stnkd_dual_forward.2} parent=97 // pred_check
          %p2442 = pneg %p279
        $region108: #{stnkd_dual_forward.2} parent=97 // pred_check_branch
          %2444 = sbr.rel (%p2442) target = $region110
        $region109: #{stnkd_dual_forward.2} parent=97 // pred_region
          _
        $region110: #{stnkd_dual_forward.2} parent=97 // pred_fallthru
          _
        // Predicated region
        $region111: #{stnkd_dual_forward.2} parent=97 // pred_check
          %p2445 = pneg %p305
        $region112: #{stnkd_dual_forward.2} parent=97 // pred_check_branch
          %2447 = sbr.rel (%p2445) target = $region114
        $region113: #{stnkd_dual_forward.2} parent=97 // pred_region
          _
        $region114: #{stnkd_dual_forward.2} parent=97 // pred_fallthru
          _
      $region98: #{stnkd_dual_forward.2} parent=5 // pred_fallthru
        _
      %p2448 = scmp.le.s32.totalorder 2, %s20
      // Predicated region
      $region115: #{stnkd_dual_forward.2} parent=5 // pred_check
        %p2449 = pneg %p2448
      $region116: #{stnkd_dual_forward.2} parent=5 // pred_check_branch
        %2451 = sbr.rel (%p2449) target = $region118
      $region117: #{stnkd_dual_forward.2} parent=5 // pred_region
        %s2452 = ssub.s32 %s20, 2
        // Predicated region
        $region119: #{stnkd_dual_forward.2} parent=117 // pred_check
          %p2453 = pneg %p285
        $region120: #{stnkd_dual_forward.2} parent=117 // pred_check_branch
          %2455 = sbr.rel (%p2453) target = $region122
        $region121: #{stnkd_dual_forward.2} parent=117 // pred_region
          %p2456 = scmp.lt.s32.totalorder %s26, 1
          %s2457 = scalar_select %p2456, %s26, 1
          %s2458 = smul.addr %s2457, 3
          %s2459 = smul.addr %s2458, 4
          %s2460 = scalar_lea.vmem %s11, %s2459
        $region122: #{stnkd_dual_forward.2} parent=117 // pred_fallthru
          _
        // Predicated region
        $region123: #{stnkd_dual_forward.2} parent=117 // pred_check
          %p2461 = pneg %p311
        $region124: #{stnkd_dual_forward.2} parent=117 // pred_check_branch
          %2463 = sbr.rel (%p2461) target = $region126
        $region125: #{stnkd_dual_forward.2} parent=117 // pred_region
          %p2464 = scmp.lt.s32.totalorder %s26, 1
          %s2465 = scalar_select %p2464, %s26, 1
          %s2466 = smul.addr %s2465, 8
          %s2467 = scalar_lea.vmem %s12, %s2466
        $region126: #{stnkd_dual_forward.2} parent=117 // pred_fallthru
          _
      $region118: #{stnkd_dual_forward.2} parent=5 // pred_fallthru
        _
    $region6: #{stnkd_dual_forward.2} parent=1 // loop_footer
      %s24 = sadd.s32 1, %s20
    $region7: #{stnkd_dual_forward.2} parent=1 // loop_footer_branch
      %19 = sbr.rel target = $region3
    $region8: #{stnkd_dual_forward.2} parent=1 // loop_exit
      _
    %2468 = vsyncpa [#allocation4], 1
    %s2469 = scalar_lea.sflag [#allocation4], 1
    %2470 = vsyncpa %s2469, 1

// kernel: stnkd_dual_forward.3
$region0: #{stnkd_dual_forward.3}
  #allocation0 [shape = 'u32[]', space=smem, size = 0x4, offset = 0x4, fixed_abs, tag = 'smem constant byte address 0x4 - core index']
  #allocation1 [shape = 'u32[144,128]{1,0:T(1,128)}', space=vmem, size = 0x12000, scoped, tag = 'internal scratch']
  %s0 = inlined_call_operand.vmem [shape: f32[3,8,384], index: 0, kind: input, shape index: {}]
  %s1 = inlined_call_operand.vmem [shape: bf16[384,512], index: 1, kind: input, shape index: {}]
  %s2 = inlined_call_operand.vmem [shape: f32[1,256], index: 2, kind: input, shape index: {}]
  %s3 = inlined_call_operand.vmem [shape: f32[1,256], index: 3, kind: input, shape index: {}]
  %s4 = inlined_call_operand.vmem [shape: bf16[256,256], index: 4, kind: input, shape index: {}]
  %s5 = inlined_call_operand.vmem [shape: f32[1,128], index: 5, kind: input, shape index: {}]
  %s6 = inlined_call_operand.vmem [shape: f32[1,128], index: 6, kind: input, shape index: {}]
  %s7 = inlined_call_operand.vmem [shape: bf16[128,16], index: 7, kind: input, shape index: {}]
  %s8 = inlined_call_operand.vmem [shape: f32[3,3], index: 8, kind: input, shape index: {}]
  %s9 = inlined_call_operand.vmem [shape: f32[3,8,16], index: 9, kind: output, shape index: {0}]
  %s10 = inlined_call_operand.vmem [shape: f32[8,128], index: 10, kind: output, shape index: {1}]
  %11 = xla_tuple %s9, %s10
  %s12 = sld [smem:[#allocation0]]
  $region58: #{stnkd_dual_forward.3} parent=0
    _
  %s14 = ssub.s32 1, %s12
  %s15 = scalar_select 0, %s14, %s12
  $region1: #{stnkd_dual_forward.3} parent=0
    #allocation2 [shape = 'u8[2048]{0}', space=smem, size = 0x800, scoped, tag = 'input window, operand 8, single buffered']
    #allocation3 [shape = 's32[1]{0}', space=sflag, size = 0x4, scoped, tag = 'scoped memory for stnkd_dual_forward.3']
    %16 = vsyncpa [#allocation3], 0
    // Predicated region
    $region2: #{stnkd_dual_forward.3} parent=1 // pred_check
      _
    $region3: #{stnkd_dual_forward.3} parent=1 // pred_check_branch
      %18 = sbr.rel (0) target = $region5
    $region4: #{stnkd_dual_forward.3} parent=1 // pred_region
      _
    $region5: #{stnkd_dual_forward.3} parent=1 // pred_fallthru
      _
    // Predicated region
    $region6: #{stnkd_dual_forward.3} parent=1 // pred_check
      _
    $region7: #{stnkd_dual_forward.3} parent=1 // pred_check_branch
      %20 = sbr.rel (0) target = $region9
    $region8: #{stnkd_dual_forward.3} parent=1 // pred_region
      _
    $region9: #{stnkd_dual_forward.3} parent=1 // pred_fallthru
      _
    // Predicated region
    $region10: #{stnkd_dual_forward.3} parent=1 // pred_check
      _
    $region11: #{stnkd_dual_forward.3} parent=1 // pred_check_branch
      %22 = sbr.rel (0) target = $region13
    $region12: #{stnkd_dual_forward.3} parent=1 // pred_region
      _
    $region13: #{stnkd_dual_forward.3} parent=1 // pred_fallthru
      _
    // Predicated region
    $region14: #{stnkd_dual_forward.3} parent=1 // pred_check
      _
    $region15: #{stnkd_dual_forward.3} parent=1 // pred_check_branch
      %24 = sbr.rel (0) target = $region17
    $region16: #{stnkd_dual_forward.3} parent=1 // pred_region
      _
    $region17: #{stnkd_dual_forward.3} parent=1 // pred_fallthru
      _
    // Predicated region
    $region18: #{stnkd_dual_forward.3} parent=1 // pred_check
      _
    $region19: #{stnkd_dual_forward.3} parent=1 // pred_check_branch
      %26 = sbr.rel (0) target = $region21
    $region20: #{stnkd_dual_forward.3} parent=1 // pred_region
      _
    $region21: #{stnkd_dual_forward.3} parent=1 // pred_fallthru
      _
    // Predicated region
    $region22: #{stnkd_dual_forward.3} parent=1 // pred_check
      _
    $region23: #{stnkd_dual_forward.3} parent=1 // pred_check_branch
      %28 = sbr.rel (0) target = $region25
    $region24: #{stnkd_dual_forward.3} parent=1 // pred_region
      _
    $region25: #{stnkd_dual_forward.3} parent=1 // pred_fallthru
      _
    // Predicated region
    $region26: #{stnkd_dual_forward.3} parent=1 // pred_check
      _
    $region27: #{stnkd_dual_forward.3} parent=1 // pred_check_branch
      %30 = sbr.rel (0) target = $region29
    $region28: #{stnkd_dual_forward.3} parent=1 // pred_region
      _
    $region29: #{stnkd_dual_forward.3} parent=1 // pred_fallthru
      _
    // Predicated region
    $region30: #{stnkd_dual_forward.3} parent=1 // pred_check
      _
    $region31: #{stnkd_dual_forward.3} parent=1 // pred_check_branch
      %32 = sbr.rel (0) target = $region33
    $region32: #{stnkd_dual_forward.3} parent=1 // pred_region
      _
    $region33: #{stnkd_dual_forward.3} parent=1 // pred_fallthru
      _
    // Predicated region
    $region34: #{stnkd_dual_forward.3} parent=1 // pred_check
      _
    $region35: #{stnkd_dual_forward.3} parent=1 // pred_check_branch
      %34 = sbr.rel (0) target = $region37
    $region36: #{stnkd_dual_forward.3} parent=1 // pred_region
      %s36 = ssub.s32 64, 64
      %37 = vsyncadd [#allocation3], %s36
      %s39 = sshll.u32 %s8, 4
      %s40 = int_to_ptr.vmem [resolvable:$true] %s39
      %42 = dma.vmem_to_smem %s40, 64, [#allocation2], [#allocation3]
    $region37: #{stnkd_dual_forward.3} parent=1 // pred_fallthru
      _
    // Predicated region
    $region38: #{stnkd_dual_forward.3} parent=1 // pred_check
      _
    $region39: #{stnkd_dual_forward.3} parent=1 // pred_check_branch
      %44 = sbr.rel (0) target = $region41
    $region40: #{stnkd_dual_forward.3} parent=1 // pred_region
      %45 = dma.done [#allocation3], 64
    $region41: #{stnkd_dual_forward.3} parent=1 // pred_fallthru
      _
    %46 = sfence
    %v48 = vld [vmem:[%s0] sm:$0xff]
    %v49 = vld [vmem:[%s0 + $0x8] sm:$0xff]
    %v50 = vld [vmem:[%s0 + $0x10] sm:$0xff]
    %v51 = vld [vmem:[%s0 + $0x18] sm:$0xff]
    %v52 = vld [vmem:[%s0 + $0x20] sm:$0xff]
    %v53 = vld [vmem:[%s0 + $0x28] sm:$0xff]
    %v54 = vld [vmem:[%s0 + $0x30] sm:$0xff]
    %v55 = vld [vmem:[%s0 + $0x38] sm:$0xff]
    %v56 = vld [vmem:[%s0 + $0x40] sm:$0xff]
    %v57 = vld [vmem:[%s1] sm:$0xff]
    %v58 = vld [vmem:[%s1 + $0x8] sm:$0xff]
    %v59 = vld [vmem:[%s1 + $0x10] sm:$0xff]
    %v60 = vld [vmem:[%s1 + $0x18] sm:$0xff]
    %v61 = vld [vmem:[%s1 + $0x20] sm:$0xff]
    %v62 = vld [vmem:[%s1 + $0x28] sm:$0xff]
    %v63 = vld [vmem:[%s1 + $0x30] sm:$0xff]
    %v64 = vld [vmem:[%s1 + $0x38] sm:$0xff]
    %v65 = vld [vmem:[%s1 + $0x40] sm:$0xff]
    %v66 = vld [vmem:[%s1 + $0x48] sm:$0xff]
    %v67 = vld [vmem:[%s1 + $0x50] sm:$0xff]
    %v68 = vld [vmem:[%s1 + $0x58] sm:$0xff]
    %v69 = vld [vmem:[%s1 + $0x60] sm:$0xff]
    %v70 = vld [vmem:[%s1 + $0x68] sm:$0xff]
    %v71 = vld [vmem:[%s1 + $0x70] sm:$0xff]
    %v72 = vld [vmem:[%s1 + $0x78] sm:$0xff]
    %v73 = vld [vmem:[%s1 + $0x80] sm:$0xff]
    %v74 = vld [vmem:[%s1 + $0x88] sm:$0xff]
    %v75 = vld [vmem:[%s1 + $0x90] sm:$0xff]
    %v76 = vld [vmem:[%s1 + $0x98] sm:$0xff]
    %v77 = vld [vmem:[%s1 + $0xa0] sm:$0xff]
    %v78 = vld [vmem:[%s1 + $0xa8] sm:$0xff]
    %v79 = vld [vmem:[%s1 + $0xb0] sm:$0xff]
    %v80 = vld [vmem:[%s1 + $0xb8] sm:$0xff]
    %v81 = vld [vmem:[%s1 + $0xc0] sm:$0xff]
    %v82 = vld [vmem:[%s1 + $0xc8] sm:$0xff]
    %v83 = vld [vmem:[%s1 + $0xd0] sm:$0xff]
    %v84 = vld [vmem:[%s1 + $0xd8] sm:$0xff]
    %v85 = vld [vmem:[%s1 + $0xe0] sm:$0xff]
    %v86 = vld [vmem:[%s1 + $0xe8] sm:$0xff]
    %v87 = vld [vmem:[%s1 + $0xf0] sm:$0xff]
    %v88 = vld [vmem:[%s1 + $0xf8] sm:$0xff]
    %v89 = vld [vmem:[%s1 + $0x100] sm:$0xff]
    %v90 = vld [vmem:[%s1 + $0x108] sm:$0xff]
    %v91 = vld [vmem:[%s1 + $0x110] sm:$0xff]
    %v92 = vld [vmem:[%s1 + $0x118] sm:$0xff]
    %v93 = vld [vmem:[%s1 + $0x120] sm:$0xff]
    %v94 = vld [vmem:[%s1 + $0x128] sm:$0xff]
    %v95 = vld [vmem:[%s1 + $0x130] sm:$0xff]
    %v96 = vld [vmem:[%s1 + $0x138] sm:$0xff]
    %v97 = vld [vmem:[%s1 + $0x140] sm:$0xff]
    %v98 = vld [vmem:[%s1 + $0x148] sm:$0xff]
    %v99 = vld [vmem:[%s1 + $0x150] sm:$0xff]
    %v100 = vld [vmem:[%s1 + $0x158] sm:$0xff]
    %v101 = vld [vmem:[%s1 + $0x160] sm:$0xff]
    %v102 = vld [vmem:[%s1 + $0x168] sm:$0xff]
    %v103 = vld [vmem:[%s1 + $0x170] sm:$0xff]
    %v104 = vld [vmem:[%s1 + $0x178] sm:$0xff]
    %v105 = vld [vmem:[%s1 + $0x180] sm:$0xff]
    %v106 = vld [vmem:[%s1 + $0x188] sm:$0xff]
    %v107 = vld [vmem:[%s1 + $0x190] sm:$0xff]
    %v108 = vld [vmem:[%s1 + $0x198] sm:$0xff]
    %v109 = vld [vmem:[%s1 + $0x1a0] sm:$0xff]
    %v110 = vld [vmem:[%s1 + $0x1a8] sm:$0xff]
    %v111 = vld [vmem:[%s1 + $0x1b0] sm:$0xff]
    %v112 = vld [vmem:[%s1 + $0x1b8] sm:$0xff]
    %v113 = vld [vmem:[%s1 + $0x1c0] sm:$0xff]
    %v114 = vld [vmem:[%s1 + $0x1c8] sm:$0xff]
    %v115 = vld [vmem:[%s1 + $0x1d0] sm:$0xff]
    %v116 = vld [vmem:[%s1 + $0x1d8] sm:$0xff]
    %v117 = vld [vmem:[%s1 + $0x1e0] sm:$0xff]
    %v118 = vld [vmem:[%s1 + $0x1e8] sm:$0xff]
    %v119 = vld [vmem:[%s1 + $0x1f0] sm:$0xff]
    %v120 = vld [vmem:[%s1 + $0x1f8] sm:$0xff]
    %v121 = vld [vmem:[%s1 + $0x200] sm:$0xff]
    %v122 = vld [vmem:[%s1 + $0x208] sm:$0xff]
    %v123 = vld [vmem:[%s1 + $0x210] sm:$0xff]
    %v124 = vld [vmem:[%s1 + $0x218] sm:$0xff]
    %v125 = vld [vmem:[%s1 + $0x220] sm:$0xff]
    %v126 = vld [vmem:[%s1 + $0x228] sm:$0xff]
    %v127 = vld [vmem:[%s1 + $0x230] sm:$0xff]
    %v128 = vld [vmem:[%s1 + $0x238] sm:$0xff]
    %v129 = vld [vmem:[%s1 + $0x240] sm:$0xff]
    %v130 = vld [vmem:[%s1 + $0x248] sm:$0xff]
    %v131 = vld [vmem:[%s1 + $0x250] sm:$0xff]
    %v132 = vld [vmem:[%s1 + $0x258] sm:$0xff]
    %v133 = vld [vmem:[%s1 + $0x260] sm:$0xff]
    %v134 = vld [vmem:[%s1 + $0x268] sm:$0xff]
    %v135 = vld [vmem:[%s1 + $0x270] sm:$0xff]
    %v136 = vld [vmem:[%s1 + $0x278] sm:$0xff]
    %v137 = vld [vmem:[%s1 + $0x280] sm:$0xff]
    %v138 = vld [vmem:[%s1 + $0x288] sm:$0xff]
    %v139 = vld [vmem:[%s1 + $0x290] sm:$0xff]
    %v140 = vld [vmem:[%s1 + $0x298] sm:$0xff]
    %v141 = vld [vmem:[%s1 + $0x2a0] sm:$0xff]
    %v142 = vld [vmem:[%s1 + $0x2a8] sm:$0xff]
    %v143 = vld [vmem:[%s1 + $0x2b0] sm:$0xff]
    %v144 = vld [vmem:[%s1 + $0x2b8] sm:$0xff]
    %v145 = vld [vmem:[%s1 + $0x2c0] sm:$0xff]
    %v146 = vld [vmem:[%s1 + $0x2c8] sm:$0xff]
    %v147 = vld [vmem:[%s1 + $0x2d0] sm:$0xff]
    %v148 = vld [vmem:[%s1 + $0x2d8] sm:$0xff]
    %v149 = vld [vmem:[%s1 + $0x2e0] sm:$0xff]
    %v150 = vld [vmem:[%s1 + $0x2e8] sm:$0xff]
    %v151 = vld [vmem:[%s1 + $0x2f0] sm:$0xff]
    %v152 = vld [vmem:[%s1 + $0x2f8] sm:$0xff]
    %v153 = vld [vmem:[%s2] sm:$0x3]
    %v154 = vld [vmem:[%s3] sm:$0x3]
    %v155 = vpack.c.bf16 %v48, %v48
    %v156 = vpack.c.bf16 %v49, %v49
    %v157 = vpack.c.bf16 %v50, %v50
    %v158 = vpack.c.bf16 %v51, %v51
    %v159 = vpack.c.bf16 %v52, %v52
    %v160 = vpack.c.bf16 %v53, %v53
    %v161 = vpack.c.bf16 %v54, %v54
    %v162 = vpack.c.bf16 %v55, %v55
    %v163 = vpack.c.bf16 %v56, %v56
    %v173 = vunpack.c.l.b16 %v155
    %v174 = vunpack.c.l.b16 %v156
    %v175 = vunpack.c.l.b16 %v157
    %v176 = vunpack.c.l.b16 %v158
    %v177 = vunpack.c.l.b16 %v159
    %v178 = vunpack.c.l.b16 %v160
    %v179 = vunpack.c.l.b16 %v161
    %v180 = vunpack.c.l.b16 %v162
    %v181 = vunpack.c.l.b16 %v163
    %v182 = vpack.c.b16 %v176, %v173
    %v183 = vpack.c.b16 %v177, %v174
    %v184 = vpack.c.b16 %v178, %v175
    %v185 = vpack.c.b16 %v179, %v179
    %v186 = vpack.c.b16 %v180, %v180
    %v187 = vpack.c.b16 %v181, %v181
    %v290 = vunpack.c.l.b16 %v57
    %v291 = vunpack.c.h.b16 %v57
    %v292 = vunpack.c.l.b16 %v58
    %v293 = vunpack.c.h.b16 %v58
    %v294 = vunpack.c.l.b16 %v59
    %v295 = vunpack.c.h.b16 %v59
    %v296 = vunpack.c.l.b16 %v60
    %v297 = vunpack.c.h.b16 %v60
    %v298 = vunpack.c.l.b16 %v61
    %v299 = vunpack.c.h.b16 %v61
    %v300 = vunpack.c.l.b16 %v62
    %v301 = vunpack.c.h.b16 %v62
    %v302 = vunpack.c.l.b16 %v63
    %v303 = vunpack.c.h.b16 %v63
    %v304 = vunpack.c.l.b16 %v64
    %v305 = vunpack.c.h.b16 %v64
    %v306 = vunpack.c.l.b16 %v65
    %v307 = vunpack.c.h.b16 %v65
    %v308 = vunpack.c.l.b16 %v66
    %v309 = vunpack.c.h.b16 %v66
    %v310 = vunpack.c.l.b16 %v67
    %v311 = vunpack.c.h.b16 %v67
    %v312 = vunpack.c.l.b16 %v68
    %v313 = vunpack.c.h.b16 %v68
    %v314 = vunpack.c.l.b16 %v69
    %v315 = vunpack.c.h.b16 %v69
    %v316 = vunpack.c.l.b16 %v70
    %v317 = vunpack.c.h.b16 %v70
    %v318 = vunpack.c.l.b16 %v71
    %v319 = vunpack.c.h.b16 %v71
    %v320 = vunpack.c.l.b16 %v72
    %v321 = vunpack.c.h.b16 %v72
    %v322 = vunpack.c.l.b16 %v73
    %v323 = vunpack.c.h.b16 %v73
    %v324 = vunpack.c.l.b16 %v74
    %v325 = vunpack.c.h.b16 %v74
    %v326 = vunpack.c.l.b16 %v75
    %v327 = vunpack.c.h.b16 %v75
    %v328 = vunpack.c.l.b16 %v76
    %v329 = vunpack.c.h.b16 %v76
    %v330 = vunpack.c.l.b16 %v77
    %v331 = vunpack.c.h.b16 %v77
    %v332 = vunpack.c.l.b16 %v78
    %v333 = vunpack.c.h.b16 %v78
    %v334 = vunpack.c.l.b16 %v79
    %v335 = vunpack.c.h.b16 %v79
    %v336 = vunpack.c.l.b16 %v80
    %v337 = vunpack.c.h.b16 %v80
    %v338 = vunpack.c.l.b16 %v81
    %v339 = vunpack.c.h.b16 %v81
    %v340 = vunpack.c.l.b16 %v82
    %v341 = vunpack.c.h.b16 %v82
    %v342 = vunpack.c.l.b16 %v83
    %v343 = vunpack.c.h.b16 %v83
    %v344 = vunpack.c.l.b16 %v84
    %v345 = vunpack.c.h.b16 %v84
    %v346 = vunpack.c.l.b16 %v85
    %v347 = vunpack.c.h.b16 %v85
    %v348 = vunpack.c.l.b16 %v86
    %v349 = vunpack.c.h.b16 %v86
    %v350 = vunpack.c.l.b16 %v87
    %v351 = vunpack.c.h.b16 %v87
    %v352 = vunpack.c.l.b16 %v88
    %v353 = vunpack.c.h.b16 %v88
    %v354 = vunpack.c.l.b16 %v89
    %v355 = vunpack.c.h.b16 %v89
    %v356 = vunpack.c.l.b16 %v90
    %v357 = vunpack.c.h.b16 %v90
    %v358 = vunpack.c.l.b16 %v91
    %v359 = vunpack.c.h.b16 %v91
    %v360 = vunpack.c.l.b16 %v92
    %v361 = vunpack.c.h.b16 %v92
    %v362 = vunpack.c.l.b16 %v93
    %v363 = vunpack.c.h.b16 %v93
    %v364 = vunpack.c.l.b16 %v94
    %v365 = vunpack.c.h.b16 %v94
    %v366 = vunpack.c.l.b16 %v95
    %v367 = vunpack.c.h.b16 %v95
    %v368 = vunpack.c.l.b16 %v96
    %v369 = vunpack.c.h.b16 %v96
    %v370 = vunpack.c.l.b16 %v97
    %v371 = vunpack.c.h.b16 %v97
    %v372 = vunpack.c.l.b16 %v98
    %v373 = vunpack.c.h.b16 %v98
    %v374 = vunpack.c.l.b16 %v99
    %v375 = vunpack.c.h.b16 %v99
    %v376 = vunpack.c.l.b16 %v100
    %v377 = vunpack.c.h.b16 %v100
    %v378 = vunpack.c.l.b16 %v101
    %v379 = vunpack.c.h.b16 %v101
    %v380 = vunpack.c.l.b16 %v102
    %v381 = vunpack.c.h.b16 %v102
    %v382 = vunpack.c.l.b16 %v103
    %v383 = vunpack.c.h.b16 %v103
    %v384 = vunpack.c.l.b16 %v104
    %v385 = vunpack.c.h.b16 %v104
    %v386 = vunpack.c.l.b16 %v105
    %v387 = vunpack.c.h.b16 %v105
    %v388 = vunpack.c.l.b16 %v106
    %v389 = vunpack.c.h.b16 %v106
    %v390 = vunpack.c.l.b16 %v107
    %v391 = vunpack.c.h.b16 %v107
    %v392 = vunpack.c.l.b16 %v108
    %v393 = vunpack.c.h.b16 %v108
    %v394 = vunpack.c.l.b16 %v109
    %v395 = vunpack.c.h.b16 %v109
    %v396 = vunpack.c.l.b16 %v110
    %v397 = vunpack.c.h.b16 %v110
    %v398 = vunpack.c.l.b16 %v111
    %v399 = vunpack.c.h.b16 %v111
    %v400 = vunpack.c.l.b16 %v112
    %v401 = vunpack.c.h.b16 %v112
    %v402 = vunpack.c.l.b16 %v113
    %v403 = vunpack.c.h.b16 %v113
    %v404 = vunpack.c.l.b16 %v114
    %v405 = vunpack.c.h.b16 %v114
    %v406 = vunpack.c.l.b16 %v115
    %v407 = vunpack.c.h.b16 %v115
    %v408 = vunpack.c.l.b16 %v116
    %v409 = vunpack.c.h.b16 %v116
    %v410 = vunpack.c.l.b16 %v117
    %v411 = vunpack.c.h.b16 %v117
    %v412 = vunpack.c.l.b16 %v118
    %v413 = vunpack.c.h.b16 %v118
    %v414 = vunpack.c.l.b16 %v119
    %v415 = vunpack.c.h.b16 %v119
    %v416 = vunpack.c.l.b16 %v120
    %v417 = vunpack.c.h.b16 %v120
    %v418 = vunpack.c.l.b16 %v121
    %v419 = vunpack.c.h.b16 %v121
    %v420 = vunpack.c.l.b16 %v122
    %v421 = vunpack.c.h.b16 %v122
    %v422 = vunpack.c.l.b16 %v123
    %v423 = vunpack.c.h.b16 %v123
    %v424 = vunpack.c.l.b16 %v124
    %v425 = vunpack.c.h.b16 %v124
    %v426 = vunpack.c.l.b16 %v125
    %v427 = vunpack.c.h.b16 %v125
    %v428 = vunpack.c.l.b16 %v126
    %v429 = vunpack.c.h.b16 %v126
    %v430 = vunpack.c.l.b16 %v127
    %v431 = vunpack.c.h.b16 %v127
    %v432 = vunpack.c.l.b16 %v128
    %v433 = vunpack.c.h.b16 %v128
    %v434 = vunpack.c.l.b16 %v129
    %v435 = vunpack.c.h.b16 %v129
    %v436 = vunpack.c.l.b16 %v130
    %v437 = vunpack.c.h.b16 %v130
    %v438 = vunpack.c.l.b16 %v131
    %v439 = vunpack.c.h.b16 %v131
    %v440 = vunpack.c.l.b16 %v132
    %v441 = vunpack.c.h.b16 %v132
    %v442 = vunpack.c.l.b16 %v133
    %v443 = vunpack.c.h.b16 %v133
    %v444 = vunpack.c.l.b16 %v134
    %v445 = vunpack.c.h.b16 %v134
    %v446 = vunpack.c.l.b16 %v135
    %v447 = vunpack.c.h.b16 %v135
    %v448 = vunpack.c.l.b16 %v136
    %v449 = vunpack.c.h.b16 %v136
    %v450 = vunpack.c.l.b16 %v137
    %v451 = vunpack.c.h.b16 %v137
    %v452 = vunpack.c.l.b16 %v138
    %v453 = vunpack.c.h.b16 %v138
    %v454 = vunpack.c.l.b16 %v139
    %v455 = vunpack.c.h.b16 %v139
    %v456 = vunpack.c.l.b16 %v140
    %v457 = vunpack.c.h.b16 %v140
    %v458 = vunpack.c.l.b16 %v141
    %v459 = vunpack.c.h.b16 %v141
    %v460 = vunpack.c.l.b16 %v142
    %v461 = vunpack.c.h.b16 %v142
    %v462 = vunpack.c.l.b16 %v143
    %v463 = vunpack.c.h.b16 %v143
    %v464 = vunpack.c.l.b16 %v144
    %v465 = vunpack.c.h.b16 %v144
    %v466 = vunpack.c.l.b16 %v145
    %v467 = vunpack.c.h.b16 %v145
    %v468 = vunpack.c.l.b16 %v146
    %v469 = vunpack.c.h.b16 %v146
    %v470 = vunpack.c.l.b16 %v147
    %v471 = vunpack.c.h.b16 %v147
    %v472 = vunpack.c.l.b16 %v148
    %v473 = vunpack.c.h.b16 %v148
    %v474 = vunpack.c.l.b16 %v149
    %v475 = vunpack.c.h.b16 %v149
    %v476 = vunpack.c.l.b16 %v150
    %v477 = vunpack.c.h.b16 %v150
    %v478 = vunpack.c.l.b16 %v151
    %v479 = vunpack.c.h.b16 %v151
    %v480 = vunpack.c.l.b16 %v152
    %v481 = vunpack.c.h.b16 %v152
    %v482 = vpack.c.b16 %v294, %v290
    %v483 = vpack.c.b16 %v295, %v291
    %v484 = vpack.c.b16 %v296, %v292
    %v485 = vpack.c.b16 %v297, %v293
    %v486 = vpack.c.b16 %v302, %v298
    %v487 = vpack.c.b16 %v303, %v299
    %v488 = vpack.c.b16 %v304, %v300
    %v489 = vpack.c.b16 %v305, %v301
    %v490 = vpack.c.b16 %v310, %v306
    %v491 = vpack.c.b16 %v311, %v307
    %v492 = vpack.c.b16 %v312, %v308
    %v493 = vpack.c.b16 %v313, %v309
    %v494 = vpack.c.b16 %v318, %v314
    %v495 = vpack.c.b16 %v319, %v315
    %v496 = vpack.c.b16 %v320, %v316
    %v497 = vpack.c.b16 %v321, %v317
    %v498 = vpack.c.b16 %v326, %v322
    %v499 = vpack.c.b16 %v327, %v323
    %v500 = vpack.c.b16 %v328, %v324
    %v501 = vpack.c.b16 %v329, %v325
    %v502 = vpack.c.b16 %v334, %v330
    %v503 = vpack.c.b16 %v335, %v331
    %v504 = vpack.c.b16 %v336, %v332
    %v505 = vpack.c.b16 %v337, %v333
    %v506 = vpack.c.b16 %v342, %v338
    %v507 = vpack.c.b16 %v343, %v339
    %v508 = vpack.c.b16 %v344, %v340
    %v509 = vpack.c.b16 %v345, %v341
    %v510 = vpack.c.b16 %v350, %v346
    %v511 = vpack.c.b16 %v351, %v347
    %v512 = vpack.c.b16 %v352, %v348
    %v513 = vpack.c.b16 %v353, %v349
    %v514 = vpack.c.b16 %v358, %v354
    %v515 = vpack.c.b16 %v359, %v355
    %v516 = vpack.c.b16 %v360, %v356
    %v517 = vpack.c.b16 %v361, %v357
    %v518 = vpack.c.b16 %v366, %v362
    %v519 = vpack.c.b16 %v367, %v363
    %v520 = vpack.c.b16 %v368, %v364
    %v521 = vpack.c.b16 %v369, %v365
    %v522 = vpack.c.b16 %v374, %v370
    %v523 = vpack.c.b16 %v375, %v371
    %v524 = vpack.c.b16 %v376, %v372
    %v525 = vpack.c.b16 %v377, %v373
    %v526 = vpack.c.b16 %v382, %v378
    %v527 = vpack.c.b16 %v383, %v379
    %v528 = vpack.c.b16 %v384, %v380
    %v529 = vpack.c.b16 %v385, %v381
    %v530 = vpack.c.b16 %v390, %v386
    %v531 = vpack.c.b16 %v391, %v387
    %v532 = vpack.c.b16 %v392, %v388
    %v533 = vpack.c.b16 %v393, %v389
    %v534 = vpack.c.b16 %v398, %v394
    %v535 = vpack.c.b16 %v399, %v395
    %v536 = vpack.c.b16 %v400, %v396
    %v537 = vpack.c.b16 %v401, %v397
    %v538 = vpack.c.b16 %v406, %v402
    %v539 = vpack.c.b16 %v407, %v403
    %v540 = vpack.c.b16 %v408, %v404
    %v541 = vpack.c.b16 %v409, %v405
    %v542 = vpack.c.b16 %v414, %v410
    %v543 = vpack.c.b16 %v415, %v411
    %v544 = vpack.c.b16 %v416, %v412
    %v545 = vpack.c.b16 %v417, %v413
    %v546 = vpack.c.b16 %v422, %v418
    %v547 = vpack.c.b16 %v423, %v419
    %v548 = vpack.c.b16 %v424, %v420
    %v549 = vpack.c.b16 %v425, %v421
    %v550 = vpack.c.b16 %v430, %v426
    %v551 = vpack.c.b16 %v431, %v427
    %v552 = vpack.c.b16 %v432, %v428
    %v553 = vpack.c.b16 %v433, %v429
    %v554 = vpack.c.b16 %v438, %v434
    %v555 = vpack.c.b16 %v439, %v435
    %v556 = vpack.c.b16 %v440, %v436
    %v557 = vpack.c.b16 %v441, %v437
    %v558 = vpack.c.b16 %v446, %v442
    %v559 = vpack.c.b16 %v447, %v443
    %v560 = vpack.c.b16 %v448, %v444
    %v561 = vpack.c.b16 %v449, %v445
    %v562 = vpack.c.b16 %v454, %v450
    %v563 = vpack.c.b16 %v455, %v451
    %v564 = vpack.c.b16 %v456, %v452
    %v565 = vpack.c.b16 %v457, %v453
    %v566 = vpack.c.b16 %v462, %v458
    %v567 = vpack.c.b16 %v463, %v459
    %v568 = vpack.c.b16 %v464, %v460
    %v569 = vpack.c.b16 %v465, %v461
    %v570 = vpack.c.b16 %v470, %v466
    %v571 = vpack.c.b16 %v471, %v467
    %v572 = vpack.c.b16 %v472, %v468
    %v573 = vpack.c.b16 %v473, %v469
    %v574 = vpack.c.b16 %v478, %v474
    %v575 = vpack.c.b16 %v479, %v475
    %v576 = vpack.c.b16 %v480, %v476
    %v577 = vpack.c.b16 %v481, %v477
    %674 = vmatprep.subr.bf16.mxu0 %v483
    %675 = vmatpush1.bf16.msra.mxu0 %v482
    %676 = vmatprep.subr.bf16.mxu0 %v487
    %677 = vmatpush1.bf16.msra.mxu0 %v486
    %678 = vmatprep.subr.bf16.mxu0 %v491
    %679 = vmatpush1.bf16.msra.mxu0 %v490
    %680 = vmatprep.subr.bf16.mxu0 %v495
    %681 = vmatpush1.bf16.msra.mxu0 %v494
    %682 = vmatprep.subr.bf16.mxu0 %v499
    %683 = vmatpush1.bf16.msra.mxu0 %v498
    %684 = vmatprep.subr.bf16.mxu0 %v503
    %685 = vmatpush1.bf16.msra.mxu0 %v502
    %686 = vmatprep.subr.bf16.mxu0 %v507
    %687 = vmatpush1.bf16.msra.mxu0 %v506
    %688 = vmatprep.subr.bf16.mxu0 %v511
    %689 = vmatpush1.bf16.msra.mxu0 %v510
    %690 = vmatprep.subr.bf16.mxu0 %v515
    %691 = vmatpush1.bf16.msra.mxu0 %v514
    %692 = vmatprep.subr.bf16.mxu0 %v519
    %693 = vmatpush1.bf16.msra.mxu0 %v518
    %694 = vmatprep.subr.bf16.mxu0 %v523
    %695 = vmatpush1.bf16.msra.mxu0 %v522
    %696 = vmatprep.subr.bf16.mxu0 %v527
    %697 = vmatpush1.bf16.msra.mxu0 %v526
    %698 = vmatprep.subr.bf16.mxu0 %v531
    %699 = vmatpush1.bf16.msra.mxu0 %v530
    %700 = vmatprep.subr.bf16.mxu0 %v535
    %701 = vmatpush1.bf16.msra.mxu0 %v534
    %702 = vmatprep.subr.bf16.mxu0 %v539
    %703 = vmatpush1.bf16.msra.mxu0 %v538
    %704 = vmatprep.subr.bf16.mxu0 %v543
    %705 = vmatpush1.bf16.msra.mxu0 %v542
    %706 = vmatprep.mubr.bf16.mxu0 %v183
    %707 = vmatmul.mubr.bf16.gmra.mrb[0].mxu0 %v182
    %v708 = vpop.f32.mrb[0].mxu0
    %v709 = vadd.f32 0.0, %v708
    %v710 = vpop.f32.mrb[0].mxu0
    %v711 = vadd.f32 0.0, %v710
    %v712 = vpop.f32.mrb[0].mxu0
    %v713 = vadd.f32 0.0, %v712
    %v714 = vpop.f32.mrb[0].mxu0
    %v715 = vadd.f32 0.0, %v714
    %716 = vmatprep.mubr.bf16.mxu0 %v186
    %717 = vmatmul.mubr.bf16.gmra.mrb[0].mxu0 %v185
    %v718 = vpop.f32.mrb[0].mxu0
    %v719 = vadd.f32 0.0, %v718
    %v720 = vpop.f32.mrb[0].mxu0
    %v721 = vadd.f32 0.0, %v720
    %v722 = vpop.f32.mrb[0].mxu0
    %v723 = vpop.f32.mrb[0].mxu0
    %724 = vdwg.mxu0
    %725 = vmatprep.subr.bf16.mxu0 %v547
    %726 = vmatpush1.bf16.msra.mxu0 %v546
    %727 = vmatprep.subr.bf16.mxu0 %v551
    %728 = vmatpush1.bf16.msra.mxu0 %v550
    %729 = vmatprep.subr.bf16.mxu0 %v555
    %730 = vmatpush1.bf16.msra.mxu0 %v554
    %731 = vmatprep.subr.bf16.mxu0 %v559
    %732 = vmatpush1.bf16.msra.mxu0 %v558
    %733 = vmatprep.subr.bf16.mxu0 %v563
    %734 = vmatpush1.bf16.msra.mxu0 %v562
    %735 = vmatprep.subr.bf16.mxu0 %v567
    %736 = vmatpush1.bf16.msra.mxu0 %v566
    %737 = vmatprep.subr.bf16.mxu0 %v571
    %738 = vmatpush1.bf16.msra.mxu0 %v570
    %739 = vmatprep.subr.bf16.mxu0 %v575
    %740 = vmatpush1.bf16.msra.mxu0 %v574
    %741 = vmatprep.subr.bf16.mxu0 0
    %742 = vmatpush1.bf16.msra.mxu0 0
    %743 = vmatprep.subr.bf16.mxu0 0
    %744 = vmatpush1.bf16.msra.mxu0 0
    %745 = vmatprep.subr.bf16.mxu0 0
    %746 = vmatpush1.bf16.msra.mxu0 0
    %747 = vmatprep.subr.bf16.mxu0 0
    %748 = vmatpush1.bf16.msra.mxu0 0
    %749 = vmatprep.subr.bf16.mxu0 0
    %750 = vmatpush1.bf16.msra.mxu0 0
    %751 = vmatprep.subr.bf16.mxu0 0
    %752 = vmatpush1.bf16.msra.mxu0 0
    %753 = vmatprep.subr.bf16.mxu0 0
    %754 = vmatpush1.bf16.msra.mxu0 0
    %755 = vmatprep.subr.bf16.mxu0 0
    %756 = vmatpush1.bf16.msra.mxu0 0
    %757 = vmatprep.mubr.bf16.mxu0 0
    %758 = vmatmul.mubr.bf16.gmra.mrb[0].mxu0 %v184
    %v759 = vpop.f32.mrb[0].mxu0
    %v760 = vadd.f32 %v709, %v759
    %v761 = vpop.f32.mrb[0].mxu0
    %v762 = vadd.f32 %v711, %v761
    %v763 = vpop.f32.mrb[0].mxu0
    %v764 = vadd.f32 %v713, %v763
    %v765 = vpop.f32.mrb[0].mxu0
    %v766 = vadd.f32 %v715, %v765
    %767 = vmatprep.mubr.bf16.mxu0 0
    %768 = vmatmul.mubr.bf16.gmra.mrb[0].mxu0 %v187
    %v769 = vpop.f32.mrb[0].mxu0
    %v770 = vadd.f32 %v719, %v769
    %v771 = vpop.f32.mrb[0].mxu0
    %v772 = vadd.f32 %v721, %v771
    %v773 = vpop.f32.mrb[0].mxu0
    %v774 = vpop.f32.mrb[0].mxu0
    %775 = vdwg.mxu0
    %776 = vmatprep.subr.bf16.mxu0 %v485
    %777 = vmatpush1.bf16.msra.mxu0 %v484
    %778 = vmatprep.subr.bf16.mxu0 %v489
    %779 = vmatpush1.bf16.msra.mxu0 %v488
    %780 = vmatprep.subr.bf16.mxu0 %v493
    %781 = vmatpush1.bf16.msra.mxu0 %v492
    %782 = vmatprep.subr.bf16.mxu0 %v497
    %783 = vmatpush1.bf16.msra.mxu0 %v496
    %784 = vmatprep.subr.bf16.mxu0 %v501
    %785 = vmatpush1.bf16.msra.mxu0 %v500
    %786 = vmatprep.subr.bf16.mxu0 %v505
    %787 = vmatpush1.bf16.msra.mxu0 %v504
    %788 = vmatprep.subr.bf16.mxu0 %v509
    %789 = vmatpush1.bf16.msra.mxu0 %v508
    %790 = vmatprep.subr.bf16.mxu0 %v513
    %791 = vmatpush1.bf16.msra.mxu0 %v512
    %792 = vmatprep.subr.bf16.mxu0 %v517
    %793 = vmatpush1.bf16.msra.mxu0 %v516
    %794 = vmatprep.subr.bf16.mxu0 %v521
    %795 = vmatpush1.bf16.msra.mxu0 %v520
    %796 = vmatprep.subr.bf16.mxu0 %v525
    %797 = vmatpush1.bf16.msra.mxu0 %v524
    %798 = vmatprep.subr.bf16.mxu0 %v529
    %799 = vmatpush1.bf16.msra.mxu0 %v528
    %800 = vmatprep.subr.bf16.mxu0 %v533
    %801 = vmatpush1.bf16.msra.mxu0 %v532
    %802 = vmatprep.subr.bf16.mxu0 %v537
    %803 = vmatpush1.bf16.msra.mxu0 %v536
    %804 = vmatprep.subr.bf16.mxu0 %v541
    %805 = vmatpush1.bf16.msra.mxu0 %v540
    %806 = vmatprep.subr.bf16.mxu0 %v545
    %807 = vmatpush1.bf16.msra.mxu0 %v544
    %808 = vmatprep.mubr.bf16.mxu0 %v183
    %809 = vmatmul.mubr.bf16.gmra.mrb[0].mxu0 %v182
    %v810 = vpop.f32.mrb[0].mxu0
    %v811 = vadd.f32 0.0, %v810
    %v812 = vpop.f32.mrb[0].mxu0
    %v813 = vadd.f32 0.0, %v812
    %v814 = vpop.f32.mrb[0].mxu0
    %v815 = vadd.f32 0.0, %v814
    %v816 = vpop.f32.mrb[0].mxu0
    %v817 = vadd.f32 0.0, %v816
    %818 = vmatprep.mubr.bf16.mxu0 %v186
    %819 = vmatmul.mubr.bf16.gmra.mrb[0].mxu0 %v185
    %v820 = vpop.f32.mrb[0].mxu0
    %v821 = vadd.f32 0.0, %v820
    %v822 = vpop.f32.mrb[0].mxu0
    %v823 = vadd.f32 0.0, %v822
    %v824 = vpop.f32.mrb[0].mxu0
    %v825 = vpop.f32.mrb[0].mxu0
    %826 = vdwg.mxu0
    %827 = vmatprep.subr.bf16.mxu0 %v549
    %828 = vmatpush1.bf16.msra.mxu0 %v548
    %829 = vmatprep.subr.bf16.mxu0 %v553
    %830 = vmatpush1.bf16.msra.mxu0 %v552
    %831 = vmatprep.subr.bf16.mxu0 %v557
    %832 = vmatpush1.bf16.msra.mxu0 %v556
    %833 = vmatprep.subr.bf16.mxu0 %v561
    %834 = vmatpush1.bf16.msra.mxu0 %v560
    %835 = vmatprep.subr.bf16.mxu0 %v565
    %836 = vmatpush1.bf16.msra.mxu0 %v564
    %837 = vmatprep.subr.bf16.mxu0 %v569
    %838 = vmatpush1.bf16.msra.mxu0 %v568
    %839 = vmatprep.subr.bf16.mxu0 %v573
    %840 = vmatpush1.bf16.msra.mxu0 %v572
    %841 = vmatprep.subr.bf16.mxu0 %v577
    %842 = vmatpush1.bf16.msra.mxu0 %v576
    %843 = vmatprep.subr.bf16.mxu0 0
    %844 = vmatpush1.bf16.msra.mxu0 0
    %845 = vmatprep.subr.bf16.mxu0 0
    %846 = vmatpush1.bf16.msra.mxu0 0
    %847 = vmatprep.subr.bf16.mxu0 0
    %848 = vmatpush1.bf16.msra.mxu0 0
    %849 = vmatprep.subr.bf16.mxu0 0
    %850 = vmatpush1.bf16.msra.mxu0 0
    %851 = vmatprep.subr.bf16.mxu0 0
    %852 = vmatpush1.bf16.msra.mxu0 0
    %853 = vmatprep.subr.bf16.mxu0 0
    %854 = vmatpush1.bf16.msra.mxu0 0
    %855 = vmatprep.subr.bf16.mxu0 0
    %856 = vmatpush1.bf16.msra.mxu0 0
    %857 = vmatprep.subr.bf16.mxu0 0
    %858 = vmatpush1.bf16.msra.mxu0 0
    %859 = vmatprep.mubr.bf16.mxu0 0
    %860 = vmatmul.mubr.bf16.gmra.mrb[0].mxu0 %v184
    %v861 = vpop.f32.mrb[0].mxu0
    %v862 = vadd.f32 %v811, %v861
    %v863 = vpop.f32.mrb[0].mxu0
    %v864 = vadd.f32 %v813, %v863
    %v865 = vpop.f32.mrb[0].mxu0
    %v866 = vadd.f32 %v815, %v865
    %v867 = vpop.f32.mrb[0].mxu0
    %v868 = vadd.f32 %v817, %v867
    %869 = vmatprep.mubr.bf16.mxu0 0
    %870 = vmatmul.mubr.bf16.gmra.mrb[0].mxu0 %v187
    %v871 = vpop.f32.mrb[0].mxu0
    %v872 = vadd.f32 %v821, %v871
    %v873 = vpop.f32.mrb[0].mxu0
    %v874 = vadd.f32 %v823, %v873
    %v875 = vpop.f32.mrb[0].mxu0
    %v876 = vpop.f32.mrb[0].mxu0
    %877 = vdwg.mxu0
    %v878 = vmul.f32 %v760, %v760
    %v879 = vmul.f32 %v762, %v762
    %v880 = vmul.f32 %v764, %v764
    %v881 = vmul.f32 %v766, %v766
    %v882 = vmul.f32 %v770, %v770
    %v883 = vmul.f32 %v772, %v772
    %v884 = vadd.f32 %v878, %v880
    %v885 = vadd.f32 %v884, %v882
    %v886 = vadd.f32 %v879, %v881
    %v887 = vadd.f32 %v886, %v883
    %v888 = vrsqrt.pop %v885
    %v889 = vmul.f32 %v885, %v888
    %vm890 = vcmp.eq.f32.partialorder %v885, inf
    %v891 = vsel %vm890, %v885, %v889
    %vm892 = vcmp.eq.f32.partialorder %v885, 0.0
    %v893 = vand.u32 %v885, 2147483648
    %v894 = vsel %vm892, %v893, %v891
    %v895 = vrsqrt.pop %v887
    %v896 = vmul.f32 %v887, %v895
    %vm897 = vcmp.eq.f32.partialorder %v887, inf
    %v898 = vsel %vm897, %v887, %v896
    %vm899 = vcmp.eq.f32.partialorder %v887, 0.0
    %v900 = vand.u32 %v887, 2147483648
    %v901 = vsel %vm899, %v900, %v898
    %v902 = vadd.f32 %v894, 1e-06
    %v903 = vadd.f32 %v901, 1e-06
    %v905 = vlaneseq
    %v906 = vshrl.u32 %v905, 7
    %v907 = vsub.s32 0, %v906
    %v908 = vrot.slane %v153, %v907
    %v909 = vlaneseq
    %v910 = vshrl.u32 %v909, 7
    %v911 = vsub.s32 1, %v910
    %v912 = vrot.slane %v153, %v911
    %v915 = vmul.f32 %v902, %v908
    %v916 = vmul.f32 %v903, %v912
    %v918 = vlaneseq
    %v919 = vshrl.u32 %v918, 7
    %v920 = vsub.s32 0, %v919
    %v921 = vrot.slane %v154, %v920
    %v922 = vlaneseq
    %v923 = vshrl.u32 %v922, 7
    %v924 = vsub.s32 1, %v923
    %v925 = vrot.slane %v154, %v924
    %v928 = vadd.f32 %v915, %v921
    %v929 = vadd.f32 %v916, %v925
    %v930 = vrcp.pop %v902
    %v931 = vmul.f32 %v928, %v930
    %v932 = vrcp.pop %v903
    %v933 = vmul.f32 %v929, %v932
    %v934 = vmul.f32 %v760, %v931
    %v935 = vmul.f32 %v762, %v933
    %v936 = vmul.f32 %v764, %v931
    %v937 = vmul.f32 %v766, %v933
    %v938 = vmul.f32 %v770, %v931
    %v939 = vmul.f32 %v772, %v933
    %v940 = vmul.f32 %v934, %v862
    %v941 = vmul.f32 %v935, %v864
    %v942 = vmul.f32 %v936, %v866
    %v943 = vmul.f32 %v937, %v868
    %v944 = vmul.f32 %v938, %v872
    %v945 = vmul.f32 %v939, %v874
    %v946 = vadd.f32 %v940, %v942
    %v947 = vadd.f32 %v946, %v944
    %v948 = vadd.f32 %v941, %v943
    %v949 = vadd.f32 %v948, %v945
    %v950 = vmul.f32 %v862, %v862
    %v951 = vmul.f32 %v864, %v864
    %v952 = vmul.f32 %v866, %v866
    %v953 = vmul.f32 %v868, %v868
    %v954 = vmul.f32 %v872, %v872
    %v955 = vmul.f32 %v874, %v874
    %v956 = vadd.f32 %v950, %v952
    %v957 = vadd.f32 %v956, %v954
    %v958 = vadd.f32 %v951, %v953
    %v959 = vadd.f32 %v958, %v955
    %v960 = vadd.f32 %v957, 1e-06
    %v961 = vadd.f32 %v959, 1e-06
    %v962 = vrcp.pop %v960
    %v963 = vmul.f32 %v947, %v962
    %v964 = vrcp.pop %v961
    %v965 = vmul.f32 %v949, %v964
    %vm966 = vcmp.ge.f32.partialorder %v947, 0.0
    %vm967 = vcmp.ge.f32.partialorder %v949, 0.0
    %v968 = vmul.f32 %v963, %v862
    %v969 = vmul.f32 %v965, %v864
    %v970 = vmul.f32 %v963, %v866
    %v971 = vmul.f32 %v965, %v868
    %v972 = vmul.f32 %v963, %v872
    %v973 = vmul.f32 %v965, %v874
    %v974 = vsub.f32 %v934, %v968
    %v975 = vsub.f32 %v935, %v969
    %v976 = vsub.f32 %v936, %v970
    %v977 = vsub.f32 %v937, %v971
    %v978 = vsub.f32 %v938, %v972
    %v979 = vsub.f32 %v939, %v973
    %v980 = vsel %vm966, 1, 0
    %v981 = vsel %vm967, 1, 0
    %vm982 = vcmp.eq.s32.totalorder %v980, 1
    %vm983 = vcmp.eq.s32.totalorder %v981, 1
    %v984 = vsel %vm982, %v934, %v974
    %v985 = vsel %vm983, %v935, %v975
    %v986 = vsel %vm982, %v936, %v976
    %v987 = vsel %vm983, %v937, %v977
    %v988 = vsel %vm982, %v938, %v978
    %v989 = vsel %vm983, %v939, %v979
    %v990 = vadd.f32 %v878, %v879
    %991 = vadd.xlane.f32.xlu0 %v990
    %v992 = vpop.xlane.xlu0 %991
    %v993 = vrot.slane %v992, 4
    %v994 = vadd.f32 %v992, %v993
    %v995 = vrot.slane %v994, 2
    %v996 = vadd.f32 %v994, %v995
    %v997 = vrot.slane %v996, 1
    %v998 = vadd.f32 %v996, %v997
    %s999 = vtos %v998
    %v1000 = vadd.f32 %v880, %v881
    %1001 = vadd.xlane.f32.xlu0 %v1000
    %v1002 = vpop.xlane.xlu0 %1001
    %v1003 = vrot.slane %v1002, 4
    %v1004 = vadd.f32 %v1002, %v1003
    %v1005 = vrot.slane %v1004, 2
    %v1006 = vadd.f32 %v1004, %v1005
    %v1007 = vrot.slane %v1006, 1
    %v1008 = vadd.f32 %v1006, %v1007
    %s1009 = vtos %v1008
    %v1010 = vadd.f32 %v882, %v883
    %1011 = vadd.xlane.f32.xlu0 %v1010
    %v1012 = vpop.xlane.xlu0 %1011
    %v1013 = vrot.slane %v1012, 4
    %v1014 = vadd.f32 %v1012, %v1013
    %v1015 = vrot.slane %v1014, 2
    %v1016 = vadd.f32 %v1014, %v1015
    %v1017 = vrot.slane %v1016, 1
    %v1018 = vadd.f32 %v1016, %v1017
    %s1019 = vtos %v1018
    %v1020 = vmul.f32 %v760, %v764
    %v1021 = vmul.f32 %v762, %v766
    %v1022 = vadd.f32 %v1020, %v1021
    %1023 = vadd.xlane.f32.xlu0 %v1022
    %v1024 = vpop.xlane.xlu0 %1023
    %v1025 = vrot.slane %v1024, 4
    %v1026 = vadd.f32 %v1024, %v1025
    %v1027 = vrot.slane %v1026, 2
    %v1028 = vadd.f32 %v1026, %v1027
    %v1029 = vrot.slane %v1028, 1
    %v1030 = vadd.f32 %v1028, %v1029
    %s1031 = vtos %v1030
    %v1032 = vmul.f32 %v760, %v770
    %v1033 = vmul.f32 %v762, %v772
    %v1034 = vadd.f32 %v1032, %v1033
    %1035 = vadd.xlane.f32.xlu0 %v1034
    %v1036 = vpop.xlane.xlu0 %1035
    %v1037 = vrot.slane %v1036, 4
    %v1038 = vadd.f32 %v1036, %v1037
    %v1039 = vrot.slane %v1038, 2
    %v1040 = vadd.f32 %v1038, %v1039
    %v1041 = vrot.slane %v1040, 1
    %v1042 = vadd.f32 %v1040, %v1041
    %s1043 = vtos %v1042
    %v1044 = vmul.f32 %v764, %v770
    %v1045 = vmul.f32 %v766, %v772
    %v1046 = vadd.f32 %v1044, %v1045
    %1047 = vadd.xlane.f32.xlu0 %v1046
    %v1048 = vpop.xlane.xlu0 %1047
    %v1049 = vrot.slane %v1048, 4
    %v1050 = vadd.f32 %v1048, %v1049
    %v1051 = vrot.slane %v1050, 2
    %v1052 = vadd.f32 %v1050, %v1051
    %v1053 = vrot.slane %v1052, 1
    %v1054 = vadd.f32 %v1052, %v1053
    %s1055 = vtos %v1054
    %s1056 = sld [smem:[#allocation2]]
    %s1057 = smul.f32 %s1056, %s999
    %s1058 = sld [smem:[#allocation2 + $0x81]]
    %s1059 = smul.f32 %s1058, %s1009
    %s1060 = sadd.f32 %s1057, %s1059
    %s1061 = sld [smem:[#allocation2 + $0x102]]
    %s1062 = smul.f32 %s1061, %s1019
    %s1063 = sadd.f32 %s1060, %s1062
    %s1064 = sld [smem:[#allocation2 + $0x1]]
    %s1065 = smul.f32 %s1064, %s1031
    %s1066 = sld [smem:[#allocation2 + $0x2]]
    %s1067 = smul.f32 %s1066, %s1043
    %s1068 = sadd.f32 %s1065, %s1067
    %s1069 = sld [smem:[#allocation2 + $0x82]]
    %s1070 = smul.f32 %s1069, %s1055
    %s1071 = sadd.f32 %s1068, %s1070
    %s1072 = smul.f32 %s1071, 2.0
    %s1073 = sadd.f32 %s1063, %s1072
    %v1074 = vmul.f32 %v984, %v984
    %v1075 = vmul.f32 %v985, %v985
    %v1076 = vadd.f32 %v1074, %v1075
    %1077 = vadd.xlane.f32.xlu0 %v1076
    %v1078 = vpop.xlane.xlu0 %1077
    %v1079 = vrot.slane %v1078, 4
    %v1080 = vadd.f32 %v1078, %v1079
    %v1081 = vrot.slane %v1080, 2
    %v1082 = vadd.f32 %v1080, %v1081
    %v1083 = vrot.slane %v1082, 1
    %v1084 = vadd.f32 %v1082, %v1083
    %s1085 = vtos %v1084
    %v1086 = vmul.f32 %v986, %v986
    %v1087 = vmul.f32 %v987, %v987
    %v1088 = vadd.f32 %v1086, %v1087
    %1089 = vadd.xlane.f32.xlu0 %v1088
    %v1090 = vpop.xlane.xlu0 %1089
    %v1091 = vrot.slane %v1090, 4
    %v1092 = vadd.f32 %v1090, %v1091
    %v1093 = vrot.slane %v1092, 2
    %v1094 = vadd.f32 %v1092, %v1093
    %v1095 = vrot.slane %v1094, 1
    %v1096 = vadd.f32 %v1094, %v1095
    %s1097 = vtos %v1096
    %v1098 = vmul.f32 %v988, %v988
    %v1099 = vmul.f32 %v989, %v989
    %v1100 = vadd.f32 %v1098, %v1099
    %1101 = vadd.xlane.f32.xlu0 %v1100
    %v1102 = vpop.xlane.xlu0 %1101
    %v1103 = vrot.slane %v1102, 4
    %v1104 = vadd.f32 %v1102, %v1103
    %v1105 = vrot.slane %v1104, 2
    %v1106 = vadd.f32 %v1104, %v1105
    %v1107 = vrot.slane %v1106, 1
    %v1108 = vadd.f32 %v1106, %v1107
    %s1109 = vtos %v1108
    %v1110 = vmul.f32 %v984, %v986
    %v1111 = vmul.f32 %v985, %v987
    %v1112 = vadd.f32 %v1110, %v1111
    %1113 = vadd.xlane.f32.xlu0 %v1112
    %v1114 = vpop.xlane.xlu0 %1113
    %v1115 = vrot.slane %v1114, 4
    %v1116 = vadd.f32 %v1114, %v1115
    %v1117 = vrot.slane %v1116, 2
    %v1118 = vadd.f32 %v1116, %v1117
    %v1119 = vrot.slane %v1118, 1
    %v1120 = vadd.f32 %v1118, %v1119
    %s1121 = vtos %v1120
    %v1122 = vmul.f32 %v984, %v988
    %v1123 = vmul.f32 %v985, %v989
    %v1124 = vadd.f32 %v1122, %v1123
    %1125 = vadd.xlane.f32.xlu0 %v1124
    %v1126 = vpop.xlane.xlu0 %1125
    %v1127 = vrot.slane %v1126, 4
    %v1128 = vadd.f32 %v1126, %v1127
    %v1129 = vrot.slane %v1128, 2
    %v1130 = vadd.f32 %v1128, %v1129
    %v1131 = vrot.slane %v1130, 1
    %v1132 = vadd.f32 %v1130, %v1131
    %s1133 = vtos %v1132
    %v1134 = vmul.f32 %v986, %v988
    %v1135 = vmul.f32 %v987, %v989
    %v1136 = vadd.f32 %v1134, %v1135
    %1137 = vadd.xlane.f32.xlu0 %v1136
    %v1138 = vpop.xlane.xlu0 %1137
    %v1139 = vrot.slane %v1138, 4
    %v1140 = vadd.f32 %v1138, %v1139
    %v1141 = vrot.slane %v1140, 2
    %v1142 = vadd.f32 %v1140, %v1141
    %v1143 = vrot.slane %v1142, 1
    %v1144 = vadd.f32 %v1142, %v1143
    %s1145 = vtos %v1144
    %s1146 = smul.f32 %s1056, %s1085
    %s1147 = smul.f32 %s1058, %s1097
    %s1148 = sadd.f32 %s1146, %s1147
    %s1149 = smul.f32 %s1061, %s1109
    %s1150 = sadd.f32 %s1148, %s1149
    %s1151 = smul.f32 %s1064, %s1121
    %s1152 = smul.f32 %s1066, %s1133
    %s1153 = sadd.f32 %s1151, %s1152
    %s1154 = smul.f32 %s1069, %s1145
    %s1155 = sadd.f32 %s1153, %s1154
    %s1156 = smul.f32 %s1155, 2.0
    %s1157 = sadd.f32 %s1150, %s1156
    %v1158 = vld [vmem:[%s4] sm:$0xff]
    %v1159 = vld [vmem:[%s4 + $0x8] sm:$0xff]
    %v1160 = vld [vmem:[%s4 + $0x10] sm:$0xff]
    %v1161 = vld [vmem:[%s4 + $0x18] sm:$0xff]
    %v1162 = vld [vmem:[%s4 + $0x20] sm:$0xff]
    %v1163 = vld [vmem:[%s4 + $0x28] sm:$0xff]
    %v1164 = vld [vmem:[%s4 + $0x30] sm:$0xff]
    %v1165 = vld [vmem:[%s4 + $0x38] sm:$0xff]
    %v1166 = vld [vmem:[%s4 + $0x40] sm:$0xff]
    %v1167 = vld [vmem:[%s4 + $0x48] sm:$0xff]
    %v1168 = vld [vmem:[%s4 + $0x50] sm:$0xff]
    %v1169 = vld [vmem:[%s4 + $0x58] sm:$0xff]
    %v1170 = vld [vmem:[%s4 + $0x60] sm:$0xff]
    %v1171 = vld [vmem:[%s4 + $0x68] sm:$0xff]
    %v1172 = vld [vmem:[%s4 + $0x70] sm:$0xff]
    %v1173 = vld [vmem:[%s4 + $0x78] sm:$0xff]
    %v1174 = vld [vmem:[%s4 + $0x80] sm:$0xff]
    %v1175 = vld [vmem:[%s4 + $0x88] sm:$0xff]
    %v1176 = vld [vmem:[%s4 + $0x90] sm:$0xff]
    %v1177 = vld [vmem:[%s4 + $0x98] sm:$0xff]
    %v1178 = vld [vmem:[%s4 + $0xa0] sm:$0xff]
    %v1179 = vld [vmem:[%s4 + $0xa8] sm:$0xff]
    %v1180 = vld [vmem:[%s4 + $0xb0] sm:$0xff]
    %v1181 = vld [vmem:[%s4 + $0xb8] sm:$0xff]
    %v1182 = vld [vmem:[%s4 + $0xc0] sm:$0xff]
    %v1183 = vld [vmem:[%s4 + $0xc8] sm:$0xff]
    %v1184 = vld [vmem:[%s4 + $0xd0] sm:$0xff]
    %v1185 = vld [vmem:[%s4 + $0xd8] sm:$0xff]
    %v1186 = vld [vmem:[%s4 + $0xe0] sm:$0xff]
    %v1187 = vld [vmem:[%s4 + $0xe8] sm:$0xff]
    %v1188 = vld [vmem:[%s4 + $0xf0] sm:$0xff]
    %v1189 = vld [vmem:[%s4 + $0xf8] sm:$0xff]
    %v1190 = vld [vmem:[%s5] sm:$0x1]
    %v1191 = vld [vmem:[%s6] sm:$0x1]
    %v1192 = vpack.c.bf16 %v984, %v984
    %v1193 = vpack.c.bf16 %v985, %v985
    %v1194 = vpack.c.bf16 %v986, %v986
    %v1195 = vpack.c.bf16 %v987, %v987
    %v1196 = vpack.c.bf16 %v988, %v988
    %v1197 = vpack.c.bf16 %v989, %v989
    %v1204 = vunpack.c.l.b16 %v1192
    %v1205 = vunpack.c.l.b16 %v1193
    %v1206 = vunpack.c.l.b16 %v1194
    %v1207 = vunpack.c.l.b16 %v1195
    %v1208 = vunpack.c.l.b16 %v1196
    %v1209 = vunpack.c.l.b16 %v1197
    %v1210 = vpack.c.b16 %v1206, %v1204
    %v1211 = vpack.c.b16 %v1207, %v1205
    %v1212 = vpack.c.b16 %v1208, %v1208
    %v1213 = vpack.c.b16 %v1209, %v1209
    %v1250 = vunpack.c.l.b16 %v1158
    %v1251 = vunpack.c.h.b16 %v1158
    %v1252 = vunpack.c.l.b16 %v1159
    %v1253 = vunpack.c.h.b16 %v1159
    %v1254 = vunpack.c.l.b16 %v1160
    %v1255 = vunpack.c.h.b16 %v1160
    %v1256 = vunpack.c.l.b16 %v1161
    %v1257 = vunpack.c.h.b16 %v1161
    %v1258 = vunpack.c.l.b16 %v1162
    %v1259 = vunpack.c.h.b16 %v1162
    %v1260 = vunpack.c.l.b16 %v1163
    %v1261 = vunpack.c.h.b16 %v1163
    %v1262 = vunpack.c.l.b16 %v1164
    %v1263 = vunpack.c.h.b16 %v1164
    %v1264 = vunpack.c.l.b16 %v1165
    %v1265 = vunpack.c.h.b16 %v1165
    %v1266 = vunpack.c.l.b16 %v1166
    %v1267 = vunpack.c.h.b16 %v1166
    %v1268 = vunpack.c.l.b16 %v1167
    %v1269 = vunpack.c.h.b16 %v1167
    %v1270 = vunpack.c.l.b16 %v1168
    %v1271 = vunpack.c.h.b16 %v1168
    %v1272 = vunpack.c.l.b16 %v1169
    %v1273 = vunpack.c.h.b16 %v1169
    %v1274 = vunpack.c.l.b16 %v1170
    %v1275 = vunpack.c.h.b16 %v1170
    %v1276 = vunpack.c.l.b16 %v1171
    %v1277 = vunpack.c.h.b16 %v1171
    %v1278 = vunpack.c.l.b16 %v1172
    %v1279 = vunpack.c.h.b16 %v1172
    %v1280 = vunpack.c.l.b16 %v1173
    %v1281 = vunpack.c.h.b16 %v1173
    %v1282 = vunpack.c.l.b16 %v1174
    %v1283 = vunpack.c.h.b16 %v1174
    %v1284 = vunpack.c.l.b16 %v1175
    %v1285 = vunpack.c.h.b16 %v1175
    %v1286 = vunpack.c.l.b16 %v1176
    %v1287 = vunpack.c.h.b16 %v1176
    %v1288 = vunpack.c.l.b16 %v1177
    %v1289 = vunpack.c.h.b16 %v1177
    %v1290 = vunpack.c.l.b16 %v1178
    %v1291 = vunpack.c.h.b16 %v1178
    %v1292 = vunpack.c.l.b16 %v1179
    %v1293 = vunpack.c.h.b16 %v1179
    %v1294 = vunpack.c.l.b16 %v1180
    %v1295 = vunpack.c.h.b16 %v1180
    %v1296 = vunpack.c.l.b16 %v1181
    %v1297 = vunpack.c.h.b16 %v1181
    %v1298 = vunpack.c.l.b16 %v1182
    %v1299 = vunpack.c.h.b16 %v1182
    %v1300 = vunpack.c.l.b16 %v1183
    %v1301 = vunpack.c.h.b16 %v1183
    %v1302 = vunpack.c.l.b16 %v1184
    %v1303 = vunpack.c.h.b16 %v1184
    %v1304 = vunpack.c.l.b16 %v1185
    %v1305 = vunpack.c.h.b16 %v1185
    %v1306 = vunpack.c.l.b16 %v1186
    %v1307 = vunpack.c.h.b16 %v1186
    %v1308 = vunpack.c.l.b16 %v1187
    %v1309 = vunpack.c.h.b16 %v1187
    %v1310 = vunpack.c.l.b16 %v1188
    %v1311 = vunpack.c.h.b16 %v1188
    %v1312 = vunpack.c.l.b16 %v1189
    %v1313 = vunpack.c.h.b16 %v1189
    %v1314 = vpack.c.b16 %v1252, %v1250
    %v1315 = vpack.c.b16 %v1253, %v1251
    %v1316 = vpack.c.b16 %v1256, %v1254
    %v1317 = vpack.c.b16 %v1257, %v1255
    %v1318 = vpack.c.b16 %v1260, %v1258
    %v1319 = vpack.c.b16 %v1261, %v1259
    %v1320 = vpack.c.b16 %v1264, %v1262
    %v1321 = vpack.c.b16 %v1265, %v1263
    %v1322 = vpack.c.b16 %v1268, %v1266
    %v1323 = vpack.c.b16 %v1269, %v1267
    %v1324 = vpack.c.b16 %v1272, %v1270
    %v1325 = vpack.c.b16 %v1273, %v1271
    %v1326 = vpack.c.b16 %v1276, %v1274
    %v1327 = vpack.c.b16 %v1277, %v1275
    %v1328 = vpack.c.b16 %v1280, %v1278
    %v1329 = vpack.c.b16 %v1281, %v1279
    %v1330 = vpack.c.b16 %v1284, %v1282
    %v1331 = vpack.c.b16 %v1285, %v1283
    %v1332 = vpack.c.b16 %v1288, %v1286
    %v1333 = vpack.c.b16 %v1289, %v1287
    %v1334 = vpack.c.b16 %v1292, %v1290
    %v1335 = vpack.c.b16 %v1293, %v1291
    %v1336 = vpack.c.b16 %v1296, %v1294
    %v1337 = vpack.c.b16 %v1297, %v1295
    %v1338 = vpack.c.b16 %v1300, %v1298
    %v1339 = vpack.c.b16 %v1301, %v1299
    %v1340 = vpack.c.b16 %v1304, %v1302
    %v1341 = vpack.c.b16 %v1305, %v1303
    %v1342 = vpack.c.b16 %v1308, %v1306
    %v1343 = vpack.c.b16 %v1309, %v1307
    %v1344 = vpack.c.b16 %v1312, %v1310
    %v1345 = vpack.c.b16 %v1313, %v1311
    %1378 = vmatprep.subr.bf16.mxu0 %v1315
    %1379 = vmatpush1.bf16.msra.mxu0 %v1314
    %1380 = vmatprep.subr.bf16.mxu0 %v1317
    %1381 = vmatpush1.bf16.msra.mxu0 %v1316
    %1382 = vmatprep.subr.bf16.mxu0 %v1319
    %1383 = vmatpush1.bf16.msra.mxu0 %v1318
    %1384 = vmatprep.subr.bf16.mxu0 %v1321
    %1385 = vmatpush1.bf16.msra.mxu0 %v1320
    %1386 = vmatprep.subr.bf16.mxu0 %v1323
    %1387 = vmatpush1.bf16.msra.mxu0 %v1322
    %1388 = vmatprep.subr.bf16.mxu0 %v1325
    %1389 = vmatpush1.bf16.msra.mxu0 %v1324
    %1390 = vmatprep.subr.bf16.mxu0 %v1327
    %1391 = vmatpush1.bf16.msra.mxu0 %v1326
    %1392 = vmatprep.subr.bf16.mxu0 %v1329
    %1393 = vmatpush1.bf16.msra.mxu0 %v1328
    %1394 = vmatprep.subr.bf16.mxu0 %v1331
    %1395 = vmatpush1.bf16.msra.mxu0 %v1330
    %1396 = vmatprep.subr.bf16.mxu0 %v1333
    %1397 = vmatpush1.bf16.msra.mxu0 %v1332
    %1398 = vmatprep.subr.bf16.mxu0 %v1335
    %1399 = vmatpush1.bf16.msra.mxu0 %v1334
    %1400 = vmatprep.subr.bf16.mxu0 %v1337
    %1401 = vmatpush1.bf16.msra.mxu0 %v1336
    %1402 = vmatprep.subr.bf16.mxu0 %v1339
    %1403 = vmatpush1.bf16.msra.mxu0 %v1338
    %1404 = vmatprep.subr.bf16.mxu0 %v1341
    %1405 = vmatpush1.bf16.msra.mxu0 %v1340
    %1406 = vmatprep.subr.bf16.mxu0 %v1343
    %1407 = vmatpush1.bf16.msra.mxu0 %v1342
    %1408 = vmatprep.subr.bf16.mxu0 %v1345
    %1409 = vmatpush1.bf16.msra.mxu0 %v1344
    %1410 = vmatprep.mubr.bf16.mxu0 %v1211
    %1411 = vmatmul.mubr.bf16.gmra.mrb[0].mxu0 %v1210
    %v1412 = vpop.f32.mrb[0].mxu0
    %v1413 = vadd.f32 0.0, %v1412
    %v1414 = vpop.f32.mrb[0].mxu0
    %v1415 = vadd.f32 0.0, %v1414
    %v1416 = vpop.f32.mrb[0].mxu0
    %v1417 = vadd.f32 0.0, %v1416
    %v1418 = vpop.f32.mrb[0].mxu0
    %v1419 = vadd.f32 0.0, %v1418
    %1420 = vmatprep.mubr.bf16.mxu0 %v1213
    %1421 = vmatmul.mubr.bf16.gmra.mrb[0].mxu0 %v1212
    %v1422 = vpop.f32.mrb[0].mxu0
    %v1423 = vadd.f32 0.0, %v1422
    %v1424 = vpop.f32.mrb[0].mxu0
    %v1425 = vadd.f32 0.0, %v1424
    %v1426 = vpop.f32.mrb[0].mxu0
    %v1427 = vpop.f32.mrb[0].mxu0
    %1428 = vdwg.mxu0
    %v1429 = vmul.f32 %v1413, %v1413
    %v1430 = vmul.f32 %v1417, %v1417
    %v1431 = vmul.f32 %v1423, %v1423
    %v1432 = vadd.f32 %v1429, %v1430
    %v1433 = vadd.f32 %v1432, %v1431
    %v1434 = vrsqrt.pop %v1433
    %v1435 = vmul.f32 %v1433, %v1434
    %vm1436 = vcmp.eq.f32.partialorder %v1433, inf
    %v1437 = vsel %vm1436, %v1433, %v1435
    %vm1438 = vcmp.eq.f32.partialorder %v1433, 0.0
    %v1439 = vand.u32 %v1433, 2147483648
    %v1440 = vsel %vm1438, %v1439, %v1437
    %v1441 = vadd.f32 %v1440, 1e-06
    %v1443 = vlaneseq
    %v1444 = vshrl.u32 %v1443, 7
    %v1445 = vsub.s32 0, %v1444
    %v1446 = vrot.slane %v1190, %v1445
    %v1448 = vmul.f32 %v1441, %v1446
    %v1450 = vlaneseq
    %v1451 = vshrl.u32 %v1450, 7
    %v1452 = vsub.s32 0, %v1451
    %v1453 = vrot.slane %v1191, %v1452
    %v1455 = vadd.f32 %v1448, %v1453
    %v1456 = vrcp.pop %v1441
    %v1457 = vmul.f32 %v1455, %v1456
    %v1458 = vmul.f32 %v1413, %v1457
    %v1459 = vmul.f32 %v1417, %v1457
    %v1460 = vmul.f32 %v1423, %v1457
    %v1461 = vmul.f32 %v1458, %v1415
    %v1462 = vmul.f32 %v1459, %v1419
    %v1463 = vmul.f32 %v1460, %v1425
    %v1464 = vadd.f32 %v1461, %v1462
    %v1465 = vadd.f32 %v1464, %v1463
    %v1466 = vmul.f32 %v1415, %v1415
    %v1467 = vmul.f32 %v1419, %v1419
    %v1468 = vmul.f32 %v1425, %v1425
    %v1469 = vadd.f32 %v1466, %v1467
    %v1470 = vadd.f32 %v1469, %v1468
    %v1471 = vadd.f32 %v1470, 1e-06
    %v1472 = vrcp.pop %v1471
    %v1473 = vmul.f32 %v1465, %v1472
    %vm1474 = vcmp.ge.f32.partialorder %v1465, 0.0
    %v1475 = vmul.f32 %v1473, %v1415
    %v1476 = vmul.f32 %v1473, %v1419
    %v1477 = vmul.f32 %v1473, %v1425
    %v1478 = vsub.f32 %v1458, %v1475
    %v1479 = vsub.f32 %v1459, %v1476
    %v1480 = vsub.f32 %v1460, %v1477
    %v1481 = vsel %vm1474, 1, 0
    %vm1482 = vcmp.eq.s32.totalorder %v1481, 1
    %v1483 = vsel %vm1482, %v1458, %v1478
    %v1484 = vsel %vm1482, %v1459, %v1479
    %v1485 = vsel %vm1482, %v1460, %v1480
    %1486 = vadd.xlane.f32.xlu0 %v1429
    %v1487 = vpop.xlane.xlu0 %1486
    %v1488 = vrot.slane %v1487, 4
    %v1489 = vadd.f32 %v1487, %v1488
    %v1490 = vrot.slane %v1489, 2
    %v1491 = vadd.f32 %v1489, %v1490
    %v1492 = vrot.slane %v1491, 1
    %v1493 = vadd.f32 %v1491, %v1492
    %s1494 = vtos %v1493
    %1495 = vadd.xlane.f32.xlu0 %v1430
    %v1496 = vpop.xlane.xlu0 %1495
    %v1497 = vrot.slane %v1496, 4
    %v1498 = vadd.f32 %v1496, %v1497
    %v1499 = vrot.slane %v1498, 2
    %v1500 = vadd.f32 %v1498, %v1499
    %v1501 = vrot.slane %v1500, 1
    %v1502 = vadd.f32 %v1500, %v1501
    %s1503 = vtos %v1502
    %1504 = vadd.xlane.f32.xlu0 %v1431
    %v1505 = vpop.xlane.xlu0 %1504
    %v1506 = vrot.slane %v1505, 4
    %v1507 = vadd.f32 %v1505, %v1506
    %v1508 = vrot.slane %v1507, 2
    %v1509 = vadd.f32 %v1507, %v1508
    %v1510 = vrot.slane %v1509, 1
    %v1511 = vadd.f32 %v1509, %v1510
    %s1512 = vtos %v1511
    %v1513 = vmul.f32 %v1413, %v1417
    %1514 = vadd.xlane.f32.xlu0 %v1513
    %v1515 = vpop.xlane.xlu0 %1514
    %v1516 = vrot.slane %v1515, 4
    %v1517 = vadd.f32 %v1515, %v1516
    %v1518 = vrot.slane %v1517, 2
    %v1519 = vadd.f32 %v1517, %v1518
    %v1520 = vrot.slane %v1519, 1
    %v1521 = vadd.f32 %v1519, %v1520
    %s1522 = vtos %v1521
    %v1523 = vmul.f32 %v1413, %v1423
    %1524 = vadd.xlane.f32.xlu0 %v1523
    %v1525 = vpop.xlane.xlu0 %1524
    %v1526 = vrot.slane %v1525, 4
    %v1527 = vadd.f32 %v1525, %v1526
    %v1528 = vrot.slane %v1527, 2
    %v1529 = vadd.f32 %v1527, %v1528
    %v1530 = vrot.slane %v1529, 1
    %v1531 = vadd.f32 %v1529, %v1530
    %s1532 = vtos %v1531
    %v1533 = vmul.f32 %v1417, %v1423
    %1534 = vadd.xlane.f32.xlu0 %v1533
    %v1535 = vpop.xlane.xlu0 %1534
    %v1536 = vrot.slane %v1535, 4
    %v1537 = vadd.f32 %v1535, %v1536
    %v1538 = vrot.slane %v1537, 2
    %v1539 = vadd.f32 %v1537, %v1538
    %v1540 = vrot.slane %v1539, 1
    %v1541 = vadd.f32 %v1539, %v1540
    %s1542 = vtos %v1541
    %s1543 = smul.f32 %s1056, %s1494
    %s1544 = smul.f32 %s1058, %s1503
    %s1545 = sadd.f32 %s1543, %s1544
    %s1546 = smul.f32 %s1061, %s1512
    %s1547 = sadd.f32 %s1545, %s1546
    %s1548 = smul.f32 %s1064, %s1522
    %s1549 = smul.f32 %s1066, %s1532
    %s1550 = sadd.f32 %s1548, %s1549
    %s1551 = smul.f32 %s1069, %s1542
    %s1552 = sadd.f32 %s1550, %s1551
    %s1553 = smul.f32 %s1552, 2.0
    %s1554 = sadd.f32 %s1547, %s1553
    %v1555 = vmul.f32 %v1483, %v1483
    %1556 = vadd.xlane.f32.xlu0 %v1555
    %v1557 = vpop.xlane.xlu0 %1556
    %v1558 = vrot.slane %v1557, 4
    %v1559 = vadd.f32 %v1557, %v1558
    %v1560 = vrot.slane %v1559, 2
    %v1561 = vadd.f32 %v1559, %v1560
    %v1562 = vrot.slane %v1561, 1
    %v1563 = vadd.f32 %v1561, %v1562
    %s1564 = vtos %v1563
    %v1565 = vmul.f32 %v1484, %v1484
    %1566 = vadd.xlane.f32.xlu0 %v1565
    %v1567 = vpop.xlane.xlu0 %1566
    %v1568 = vrot.slane %v1567, 4
    %v1569 = vadd.f32 %v1567, %v1568
    %v1570 = vrot.slane %v1569, 2
    %v1571 = vadd.f32 %v1569, %v1570
    %v1572 = vrot.slane %v1571, 1
    %v1573 = vadd.f32 %v1571, %v1572
    %s1574 = vtos %v1573
    %v1575 = vmul.f32 %v1485, %v1485
    %1576 = vadd.xlane.f32.xlu0 %v1575
    %v1577 = vpop.xlane.xlu0 %1576
    %v1578 = vrot.slane %v1577, 4
    %v1579 = vadd.f32 %v1577, %v1578
    %v1580 = vrot.slane %v1579, 2
    %v1581 = vadd.f32 %v1579, %v1580
    %v1582 = vrot.slane %v1581, 1
    %v1583 = vadd.f32 %v1581, %v1582
    %s1584 = vtos %v1583
    %v1585 = vmul.f32 %v1483, %v1484
    %1586 = vadd.xlane.f32.xlu0 %v1585
    %v1587 = vpop.xlane.xlu0 %1586
    %v1588 = vrot.slane %v1587, 4
    %v1589 = vadd.f32 %v1587, %v1588
    %v1590 = vrot.slane %v1589, 2
    %v1591 = vadd.f32 %v1589, %v1590
    %v1592 = vrot.slane %v1591, 1
    %v1593 = vadd.f32 %v1591, %v1592
    %s1594 = vtos %v1593
    %v1595 = vmul.f32 %v1483, %v1485
    %1596 = vadd.xlane.f32.xlu0 %v1595
    %v1597 = vpop.xlane.xlu0 %1596
    %v1598 = vrot.slane %v1597, 4
    %v1599 = vadd.f32 %v1597, %v1598
    %v1600 = vrot.slane %v1599, 2
    %v1601 = vadd.f32 %v1599, %v1600
    %v1602 = vrot.slane %v1601, 1
    %v1603 = vadd.f32 %v1601, %v1602
    %s1604 = vtos %v1603
    %v1605 = vmul.f32 %v1484, %v1485
    %1606 = vadd.xlane.f32.xlu0 %v1605
    %v1607 = vpop.xlane.xlu0 %1606
    %v1608 = vrot.slane %v1607, 4
    %v1609 = vadd.f32 %v1607, %v1608
    %v1610 = vrot.slane %v1609, 2
    %v1611 = vadd.f32 %v1609, %v1610
    %v1612 = vrot.slane %v1611, 1
    %v1613 = vadd.f32 %v1611, %v1612
    %s1614 = vtos %v1613
    %s1615 = smul.f32 %s1056, %s1564
    %s1616 = smul.f32 %s1058, %s1574
    %s1617 = sadd.f32 %s1615, %s1616
    %s1618 = smul.f32 %s1061, %s1584
    %s1619 = sadd.f32 %s1617, %s1618
    %s1620 = smul.f32 %s1064, %s1594
    %s1621 = smul.f32 %s1066, %s1604
    %s1622 = sadd.f32 %s1620, %s1621
    %s1623 = smul.f32 %s1069, %s1614
    %s1624 = sadd.f32 %s1622, %s1623
    %s1625 = smul.f32 %s1624, 2.0
    %s1626 = sadd.f32 %s1619, %s1625
    %v1627 = vld [vmem:[%s7] sm:$0xf]
    %v1628 = vld [vmem:[%s7 + $0x4] sm:$0xf]
    %v1629 = vld [vmem:[%s7 + $0x8] sm:$0xf]
    %v1630 = vld [vmem:[%s7 + $0xc] sm:$0xf]
    %v1631 = vld [vmem:[%s7 + $0x10] sm:$0xf]
    %v1632 = vld [vmem:[%s7 + $0x14] sm:$0xf]
    %v1633 = vld [vmem:[%s7 + $0x18] sm:$0xf]
    %v1634 = vld [vmem:[%s7 + $0x1c] sm:$0xf]
    %v1635 = vld [vmem:[%s7 + $0x20] sm:$0xf]
    %v1636 = vld [vmem:[%s7 + $0x24] sm:$0xf]
    %v1637 = vld [vmem:[%s7 + $0x28] sm:$0xf]
    %v1638 = vld [vmem:[%s7 + $0x2c] sm:$0xf]
    %v1639 = vld [vmem:[%s7 + $0x30] sm:$0xf]
    %v1640 = vld [vmem:[%s7 + $0x34] sm:$0xf]
    %v1641 = vld [vmem:[%s7 + $0x38] sm:$0xf]
    %v1642 = vld [vmem:[%s7 + $0x3c] sm:$0xf]
    %v1643 = vpack.c.bf16 %v1483, %v1483
    %v1644 = vpack.c.bf16 %v1484, %v1484
    %v1645 = vpack.c.bf16 %v1485, %v1485
    %v1649 = vunpack.c.l.b16 %v1643
    %v1650 = vunpack.c.l.b16 %v1644
    %v1651 = vunpack.c.l.b16 %v1645
    %v1652 = vpack.c.b16 %v1650, %v1649
    %v1653 = vpack.c.b16 %v1651, %v1651
    %v1672 = vunpack.c.l.b16 %v1627
    %v1673 = vunpack.c.l.b16 %v1628
    %v1674 = vunpack.c.l.b16 %v1629
    %v1675 = vunpack.c.l.b16 %v1630
    %v1676 = vunpack.c.l.b16 %v1631
    %v1677 = vunpack.c.l.b16 %v1632
    %v1678 = vunpack.c.l.b16 %v1633
    %v1679 = vunpack.c.l.b16 %v1634
    %v1680 = vunpack.c.l.b16 %v1635
    %v1681 = vunpack.c.l.b16 %v1636
    %v1682 = vunpack.c.l.b16 %v1637
    %v1683 = vunpack.c.l.b16 %v1638
    %v1684 = vunpack.c.l.b16 %v1639
    %v1685 = vunpack.c.l.b16 %v1640
    %v1686 = vunpack.c.l.b16 %v1641
    %v1687 = vunpack.c.l.b16 %v1642
    %v1688 = vpack.c.b16 %v1673, %v1672
    %v1689 = vpack.c.b16 %v1675, %v1674
    %v1690 = vpack.c.b16 %v1677, %v1676
    %v1691 = vpack.c.b16 %v1679, %v1678
    %v1692 = vpack.c.b16 %v1681, %v1680
    %v1693 = vpack.c.b16 %v1683, %v1682
    %v1694 = vpack.c.b16 %v1685, %v1684
    %v1695 = vpack.c.b16 %v1687, %v1686
    %1704 = vmatprep.subr.bf16.mxu0 0
    %1705 = vmatpush1.bf16.msra.mxu0 %v1688
    %1706 = vmatprep.subr.bf16.mxu0 0
    %1707 = vmatpush1.bf16.msra.mxu0 %v1689
    %1708 = vmatprep.subr.bf16.mxu0 0
    %1709 = vmatpush1.bf16.msra.mxu0 %v1690
    %1710 = vmatprep.subr.bf16.mxu0 0
    %1711 = vmatpush1.bf16.msra.mxu0 %v1691
    %1712 = vmatprep.subr.bf16.mxu0 0
    %1713 = vmatpush1.bf16.msra.mxu0 %v1692
    %1714 = vmatprep.subr.bf16.mxu0 0
    %1715 = vmatpush1.bf16.msra.mxu0 %v1693
    %1716 = vmatprep.subr.bf16.mxu0 0
    %1717 = vmatpush1.bf16.msra.mxu0 %v1694
    %1718 = vmatprep.subr.bf16.mxu0 0
    %1719 = vmatpush1.bf16.msra.mxu0 %v1695
    %1720 = vmatprep.subr.bf16.mxu0 0
    %1721 = vmatpush1.bf16.msra.mxu0 0
    %1722 = vmatprep.subr.bf16.mxu0 0
    %1723 = vmatpush1.bf16.msra.mxu0 0
    %1724 = vmatprep.subr.bf16.mxu0 0
    %1725 = vmatpush1.bf16.msra.mxu0 0
    %1726 = vmatprep.subr.bf16.mxu0 0
    %1727 = vmatpush1.bf16.msra.mxu0 0
    %1728 = vmatprep.subr.bf16.mxu0 0
    %1729 = vmatpush1.bf16.msra.mxu0 0
    %1730 = vmatprep.subr.bf16.mxu0 0
    %1731 = vmatpush1.bf16.msra.mxu0 0
    %1732 = vmatprep.subr.bf16.mxu0 0
    %1733 = vmatpush1.bf16.msra.mxu0 0
    %1734 = vmatprep.subr.bf16.mxu0 0
    %1735 = vmatpush1.bf16.msra.mxu0 0
    %1736 = vmatprep.mubr.bf16.mxu0 0
    %1737 = vmatmul.mubr.bf16.gmra.mrb[0].mxu0 %v1652
    %v1738 = vpop.f32.mrb[0].mxu0
    %v1739 = vadd.f32 0.0, %v1738
    %v1740 = vpop.f32.mrb[0].mxu0
    %v1741 = vpop.f32.mrb[0].mxu0
    %v1742 = vadd.f32 0.0, %v1741
    %v1743 = vpop.f32.mrb[0].mxu0
    %1744 = vmatprep.mubr.bf16.mxu0 0
    %1745 = vmatmul.mubr.bf16.gmra.mrb[0].mxu0 %v1653
    %v1746 = vpop.f32.mrb[0].mxu0
    %v1747 = vadd.f32 0.0, %v1746
    %v1748 = vpop.f32.mrb[0].mxu0
    %v1749 = vpop.f32.mrb[0].mxu0
    %v1750 = vpop.f32.mrb[0].mxu0
    %1751 = vdwg.mxu0
    %v1752 = vmul.f32 %v1739, %v1739
    %vm1753 = vcmask 130048
    %v1754 = vsel %vm1753, %v1752, 0.0
    %1755 = vadd.xlane.f32.xlu0 %v1754
    %v1756 = vpop.xlane.xlu0 %1755
    %v1757 = vrot.slane %v1756, 4
    %v1758 = vadd.f32 %v1756, %v1757
    %v1759 = vrot.slane %v1758, 2
    %v1760 = vadd.f32 %v1758, %v1759
    %v1761 = vrot.slane %v1760, 1
    %v1762 = vadd.f32 %v1760, %v1761
    %s1763 = vtos %v1762
    %v1764 = vmul.f32 %v1742, %v1742
    %v1765 = vsel %vm1753, %v1764, 0.0
    %1766 = vadd.xlane.f32.xlu0 %v1765
    %v1767 = vpop.xlane.xlu0 %1766
    %v1768 = vrot.slane %v1767, 4
    %v1769 = vadd.f32 %v1767, %v1768
    %v1770 = vrot.slane %v1769, 2
    %v1771 = vadd.f32 %v1769, %v1770
    %v1772 = vrot.slane %v1771, 1
    %v1773 = vadd.f32 %v1771, %v1772
    %s1774 = vtos %v1773
    %v1775 = vmul.f32 %v1747, %v1747
    %v1776 = vsel %vm1753, %v1775, 0.0
    %1777 = vadd.xlane.f32.xlu0 %v1776
    %v1778 = vpop.xlane.xlu0 %1777
    %v1779 = vrot.slane %v1778, 4
    %v1780 = vadd.f32 %v1778, %v1779
    %v1781 = vrot.slane %v1780, 2
    %v1782 = vadd.f32 %v1780, %v1781
    %v1783 = vrot.slane %v1782, 1
    %v1784 = vadd.f32 %v1782, %v1783
    %s1785 = vtos %v1784
    %v1786 = vmul.f32 %v1739, %v1742
    %v1787 = vsel %vm1753, %v1786, 0.0
    %1788 = vadd.xlane.f32.xlu0 %v1787
    %v1789 = vpop.xlane.xlu0 %1788
    %v1790 = vrot.slane %v1789, 4
    %v1791 = vadd.f32 %v1789, %v1790
    %v1792 = vrot.slane %v1791, 2
    %v1793 = vadd.f32 %v1791, %v1792
    %v1794 = vrot.slane %v1793, 1
    %v1795 = vadd.f32 %v1793, %v1794
    %s1796 = vtos %v1795
    %v1797 = vmul.f32 %v1739, %v1747
    %v1798 = vsel %vm1753, %v1797, 0.0
    %1799 = vadd.xlane.f32.xlu0 %v1798
    %v1800 = vpop.xlane.xlu0 %1799
    %v1801 = vrot.slane %v1800, 4
    %v1802 = vadd.f32 %v1800, %v1801
    %v1803 = vrot.slane %v1802, 2
    %v1804 = vadd.f32 %v1802, %v1803
    %v1805 = vrot.slane %v1804, 1
    %v1806 = vadd.f32 %v1804, %v1805
    %s1807 = vtos %v1806
    %v1808 = vmul.f32 %v1742, %v1747
    %v1809 = vsel %vm1753, %v1808, 0.0
    %1810 = vadd.xlane.f32.xlu0 %v1809
    %v1811 = vpop.xlane.xlu0 %1810
    %v1812 = vrot.slane %v1811, 4
    %v1813 = vadd.f32 %v1811, %v1812
    %v1814 = vrot.slane %v1813, 2
    %v1815 = vadd.f32 %v1813, %v1814
    %v1816 = vrot.slane %v1815, 1
    %v1817 = vadd.f32 %v1815, %v1816
    %s1818 = vtos %v1817
    %s1819 = smul.f32 %s1056, %s1763
    %s1820 = smul.f32 %s1058, %s1774
    %s1821 = sadd.f32 %s1819, %s1820
    %s1822 = smul.f32 %s1061, %s1785
    %s1823 = sadd.f32 %s1821, %s1822
    %s1824 = smul.f32 %s1064, %s1796
    %s1825 = smul.f32 %s1066, %s1807
    %s1826 = sadd.f32 %s1824, %s1825
    %s1827 = smul.f32 %s1069, %s1818
    %s1828 = sadd.f32 %s1826, %s1827
    %s1829 = smul.f32 %s1828, 2.0
    %s1830 = sadd.f32 %s1823, %s1829
    %1831 = vst.msk [vmem:[%s9] sm:$0xff] %vm1753, %v1739
    %1832 = vst.msk [vmem:[%s9 + $0x8] sm:$0xff] %vm1753, %v1742
    %1833 = vst.msk [vmem:[%s9 + $0x10] sm:$0xff] %vm1753, %v1747
    %s1834 = sadd.f32 %s1073, %s1554
    %s1835 = sadd.f32 %s1834, %s1830
    %s1836 = sadd.f32 %s1157, %s1626
    %s1837 = sadd.f32 %s1836, %s1830
    %v1838 = vlaneseq
    %v1839 = vshrl.u32 %v1838, 7
    %v1840 = vlaneseq
    %v1841 = vand.u32 %v1840, 127
    %vm1842 = vcmp.eq.s32.totalorder %v1839, 0
    %vm1843 = vcmp.eq.s32.totalorder %v1841, 0
    %vm1844 = vmand %vm1842, %vm1843
    %v1845 = vstv %s1835
    %v1846 = vsel %vm1844, %v1845, 0.0
    %vm1847 = vcmp.eq.s32.totalorder %v1841, 1
    %vm1848 = vmand %vm1842, %vm1847
    %v1849 = vstv %s1837
    %v1850 = vsel %vm1848, %v1849, %v1846
    %1851 = vst [vmem:[%s10] sm:$0xff] %v1850
    // Predicated region
    $region42: #{stnkd_dual_forward.3} parent=1 // pred_check
      _
    $region43: #{stnkd_dual_forward.3} parent=1 // pred_check_branch
      %1853 = sbr.rel (0) target = $region45
    $region44: #{stnkd_dual_forward.3} parent=1 // pred_region
      _
    $region45: #{stnkd_dual_forward.3} parent=1 // pred_fallthru
      _
    // Predicated region
    $region46: #{stnkd_dual_forward.3} parent=1 // pred_check
      _
    $region47: #{stnkd_dual_forward.3} parent=1 // pred_check_branch
      %1855 = sbr.rel (0) target = $region49
    $region48: #{stnkd_dual_forward.3} parent=1 // pred_region
      _
    $region49: #{stnkd_dual_forward.3} parent=1 // pred_fallthru
      _
    // Predicated region
    $region50: #{stnkd_dual_forward.3} parent=1 // pred_check
      _
    $region51: #{stnkd_dual_forward.3} parent=1 // pred_check_branch
      %1857 = sbr.rel (0) target = $region53
    $region52: #{stnkd_dual_forward.3} parent=1 // pred_region
      _
    $region53: #{stnkd_dual_forward.3} parent=1 // pred_fallthru
      _
    // Predicated region
    $region54: #{stnkd_dual_forward.3} parent=1 // pred_check
      _
    $region55: #{stnkd_dual_forward.3} parent=1 // pred_check_branch
      %1859 = sbr.rel (0) target = $region57
    $region56: #{stnkd_dual_forward.3} parent=1 // pred_region
      _
    $region57: #{stnkd_dual_forward.3} parent=1 // pred_fallthru
      _
    %1860 = vsyncpa [#allocation3], 1

</llo_original>
